<compile_context>
chip_gen: v7x
topology: tpu7x:2x2x1
jax: 0.10.0
libtpu: 0.0.40
codegen_flags: <defaults>
</compile_context>

<pallas_src>
import jax
import jax.numpy as jnp
from jax.experimental import pallas as pl
from jax.experimental.pallas import tpu as pltpu

N = 8    # batch size (number of embeddings)
D = 32   # embedding dimension


def adatriplet_kernel(x_a_ref, x_f_ref, lab_a_ref, lab_f_ref, scal_ref,
                      out_ref, acc_ref):
    ta = x_a_ref.shape[0]          # anchor rows in this tile
    n = x_f_ref.shape[0]           # full batch size

    eps = scal_ref[0]
    beta = scal_ref[1]
    la = scal_ref[2]

    # ---- init running sums (tri_num, tri_cnt, an_num, an_cnt) ----
    @pl.when(pl.program_id(0) == 0)
    def _():
        acc_ref[0] = jnp.float32(0.0)
        acc_ref[1] = jnp.float32(0.0)
        acc_ref[2] = jnp.float32(0.0)
        acc_ref[3] = jnp.float32(0.0)

    # ---- l2-normalize (rsqrt -> EUP; matches F.normalize(p=2, eps=1e-12)) ----
    def normalize(x):
        x = x.astype(jnp.float32)
        ss = jnp.sum(x * x, axis=1, keepdims=True)
        return x * jax.lax.rsqrt(jnp.maximum(ss, 1e-24))

    xn_a = normalize(x_a_ref[...])                       # (ta, D)
    xn_f = normalize(x_f_ref[...])                       # (n,  D)

    # ---- cosine-distance tile on the MXU: bf16 operands, f32 accumulate ----
    xa16 = xn_a.astype(jnp.bfloat16)
    xf16 = xn_f.astype(jnp.bfloat16)
    mat = -jax.lax.dot_general(xa16, xf16, (((1,), (1,)), ((), ())),
                               preferred_element_type=jnp.float32)    # (ta, n)
    # transposed tile computed directly on the MXU (no in-kernel transpose op)
    matt = -jax.lax.dot_general(xf16, xa16, (((1,), (1,)), ((), ())),
                                preferred_element_type=jnp.float32)   # (n, ta)

    # ---- masks built in-kernel from labels ----
    lab_a = lab_a_ref[...]                               # (ta, 1) int32
    lab_f = lab_f_ref[...]                               # (1, n)  int32
    same = lab_a == lab_f                                # (ta, n)
    a0 = pl.program_id(0) * ta
    rid = a0 + jax.lax.broadcasted_iota(jnp.int32, (ta, n), 0)   # global anchor idx
    cid = jax.lax.broadcasted_iota(jnp.int32, (ta, n), 1)        # global column idx
    posm = jnp.where(jnp.logical_and(same, rid != cid), 1.0, 0.0).astype(jnp.float32)
    negm = jnp.where(same, 0.0, 1.0).astype(jnp.float32)

    # triplet count, separable per anchor: sum_a rowsum(posm) * rowsum(negm)
    p_cnt = jnp.sum(posm, axis=1, keepdims=True)         # (ta, 1)
    n_cnt = jnp.sum(negm, axis=1, keepdims=True)         # (ta, 1)
    tri_cnt = jnp.sum(p_cnt * n_cnt)

    # anchor-negative term fused into the same pass over the Gram tile
    an_num = jnp.sum(jnp.maximum(-mat - beta, 0.0) * negm)
    an_cnt = jnp.sum(negm)

    # ---- triplet numerator: per-anchor 2D bilinear form (never 3D) ----
    ids_r = jax.lax.broadcasted_iota(jnp.int32, (1, ta), 1)
    ids_c = jax.lax.broadcasted_iota(jnp.int32, (ta, 1), 0)

    def per_anchor(a, acc):
        # one-hot row/column selectors -> MXU matvecs (no dynamic lane slicing)
        oh_r = jnp.where(ids_r == a, 1.0, 0.0).astype(jnp.float32)       # (1, ta)
        oh_c = jnp.where(ids_c == a, 1.0, 0.0).astype(jnp.float32)       # (ta, 1)
        row = jax.lax.dot_general(oh_r, mat, (((1,), (0,)), ((), ())),
                                  preferred_element_type=jnp.float32)    # (1, n) = d(a, .)
        col = jax.lax.dot_general(matt, oh_c, (((1,), (0,)), ((), ())),
                                  preferred_element_type=jnp.float32)    # (n, 1) = d(a, .)
        p_row = jax.lax.dot_general(oh_r, posm, (((1,), (0,)), ((), ())),
                                    preferred_element_type=jnp.float32)  # (1, n)
        n_row = jax.lax.dot_general(oh_r, negm, (((1,), (0,)), ((), ())),
                                    preferred_element_type=jnp.float32)  # (1, n)
        # r[p, q] = relu(d_ap - d_aq + eps)
        r = jnp.maximum(col - row + eps, 0.0)                            # (n, n)
        pr = jax.lax.dot_general(p_row, r, (((1,), (0,)), ((), ())),
                                 preferred_element_type=jnp.float32)     # (1, n)
        c = jax.lax.dot_general(pr, n_row, (((1,), (1,)), ((), ())),
                                preferred_element_type=jnp.float32)      # (1, 1)
        return acc + jnp.sum(c)

    tri_num = jax.lax.fori_loop(0, ta, per_anchor, jnp.float32(0.0),
                                unroll=(ta <= 16))

    acc_ref[0] += tri_num
    acc_ref[1] += tri_cnt
    acc_ref[2] += an_num
    acc_ref[3] += an_cnt

    # ---- finalize on the last anchor tile ----
    @pl.when(pl.program_id(0) == pl.num_programs(0) - 1)
    def _():
        t_num = acc_ref[0]
        t_cnt = acc_ref[1]
        a_num = acc_ref[2]
        a_cnt = acc_ref[3]
        loss_tri = jnp.where(t_cnt > 0.0, t_num / jnp.maximum(t_cnt, 1.0), 0.0)
        loss_an = jnp.where(a_cnt > 0.0, a_num / jnp.maximum(a_cnt, 1.0), 0.0)
        out_ref[0, 0] = loss_tri + la * loss_an


def ada_triplet_loss(logits, labels, *, epsilon=0.2, beta=0.4, la=1.0):
    """Wrapper: anchor-tiled Pallas call; masks are built inside the kernel."""
    n, d = logits.shape
    if n <= 128:
        ta = n
    else:
        ta = 128
        # TODO(synk): pad N up to a multiple of 128 (and mask the pad rows) for
        # batch sizes that are not 128-aligned.
        assert n % ta == 0, "batch size must be a multiple of 128 when N > 128"
    grid = (n // ta,)

    lab_col = labels.reshape(n, 1).astype(jnp.int32)
    lab_row = labels.reshape(1, n).astype(jnp.int32)
    scal = jnp.array([epsilon, beta, la], dtype=jnp.float32)

    out = pl.pallas_call(
        adatriplet_kernel,
        out_shape=jax.ShapeDtypeStruct((1, 1), jnp.float32),
        grid_spec=pltpu.PrefetchScalarGridSpec(
            num_scalar_prefetch=0,
            grid=grid,
            in_specs=[
                pl.BlockSpec((ta, d), lambda i: (i, 0)),   # anchor-row tile of logits
                pl.BlockSpec((n, d), lambda i: (0, 0)),    # full logits (fetched once)
                pl.BlockSpec((ta, 1), lambda i: (i, 0)),   # anchor labels (column)
                pl.BlockSpec((1, n), lambda i: (0, 0)),    # all labels (row)
                pl.BlockSpec(memory_space=pltpu.MemorySpace.SMEM),  # [eps, beta, la]
            ],
            out_specs=pl.BlockSpec(memory_space=pltpu.MemorySpace.SMEM),
            scratch_shapes=[pltpu.SMEM((4,), jnp.float32)],
        ),
        compiler_params=pltpu.CompilerParams(
            # anchor axis carries the SMEM accumulator -> must stay sequential
            dimension_semantics=("arbitrary",)),
    )(logits, logits, lab_col, lab_row, scal)   # native dtype; cast happens in-kernel
    return out[0, 0]


def _reference_loss(logits, labels, *, epsilon=0.2, beta=0.4, la=1.0):
    """Pure-JAX f32 reference mirroring the PyTorch forward semantics."""
    x = logits.astype(jnp.float32)
    xn = x / jnp.maximum(jnp.linalg.norm(x, axis=1, keepdims=True), 1e-12)
    mat = -(xn @ xn.T)
    n = logits.shape[0]
    eye = jnp.eye(n, dtype=bool)
    same = labels[:, None] == labels[None, :]
    posm = (same & ~eye).astype(jnp.float32)
    negm = (~same).astype(jnp.float32)
    tri_mask = posm[:, :, None] * negm[:, None, :]
    viol = jnp.maximum(mat[:, :, None] - mat[:, None, :] + epsilon, 0.0) * tri_mask
    n_tri = jnp.sum(tri_mask)
    loss_tri = jnp.where(n_tri > 0, jnp.sum(viol) / jnp.maximum(n_tri, 1.0), 0.0)
    an_terms = jnp.maximum(-mat - beta, 0.0) * negm
    n_an = jnp.sum(negm)
    loss_an = jnp.where(n_an > 0, jnp.sum(an_terms) / jnp.maximum(n_an, 1.0), 0.0)
    return loss_tri + la * loss_an


if __name__ == "__main__":
    key = jax.random.PRNGKey(0)
    k1, k2 = jax.random.split(key)
    logits = jax.random.normal(k1, (N, D), dtype=jnp.float32)
    labels = jax.random.randint(k2, (N,), 0, 3, dtype=jnp.int32)

    loss = ada_triplet_loss(logits, labels)
    loss = jax.block_until_ready(loss)

    ref = jax.block_until_ready(_reference_loss(logits, labels))
    # bf16 Gram operands -> slightly looser tolerance vs. the f32 reference.
    assert jnp.allclose(loss, ref, rtol=1e-2, atol=1e-2), (loss, ref)

    print("KERNEL_OK")
</pallas_src>

<mosaic_0001>
module attributes {stable_mosaic.version = 11 : i64} {
  func.func @adatriplet_kernel(%arg0: i32, %arg1: memref<8x32xf32, #tpu.memory_space<vmem>>, %arg2: memref<8x32xf32, #tpu.memory_space<vmem>>, %arg3: memref<8x1xi32, #tpu.memory_space<vmem>>, %arg4: memref<1x8xi32, #tpu.memory_space<vmem>>, %arg5: memref<3xf32, #tpu.memory_space<smem>>, %arg6: memref<1x1xf32, #tpu.memory_space<smem>>, %arg7: memref<4xf32, #tpu.memory_space<smem>>) attributes {dimension_semantics = [#tpu.dimension_semantics<arbitrary>], iteration_bounds = array<i64: 1>, scalar_prefetch = 0 : i64, scratch_operands = 1 : i64, tpu.core_type = #tpu.core_type<tc>, window_params = [{transform_indices = @transform_0, window_bounds = array<i64: 8, 32>}, {pipeline_mode = #tpu.pipeline_mode<synchronous>, transform_indices = @transform_1, window_bounds = array<i64: 8, 32>}, {transform_indices = @transform_2, window_bounds = array<i64: 8, 1>}, {pipeline_mode = #tpu.pipeline_mode<synchronous>, transform_indices = @transform_3, window_bounds = array<i64: 1, 8>}, {transform_indices = @transform_4, window_bounds = array<i64: 3>}, {transform_indices = @transform_5, window_bounds = array<i64: 1, 1>}]} {
    %c0 = arith.constant 0 : index
    %0 = memref.load %arg5[%c0] : memref<3xf32, #tpu.memory_space<smem>>
    %c1 = arith.constant 1 : index
    %1 = memref.load %arg5[%c1] : memref<3xf32, #tpu.memory_space<smem>>
    %c2 = arith.constant 2 : index
    %2 = memref.load %arg5[%c2] : memref<3xf32, #tpu.memory_space<smem>>
    %c0_i32 = arith.constant 0 : i32
    %3 = arith.cmpi eq, %arg0, %c0_i32 : i32
    %4 = arith.extui %3 : i1 to i32
    %c0_i32_0 = arith.constant 0 : i32
    %5 = arith.cmpi ne, %4, %c0_i32_0 : i32
    scf.if %5 {
      %cst_135 = arith.constant 0.000000e+00 : f32
      %c0_136 = arith.constant 0 : index
      %315 = memref.load %arg7[%c0_136] : memref<4xf32, #tpu.memory_space<smem>>
      memref.store %cst_135, %arg7[%c0_136] : memref<4xf32, #tpu.memory_space<smem>>
      %cst_137 = arith.constant 0.000000e+00 : f32
      %c1_138 = arith.constant 1 : index
      %316 = memref.load %arg7[%c1_138] : memref<4xf32, #tpu.memory_space<smem>>
      memref.store %cst_137, %arg7[%c1_138] : memref<4xf32, #tpu.memory_space<smem>>
      %cst_139 = arith.constant 0.000000e+00 : f32
      %c2_140 = arith.constant 2 : index
      %317 = memref.load %arg7[%c2_140] : memref<4xf32, #tpu.memory_space<smem>>
      memref.store %cst_139, %arg7[%c2_140] : memref<4xf32, #tpu.memory_space<smem>>
      %cst_141 = arith.constant 0.000000e+00 : f32
      %c3_142 = arith.constant 3 : index
      %318 = memref.load %arg7[%c3_142] : memref<4xf32, #tpu.memory_space<smem>>
      memref.store %cst_141, %arg7[%c3_142] : memref<4xf32, #tpu.memory_space<smem>>
    } else {
    }
    %c0_1 = arith.constant 0 : index
    %c0_2 = arith.constant 0 : index
    %6 = vector.load %arg1[%c0_1, %c0_2] : memref<8x32xf32, #tpu.memory_space<vmem>>, vector<8x32xf32>
    %7 = arith.mulf %6, %6 : vector<8x32xf32>
    %cst = arith.constant dense<0.000000e+00> : vector<8xf32>
    %8 = vector.multi_reduction <add>, %7, %cst [1] : vector<8x32xf32> to vector<8xf32>
    %9 = vector.shape_cast %8 : vector<8xf32> to vector<8x1xf32>
    %cst_3 = arith.constant 1.000000e-24 : f32
    %10 = vector.broadcast %cst_3 : f32 to vector<8x1xf32>
    %11 = arith.maximumf %9, %10 : vector<8x1xf32>
    %12 = math.rsqrt %11 : vector<8x1xf32>
    %13 = vector.broadcast %12 : vector<8x1xf32> to vector<8x32xf32>
    %14 = arith.mulf %6, %13 : vector<8x32xf32>
    %c0_4 = arith.constant 0 : index
    %c0_5 = arith.constant 0 : index
    %15 = vector.load %arg2[%c0_4, %c0_5] : memref<8x32xf32, #tpu.memory_space<vmem>>, vector<8x32xf32>
    %16 = arith.mulf %15, %15 : vector<8x32xf32>
    %cst_6 = arith.constant dense<0.000000e+00> : vector<8xf32>
    %17 = vector.multi_reduction <add>, %16, %cst_6 [1] : vector<8x32xf32> to vector<8xf32>
    %18 = vector.shape_cast %17 : vector<8xf32> to vector<8x1xf32>
    %cst_7 = arith.constant 1.000000e-24 : f32
    %19 = vector.broadcast %cst_7 : f32 to vector<8x1xf32>
    %20 = arith.maximumf %18, %19 : vector<8x1xf32>
    %21 = math.rsqrt %20 : vector<8x1xf32>
    %22 = vector.broadcast %21 : vector<8x1xf32> to vector<8x32xf32>
    %23 = arith.mulf %15, %22 : vector<8x32xf32>
    %24 = arith.truncf %14 : vector<8x32xf32> to vector<8x32xbf16>
    %25 = arith.truncf %23 : vector<8x32xf32> to vector<8x32xbf16>
    %cst_8 = arith.constant dense<0.000000e+00> : vector<8x8xf32>
    %26 = tpu.matmul %24, %25, %cst_8 {dimension_numbers = #tpu.dot_dimension_numbers<[1], [1], [0], [0], [0, 0, 1, 0], [], []>} : vector<8x32xbf16>, vector<8x32xbf16>, vector<8x8xf32> -> vector<8x8xf32>
    %cst_9 = arith.constant 0.000000e+00 : f32
    %27 = vector.broadcast %cst_9 : f32 to vector<8x8xf32>
    %28 = arith.subf %27, %26 : vector<8x8xf32>
    %cst_10 = arith.constant dense<0.000000e+00> : vector<8x8xf32>
    %29 = tpu.matmul %25, %24, %cst_10 {dimension_numbers = #tpu.dot_dimension_numbers<[1], [1], [0], [0], [0, 0, 1, 0], [], []>} : vector<8x32xbf16>, vector<8x32xbf16>, vector<8x8xf32> -> vector<8x8xf32>
    %cst_11 = arith.constant 0.000000e+00 : f32
    %30 = vector.broadcast %cst_11 : f32 to vector<8x8xf32>
    %31 = arith.subf %30, %29 : vector<8x8xf32>
    %c0_12 = arith.constant 0 : index
    %c0_13 = arith.constant 0 : index
    %32 = vector.load %arg3[%c0_12, %c0_13] : memref<8x1xi32, #tpu.memory_space<vmem>>, vector<8x1xi32>
    %c0_14 = arith.constant 0 : index
    %c0_15 = arith.constant 0 : index
    %33 = vector.load %arg4[%c0_14, %c0_15] : memref<1x8xi32, #tpu.memory_space<vmem>>, vector<1x8xi32>
    %34 = vector.broadcast %32 : vector<8x1xi32> to vector<8x8xi32>
    %35 = vector.broadcast %33 : vector<1x8xi32> to vector<8x8xi32>
    %36 = arith.cmpi eq, %34, %35 : vector<8x8xi32>
    %c8_i32 = arith.constant 8 : i32
    %37 = arith.muli %arg0, %c8_i32 : i32
    %38 = tpu.iota {dimensions = array<i32: 0>} : vector<8x8xi32>
    %39 = vector.broadcast %37 : i32 to vector<8x8xi32>
    %40 = arith.addi %39, %38 : vector<8x8xi32>
    %41 = tpu.iota {dimensions = array<i32: 1>} : vector<8x8xi32>
    %42 = arith.cmpi ne, %40, %41 : vector<8x8xi32>
    %43 = arith.andi %36, %42 : vector<8x8xi1>
    %cst_16 = arith.constant 1.000000e+00 : f32
    %cst_17 = arith.constant 0.000000e+00 : f32
    %44 = vector.broadcast %cst_16 : f32 to vector<8x8xf32>
    %45 = vector.broadcast %cst_17 : f32 to vector<8x8xf32>
    %46 = arith.select %43, %44, %45 : vector<8x8xi1>, vector<8x8xf32>
    %cst_18 = arith.constant 0.000000e+00 : f32
    %cst_19 = arith.constant 1.000000e+00 : f32
    %47 = vector.broadcast %cst_18 : f32 to vector<8x8xf32>
    %48 = vector.broadcast %cst_19 : f32 to vector<8x8xf32>
    %49 = arith.select %36, %47, %48 : vector<8x8xi1>, vector<8x8xf32>
    %cst_20 = arith.constant dense<0.000000e+00> : vector<8xf32>
    %50 = vector.multi_reduction <add>, %46, %cst_20 [1] : vector<8x8xf32> to vector<8xf32>
    %51 = vector.shape_cast %50 : vector<8xf32> to vector<8x1xf32>
    %cst_21 = arith.constant dense<0.000000e+00> : vector<8xf32>
    %52 = vector.multi_reduction <add>, %49, %cst_21 [1] : vector<8x8xf32> to vector<8xf32>
    %53 = vector.shape_cast %52 : vector<8xf32> to vector<8x1xf32>
    %54 = arith.mulf %51, %53 : vector<8x1xf32>
    %55 = vector.shape_cast %54 : vector<8x1xf32> to vector<1x8x1xf32>
    %cst_22 = arith.constant dense<0.000000e+00> : vector<1xf32>
    %56 = vector.multi_reduction <add>, %55, %cst_22 [1, 2] : vector<1x8x1xf32> to vector<1xf32>
    %57 = vector.shape_cast %56 : vector<1xf32> to vector<1x1x1xf32>
    %58 = vector.extract %57[0, 0, 0] : f32 from vector<1x1x1xf32>
    %cst_23 = arith.constant 0.000000e+00 : f32
    %59 = vector.broadcast %cst_23 : f32 to vector<8x8xf32>
    %60 = arith.subf %59, %28 : vector<8x8xf32>
    %61 = vector.broadcast %1 : f32 to vector<8x8xf32>
    %62 = arith.subf %60, %61 : vector<8x8xf32>
    %cst_24 = arith.constant 0.000000e+00 : f32
    %63 = vector.broadcast %cst_24 : f32 to vector<8x8xf32>
    %64 = arith.maximumf %62, %63 : vector<8x8xf32>
    %65 = arith.mulf %64, %49 : vector<8x8xf32>
    %66 = vector.shape_cast %65 : vector<8x8xf32> to vector<1x8x8xf32>
    %cst_25 = arith.constant dense<0.000000e+00> : vector<1xf32>
    %67 = vector.multi_reduction <add>, %66, %cst_25 [1, 2] : vector<1x8x8xf32> to vector<1xf32>
    %68 = vector.shape_cast %67 : vector<1xf32> to vector<1x1x1xf32>
    %69 = vector.extract %68[0, 0, 0] : f32 from vector<1x1x1xf32>
    %70 = vector.shape_cast %49 : vector<8x8xf32> to vector<1x8x8xf32>
    %cst_26 = arith.constant dense<0.000000e+00> : vector<1xf32>
    %71 = vector.multi_reduction <add>, %70, %cst_26 [1, 2] : vector<1x8x8xf32> to vector<1xf32>
    %72 = vector.shape_cast %71 : vector<1xf32> to vector<1x1x1xf32>
    %73 = vector.extract %72[0, 0, 0] : f32 from vector<1x1x1xf32>
    %74 = tpu.iota {dimensions = array<i32: 1>} : vector<1x8xi32>
    %75 = tpu.iota {dimensions = array<i32: 0>} : vector<8x1xi32>
    %cst_27 = arith.constant 0.000000e+00 : f32
    %c0_i32_28 = arith.constant 0 : i32
    %76 = vector.broadcast %c0_i32_28 : i32 to vector<1x8xi32>
    %77 = arith.cmpi eq, %74, %76 : vector<1x8xi32>
    %cst_29 = arith.constant 1.000000e+00 : f32
    %cst_30 = arith.constant 0.000000e+00 : f32
    %78 = vector.broadcast %cst_29 : f32 to vector<1x8xf32>
    %79 = vector.broadcast %cst_30 : f32 to vector<1x8xf32>
    %80 = arith.select %77, %78, %79 : vector<1x8xi1>, vector<1x8xf32>
    %81 = vector.broadcast %c0_i32_28 : i32 to vector<8x1xi32>
    %82 = arith.cmpi eq, %75, %81 : vector<8x1xi32>
    %cst_31 = arith.constant 1.000000e+00 : f32
    %cst_32 = arith.constant 0.000000e+00 : f32
    %83 = vector.broadcast %cst_31 : f32 to vector<8x1xf32>
    %84 = vector.broadcast %cst_32 : f32 to vector<8x1xf32>
    %85 = arith.select %82, %83, %84 : vector<8x1xi1>, vector<8x1xf32>
    %cst_33 = arith.constant dense<0.000000e+00> : vector<1x8xf32>
    %86 = tpu.matmul %80, %28, %cst_33 {dimension_numbers = #tpu.dot_dimension_numbers<[1], [0], [0], [1], [0, 0, 1, 1], [], []>} : vector<1x8xf32>, vector<8x8xf32>, vector<1x8xf32> -> vector<1x8xf32>
    %cst_34 = arith.constant dense<0.000000e+00> : vector<8x1xf32>
    %87 = tpu.matmul %31, %85, %cst_34 {dimension_numbers = #tpu.dot_dimension_numbers<[1], [0], [0], [1], [0, 0, 1, 1], [], []>} : vector<8x8xf32>, vector<8x1xf32>, vector<8x1xf32> -> vector<8x1xf32>
    %cst_35 = arith.constant dense<0.000000e+00> : vector<1x8xf32>
    %88 = tpu.matmul %80, %46, %cst_35 {dimension_numbers = #tpu.dot_dimension_numbers<[1], [0], [0], [1], [0, 0, 1, 1], [], []>} : vector<1x8xf32>, vector<8x8xf32>, vector<1x8xf32> -> vector<1x8xf32>
    %cst_36 = arith.constant dense<0.000000e+00> : vector<1x8xf32>
    %89 = tpu.matmul %80, %49, %cst_36 {dimension_numbers = #tpu.dot_dimension_numbers<[1], [0], [0], [1], [0, 0, 1, 1], [], []>} : vector<1x8xf32>, vector<8x8xf32>, vector<1x8xf32> -> vector<1x8xf32>
    %90 = vector.broadcast %87 : vector<8x1xf32> to vector<8x8xf32>
    %91 = vector.broadcast %86 : vector<1x8xf32> to vector<8x8xf32>
    %92 = arith.subf %90, %91 : vector<8x8xf32>
    %93 = vector.broadcast %0 : f32 to vector<8x8xf32>
    %94 = arith.addf %92, %93 : vector<8x8xf32>
    %cst_37 = arith.constant 0.000000e+00 : f32
    %95 = vector.broadcast %cst_37 : f32 to vector<8x8xf32>
    %96 = arith.maximumf %94, %95 : vector<8x8xf32>
    %cst_38 = arith.constant dense<0.000000e+00> : vector<1x8xf32>
    %97 = tpu.matmul %88, %96, %cst_38 {dimension_numbers = #tpu.dot_dimension_numbers<[1], [0], [0], [1], [0, 0, 1, 1], [], []>} : vector<1x8xf32>, vector<8x8xf32>, vector<1x8xf32> -> vector<1x8xf32>
    %cst_39 = arith.constant dense<0.000000e+00> : vector<1x1xf32>
    %98 = tpu.matmul %97, %89, %cst_39 {dimension_numbers = #tpu.dot_dimension_numbers<[1], [1], [0], [0], [0, 0, 1, 0], [], []>} : vector<1x8xf32>, vector<1x8xf32>, vector<1x1xf32> -> vector<1x1xf32>
    %99 = vector.shape_cast %98 : vector<1x1xf32> to vector<1x1x1xf32>
    %cst_40 = arith.constant dense<0.000000e+00> : vector<1xf32>
    %100 = vector.multi_reduction <add>, %99, %cst_40 [1, 2] : vector<1x1x1xf32> to vector<1xf32>
    %101 = vector.shape_cast %100 : vector<1xf32> to vector<1x1x1xf32>
    %102 = vector.extract %101[0, 0, 0] : f32 from vector<1x1x1xf32>
    %103 = arith.addf %cst_27, %102 : f32
    %c1_i32 = arith.constant 1 : i32
    %104 = vector.broadcast %c1_i32 : i32 to vector<1x8xi32>
    %105 = arith.cmpi eq, %74, %104 : vector<1x8xi32>
    %cst_41 = arith.constant 1.000000e+00 : f32
    %cst_42 = arith.constant 0.000000e+00 : f32
    %106 = vector.broadcast %cst_41 : f32 to vector<1x8xf32>
    %107 = vector.broadcast %cst_42 : f32 to vector<1x8xf32>
    %108 = arith.select %105, %106, %107 : vector<1x8xi1>, vector<1x8xf32>
    %109 = vector.broadcast %c1_i32 : i32 to vector<8x1xi32>
    %110 = arith.cmpi eq, %75, %109 : vector<8x1xi32>
    %cst_43 = arith.constant 1.000000e+00 : f32
    %cst_44 = arith.constant 0.000000e+00 : f32
    %111 = vector.broadcast %cst_43 : f32 to vector<8x1xf32>
    %112 = vector.broadcast %cst_44 : f32 to vector<8x1xf32>
    %113 = arith.select %110, %111, %112 : vector<8x1xi1>, vector<8x1xf32>
    %cst_45 = arith.constant dense<0.000000e+00> : vector<1x8xf32>
    %114 = tpu.matmul %108, %28, %cst_45 {dimension_numbers = #tpu.dot_dimension_numbers<[1], [0], [0], [1], [0, 0, 1, 1], [], []>} : vector<1x8xf32>, vector<8x8xf32>, vector<1x8xf32> -> vector<1x8xf32>
    %cst_46 = arith.constant dense<0.000000e+00> : vector<8x1xf32>
    %115 = tpu.matmul %31, %113, %cst_46 {dimension_numbers = #tpu.dot_dimension_numbers<[1], [0], [0], [1], [0, 0, 1, 1], [], []>} : vector<8x8xf32>, vector<8x1xf32>, vector<8x1xf32> -> vector<8x1xf32>
    %cst_47 = arith.constant dense<0.000000e+00> : vector<1x8xf32>
    %116 = tpu.matmul %108, %46, %cst_47 {dimension_numbers = #tpu.dot_dimension_numbers<[1], [0], [0], [1], [0, 0, 1, 1], [], []>} : vector<1x8xf32>, vector<8x8xf32>, vector<1x8xf32> -> vector<1x8xf32>
    %cst_48 = arith.constant dense<0.000000e+00> : vector<1x8xf32>
    %117 = tpu.matmul %108, %49, %cst_48 {dimension_numbers = #tpu.dot_dimension_numbers<[1], [0], [0], [1], [0, 0, 1, 1], [], []>} : vector<1x8xf32>, vector<8x8xf32>, vector<1x8xf32> -> vector<1x8xf32>
    %118 = vector.broadcast %115 : vector<8x1xf32> to vector<8x8xf32>
    %119 = vector.broadcast %114 : vector<1x8xf32> to vector<8x8xf32>
    %120 = arith.subf %118, %119 : vector<8x8xf32>
    %121 = vector.broadcast %0 : f32 to vector<8x8xf32>
    %122 = arith.addf %120, %121 : vector<8x8xf32>
    %cst_49 = arith.constant 0.000000e+00 : f32
    %123 = vector.broadcast %cst_49 : f32 to vector<8x8xf32>
    %124 = arith.maximumf %122, %123 : vector<8x8xf32>
    %cst_50 = arith.constant dense<0.000000e+00> : vector<1x8xf32>
    %125 = tpu.matmul %116, %124, %cst_50 {dimension_numbers = #tpu.dot_dimension_numbers<[1], [0], [0], [1], [0, 0, 1, 1], [], []>} : vector<1x8xf32>, vector<8x8xf32>, vector<1x8xf32> -> vector<1x8xf32>
    %cst_51 = arith.constant dense<0.000000e+00> : vector<1x1xf32>
    %126 = tpu.matmul %125, %117, %cst_51 {dimension_numbers = #tpu.dot_dimension_numbers<[1], [1], [0], [0], [0, 0, 1, 0], [], []>} : vector<1x8xf32>, vector<1x8xf32>, vector<1x1xf32> -> vector<1x1xf32>
    %127 = vector.shape_cast %126 : vector<1x1xf32> to vector<1x1x1xf32>
    %cst_52 = arith.constant dense<0.000000e+00> : vector<1xf32>
    %128 = vector.multi_reduction <add>, %127, %cst_52 [1, 2] : vector<1x1x1xf32> to vector<1xf32>
    %129 = vector.shape_cast %128 : vector<1xf32> to vector<1x1x1xf32>
    %130 = vector.extract %129[0, 0, 0] : f32 from vector<1x1x1xf32>
    %131 = arith.addf %103, %130 : f32
    %c2_i32 = arith.constant 2 : i32
    %132 = vector.broadcast %c2_i32 : i32 to vector<1x8xi32>
    %133 = arith.cmpi eq, %74, %132 : vector<1x8xi32>
    %cst_53 = arith.constant 1.000000e+00 : f32
    %cst_54 = arith.constant 0.000000e+00 : f32
    %134 = vector.broadcast %cst_53 : f32 to vector<1x8xf32>
    %135 = vector.broadcast %cst_54 : f32 to vector<1x8xf32>
    %136 = arith.select %133, %134, %135 : vector<1x8xi1>, vector<1x8xf32>
    %137 = vector.broadcast %c2_i32 : i32 to vector<8x1xi32>
    %138 = arith.cmpi eq, %75, %137 : vector<8x1xi32>
    %cst_55 = arith.constant 1.000000e+00 : f32
    %cst_56 = arith.constant 0.000000e+00 : f32
    %139 = vector.broadcast %cst_55 : f32 to vector<8x1xf32>
    %140 = vector.broadcast %cst_56 : f32 to vector<8x1xf32>
    %141 = arith.select %138, %139, %140 : vector<8x1xi1>, vector<8x1xf32>
    %cst_57 = arith.constant dense<0.000000e+00> : vector<1x8xf32>
    %142 = tpu.matmul %136, %28, %cst_57 {dimension_numbers = #tpu.dot_dimension_numbers<[1], [0], [0], [1], [0, 0, 1, 1], [], []>} : vector<1x8xf32>, vector<8x8xf32>, vector<1x8xf32> -> vector<1x8xf32>
    %cst_58 = arith.constant dense<0.000000e+00> : vector<8x1xf32>
    %143 = tpu.matmul %31, %141, %cst_58 {dimension_numbers = #tpu.dot_dimension_numbers<[1], [0], [0], [1], [0, 0, 1, 1], [], []>} : vector<8x8xf32>, vector<8x1xf32>, vector<8x1xf32> -> vector<8x1xf32>
    %cst_59 = arith.constant dense<0.000000e+00> : vector<1x8xf32>
    %144 = tpu.matmul %136, %46, %cst_59 {dimension_numbers = #tpu.dot_dimension_numbers<[1], [0], [0], [1], [0, 0, 1, 1], [], []>} : vector<1x8xf32>, vector<8x8xf32>, vector<1x8xf32> -> vector<1x8xf32>
    %cst_60 = arith.constant dense<0.000000e+00> : vector<1x8xf32>
    %145 = tpu.matmul %136, %49, %cst_60 {dimension_numbers = #tpu.dot_dimension_numbers<[1], [0], [0], [1], [0, 0, 1, 1], [], []>} : vector<1x8xf32>, vector<8x8xf32>, vector<1x8xf32> -> vector<1x8xf32>
    %146 = vector.broadcast %143 : vector<8x1xf32> to vector<8x8xf32>
    %147 = vector.broadcast %142 : vector<1x8xf32> to vector<8x8xf32>
    %148 = arith.subf %146, %147 : vector<8x8xf32>
    %149 = vector.broadcast %0 : f32 to vector<8x8xf32>
    %150 = arith.addf %148, %149 : vector<8x8xf32>
    %cst_61 = arith.constant 0.000000e+00 : f32
    %151 = vector.broadcast %cst_61 : f32 to vector<8x8xf32>
    %152 = arith.maximumf %150, %151 : vector<8x8xf32>
    %cst_62 = arith.constant dense<0.000000e+00> : vector<1x8xf32>
    %153 = tpu.matmul %144, %152, %cst_62 {dimension_numbers = #tpu.dot_dimension_numbers<[1], [0], [0], [1], [0, 0, 1, 1], [], []>} : vector<1x8xf32>, vector<8x8xf32>, vector<1x8xf32> -> vector<1x8xf32>
    %cst_63 = arith.constant dense<0.000000e+00> : vector<1x1xf32>
    %154 = tpu.matmul %153, %145, %cst_63 {dimension_numbers = #tpu.dot_dimension_numbers<[1], [1], [0], [0], [0, 0, 1, 0], [], []>} : vector<1x8xf32>, vector<1x8xf32>, vector<1x1xf32> -> vector<1x1xf32>
    %155 = vector.shape_cast %154 : vector<1x1xf32> to vector<1x1x1xf32>
    %cst_64 = arith.constant dense<0.000000e+00> : vector<1xf32>
    %156 = vector.multi_reduction <add>, %155, %cst_64 [1, 2] : vector<1x1x1xf32> to vector<1xf32>
    %157 = vector.shape_cast %156 : vector<1xf32> to vector<1x1x1xf32>
    %158 = vector.extract %157[0, 0, 0] : f32 from vector<1x1x1xf32>
    %159 = arith.addf %131, %158 : f32
    %c3_i32 = arith.constant 3 : i32
    %160 = vector.broadcast %c3_i32 : i32 to vector<1x8xi32>
    %161 = arith.cmpi eq, %74, %160 : vector<1x8xi32>
    %cst_65 = arith.constant 1.000000e+00 : f32
    %cst_66 = arith.constant 0.000000e+00 : f32
    %162 = vector.broadcast %cst_65 : f32 to vector<1x8xf32>
    %163 = vector.broadcast %cst_66 : f32 to vector<1x8xf32>
    %164 = arith.select %161, %162, %163 : vector<1x8xi1>, vector<1x8xf32>
    %165 = vector.broadcast %c3_i32 : i32 to vector<8x1xi32>
    %166 = arith.cmpi eq, %75, %165 : vector<8x1xi32>
    %cst_67 = arith.constant 1.000000e+00 : f32
    %cst_68 = arith.constant 0.000000e+00 : f32
    %167 = vector.broadcast %cst_67 : f32 to vector<8x1xf32>
    %168 = vector.broadcast %cst_68 : f32 to vector<8x1xf32>
    %169 = arith.select %166, %167, %168 : vector<8x1xi1>, vector<8x1xf32>
    %cst_69 = arith.constant dense<0.000000e+00> : vector<1x8xf32>
    %170 = tpu.matmul %164, %28, %cst_69 {dimension_numbers = #tpu.dot_dimension_numbers<[1], [0], [0], [1], [0, 0, 1, 1], [], []>} : vector<1x8xf32>, vector<8x8xf32>, vector<1x8xf32> -> vector<1x8xf32>
    %cst_70 = arith.constant dense<0.000000e+00> : vector<8x1xf32>
    %171 = tpu.matmul %31, %169, %cst_70 {dimension_numbers = #tpu.dot_dimension_numbers<[1], [0], [0], [1], [0, 0, 1, 1], [], []>} : vector<8x8xf32>, vector<8x1xf32>, vector<8x1xf32> -> vector<8x1xf32>
    %cst_71 = arith.constant dense<0.000000e+00> : vector<1x8xf32>
    %172 = tpu.matmul %164, %46, %cst_71 {dimension_numbers = #tpu.dot_dimension_numbers<[1], [0], [0], [1], [0, 0, 1, 1], [], []>} : vector<1x8xf32>, vector<8x8xf32>, vector<1x8xf32> -> vector<1x8xf32>
    %cst_72 = arith.constant dense<0.000000e+00> : vector<1x8xf32>
    %173 = tpu.matmul %164, %49, %cst_72 {dimension_numbers = #tpu.dot_dimension_numbers<[1], [0], [0], [1], [0, 0, 1, 1], [], []>} : vector<1x8xf32>, vector<8x8xf32>, vector<1x8xf32> -> vector<1x8xf32>
    %174 = vector.broadcast %171 : vector<8x1xf32> to vector<8x8xf32>
    %175 = vector.broadcast %170 : vector<1x8xf32> to vector<8x8xf32>
    %176 = arith.subf %174, %175 : vector<8x8xf32>
    %177 = vector.broadcast %0 : f32 to vector<8x8xf32>
    %178 = arith.addf %176, %177 : vector<8x8xf32>
    %cst_73 = arith.constant 0.000000e+00 : f32
    %179 = vector.broadcast %cst_73 : f32 to vector<8x8xf32>
    %180 = arith.maximumf %178, %179 : vector<8x8xf32>
    %cst_74 = arith.constant dense<0.000000e+00> : vector<1x8xf32>
    %181 = tpu.matmul %172, %180, %cst_74 {dimension_numbers = #tpu.dot_dimension_numbers<[1], [0], [0], [1], [0, 0, 1, 1], [], []>} : vector<1x8xf32>, vector<8x8xf32>, vector<1x8xf32> -> vector<1x8xf32>
    %cst_75 = arith.constant dense<0.000000e+00> : vector<1x1xf32>
    %182 = tpu.matmul %181, %173, %cst_75 {dimension_numbers = #tpu.dot_dimension_numbers<[1], [1], [0], [0], [0, 0, 1, 0], [], []>} : vector<1x8xf32>, vector<1x8xf32>, vector<1x1xf32> -> vector<1x1xf32>
    %183 = vector.shape_cast %182 : vector<1x1xf32> to vector<1x1x1xf32>
    %cst_76 = arith.constant dense<0.000000e+00> : vector<1xf32>
    %184 = vector.multi_reduction <add>, %183, %cst_76 [1, 2] : vector<1x1x1xf32> to vector<1xf32>
    %185 = vector.shape_cast %184 : vector<1xf32> to vector<1x1x1xf32>
    %186 = vector.extract %185[0, 0, 0] : f32 from vector<1x1x1xf32>
    %187 = arith.addf %159, %186 : f32
    %c4_i32 = arith.constant 4 : i32
    %188 = vector.broadcast %c4_i32 : i32 to vector<1x8xi32>
    %189 = arith.cmpi eq, %74, %188 : vector<1x8xi32>
    %cst_77 = arith.constant 1.000000e+00 : f32
    %cst_78 = arith.constant 0.000000e+00 : f32
    %190 = vector.broadcast %cst_77 : f32 to vector<1x8xf32>
    %191 = vector.broadcast %cst_78 : f32 to vector<1x8xf32>
    %192 = arith.select %189, %190, %191 : vector<1x8xi1>, vector<1x8xf32>
    %193 = vector.broadcast %c4_i32 : i32 to vector<8x1xi32>
    %194 = arith.cmpi eq, %75, %193 : vector<8x1xi32>
    %cst_79 = arith.constant 1.000000e+00 : f32
    %cst_80 = arith.constant 0.000000e+00 : f32
    %195 = vector.broadcast %cst_79 : f32 to vector<8x1xf32>
    %196 = vector.broadcast %cst_80 : f32 to vector<8x1xf32>
    %197 = arith.select %194, %195, %196 : vector<8x1xi1>, vector<8x1xf32>
    %cst_81 = arith.constant dense<0.000000e+00> : vector<1x8xf32>
    %198 = tpu.matmul %192, %28, %cst_81 {dimension_numbers = #tpu.dot_dimension_numbers<[1], [0], [0], [1], [0, 0, 1, 1], [], []>} : vector<1x8xf32>, vector<8x8xf32>, vector<1x8xf32> -> vector<1x8xf32>
    %cst_82 = arith.constant dense<0.000000e+00> : vector<8x1xf32>
    %199 = tpu.matmul %31, %197, %cst_82 {dimension_numbers = #tpu.dot_dimension_numbers<[1], [0], [0], [1], [0, 0, 1, 1], [], []>} : vector<8x8xf32>, vector<8x1xf32>, vector<8x1xf32> -> vector<8x1xf32>
    %cst_83 = arith.constant dense<0.000000e+00> : vector<1x8xf32>
    %200 = tpu.matmul %192, %46, %cst_83 {dimension_numbers = #tpu.dot_dimension_numbers<[1], [0], [0], [1], [0, 0, 1, 1], [], []>} : vector<1x8xf32>, vector<8x8xf32>, vector<1x8xf32> -> vector<1x8xf32>
    %cst_84 = arith.constant dense<0.000000e+00> : vector<1x8xf32>
    %201 = tpu.matmul %192, %49, %cst_84 {dimension_numbers = #tpu.dot_dimension_numbers<[1], [0], [0], [1], [0, 0, 1, 1], [], []>} : vector<1x8xf32>, vector<8x8xf32>, vector<1x8xf32> -> vector<1x8xf32>
    %202 = vector.broadcast %199 : vector<8x1xf32> to vector<8x8xf32>
    %203 = vector.broadcast %198 : vector<1x8xf32> to vector<8x8xf32>
    %204 = arith.subf %202, %203 : vector<8x8xf32>
    %205 = vector.broadcast %0 : f32 to vector<8x8xf32>
    %206 = arith.addf %204, %205 : vector<8x8xf32>
    %cst_85 = arith.constant 0.000000e+00 : f32
    %207 = vector.broadcast %cst_85 : f32 to vector<8x8xf32>
    %208 = arith.maximumf %206, %207 : vector<8x8xf32>
    %cst_86 = arith.constant dense<0.000000e+00> : vector<1x8xf32>
    %209 = tpu.matmul %200, %208, %cst_86 {dimension_numbers = #tpu.dot_dimension_numbers<[1], [0], [0], [1], [0, 0, 1, 1], [], []>} : vector<1x8xf32>, vector<8x8xf32>, vector<1x8xf32> -> vector<1x8xf32>
    %cst_87 = arith.constant dense<0.000000e+00> : vector<1x1xf32>
    %210 = tpu.matmul %209, %201, %cst_87 {dimension_numbers = #tpu.dot_dimension_numbers<[1], [1], [0], [0], [0, 0, 1, 0], [], []>} : vector<1x8xf32>, vector<1x8xf32>, vector<1x1xf32> -> vector<1x1xf32>
    %211 = vector.shape_cast %210 : vector<1x1xf32> to vector<1x1x1xf32>
    %cst_88 = arith.constant dense<0.000000e+00> : vector<1xf32>
    %212 = vector.multi_reduction <add>, %211, %cst_88 [1, 2] : vector<1x1x1xf32> to vector<1xf32>
    %213 = vector.shape_cast %212 : vector<1xf32> to vector<1x1x1xf32>
    %214 = vector.extract %213[0, 0, 0] : f32 from vector<1x1x1xf32>
    %215 = arith.addf %187, %214 : f32
    %c5_i32 = arith.constant 5 : i32
    %216 = vector.broadcast %c5_i32 : i32 to vector<1x8xi32>
    %217 = arith.cmpi eq, %74, %216 : vector<1x8xi32>
    %cst_89 = arith.constant 1.000000e+00 : f32
    %cst_90 = arith.constant 0.000000e+00 : f32
    %218 = vector.broadcast %cst_89 : f32 to vector<1x8xf32>
    %219 = vector.broadcast %cst_90 : f32 to vector<1x8xf32>
    %220 = arith.select %217, %218, %219 : vector<1x8xi1>, vector<1x8xf32>
    %221 = vector.broadcast %c5_i32 : i32 to vector<8x1xi32>
    %222 = arith.cmpi eq, %75, %221 : vector<8x1xi32>
    %cst_91 = arith.constant 1.000000e+00 : f32
    %cst_92 = arith.constant 0.000000e+00 : f32
    %223 = vector.broadcast %cst_91 : f32 to vector<8x1xf32>
    %224 = vector.broadcast %cst_92 : f32 to vector<8x1xf32>
    %225 = arith.select %222, %223, %224 : vector<8x1xi1>, vector<8x1xf32>
    %cst_93 = arith.constant dense<0.000000e+00> : vector<1x8xf32>
    %226 = tpu.matmul %220, %28, %cst_93 {dimension_numbers = #tpu.dot_dimension_numbers<[1], [0], [0], [1], [0, 0, 1, 1], [], []>} : vector<1x8xf32>, vector<8x8xf32>, vector<1x8xf32> -> vector<1x8xf32>
    %cst_94 = arith.constant dense<0.000000e+00> : vector<8x1xf32>
    %227 = tpu.matmul %31, %225, %cst_94 {dimension_numbers = #tpu.dot_dimension_numbers<[1], [0], [0], [1], [0, 0, 1, 1], [], []>} : vector<8x8xf32>, vector<8x1xf32>, vector<8x1xf32> -> vector<8x1xf32>
    %cst_95 = arith.constant dense<0.000000e+00> : vector<1x8xf32>
    %228 = tpu.matmul %220, %46, %cst_95 {dimension_numbers = #tpu.dot_dimension_numbers<[1], [0], [0], [1], [0, 0, 1, 1], [], []>} : vector<1x8xf32>, vector<8x8xf32>, vector<1x8xf32> -> vector<1x8xf32>
    %cst_96 = arith.constant dense<0.000000e+00> : vector<1x8xf32>
    %229 = tpu.matmul %220, %49, %cst_96 {dimension_numbers = #tpu.dot_dimension_numbers<[1], [0], [0], [1], [0, 0, 1, 1], [], []>} : vector<1x8xf32>, vector<8x8xf32>, vector<1x8xf32> -> vector<1x8xf32>
    %230 = vector.broadcast %227 : vector<8x1xf32> to vector<8x8xf32>
    %231 = vector.broadcast %226 : vector<1x8xf32> to vector<8x8xf32>
    %232 = arith.subf %230, %231 : vector<8x8xf32>
    %233 = vector.broadcast %0 : f32 to vector<8x8xf32>
    %234 = arith.addf %232, %233 : vector<8x8xf32>
    %cst_97 = arith.constant 0.000000e+00 : f32
    %235 = vector.broadcast %cst_97 : f32 to vector<8x8xf32>
    %236 = arith.maximumf %234, %235 : vector<8x8xf32>
    %cst_98 = arith.constant dense<0.000000e+00> : vector<1x8xf32>
    %237 = tpu.matmul %228, %236, %cst_98 {dimension_numbers = #tpu.dot_dimension_numbers<[1], [0], [0], [1], [0, 0, 1, 1], [], []>} : vector<1x8xf32>, vector<8x8xf32>, vector<1x8xf32> -> vector<1x8xf32>
    %cst_99 = arith.constant dense<0.000000e+00> : vector<1x1xf32>
    %238 = tpu.matmul %237, %229, %cst_99 {dimension_numbers = #tpu.dot_dimension_numbers<[1], [1], [0], [0], [0, 0, 1, 0], [], []>} : vector<1x8xf32>, vector<1x8xf32>, vector<1x1xf32> -> vector<1x1xf32>
    %239 = vector.shape_cast %238 : vector<1x1xf32> to vector<1x1x1xf32>
    %cst_100 = arith.constant dense<0.000000e+00> : vector<1xf32>
    %240 = vector.multi_reduction <add>, %239, %cst_100 [1, 2] : vector<1x1x1xf32> to vector<1xf32>
    %241 = vector.shape_cast %240 : vector<1xf32> to vector<1x1x1xf32>
    %242 = vector.extract %241[0, 0, 0] : f32 from vector<1x1x1xf32>
    %243 = arith.addf %215, %242 : f32
    %c6_i32 = arith.constant 6 : i32
    %244 = vector.broadcast %c6_i32 : i32 to vector<1x8xi32>
    %245 = arith.cmpi eq, %74, %244 : vector<1x8xi32>
    %cst_101 = arith.constant 1.000000e+00 : f32
    %cst_102 = arith.constant 0.000000e+00 : f32
    %246 = vector.broadcast %cst_101 : f32 to vector<1x8xf32>
    %247 = vector.broadcast %cst_102 : f32 to vector<1x8xf32>
    %248 = arith.select %245, %246, %247 : vector<1x8xi1>, vector<1x8xf32>
    %249 = vector.broadcast %c6_i32 : i32 to vector<8x1xi32>
    %250 = arith.cmpi eq, %75, %249 : vector<8x1xi32>
    %cst_103 = arith.constant 1.000000e+00 : f32
    %cst_104 = arith.constant 0.000000e+00 : f32
    %251 = vector.broadcast %cst_103 : f32 to vector<8x1xf32>
    %252 = vector.broadcast %cst_104 : f32 to vector<8x1xf32>
    %253 = arith.select %250, %251, %252 : vector<8x1xi1>, vector<8x1xf32>
    %cst_105 = arith.constant dense<0.000000e+00> : vector<1x8xf32>
    %254 = tpu.matmul %248, %28, %cst_105 {dimension_numbers = #tpu.dot_dimension_numbers<[1], [0], [0], [1], [0, 0, 1, 1], [], []>} : vector<1x8xf32>, vector<8x8xf32>, vector<1x8xf32> -> vector<1x8xf32>
    %cst_106 = arith.constant dense<0.000000e+00> : vector<8x1xf32>
    %255 = tpu.matmul %31, %253, %cst_106 {dimension_numbers = #tpu.dot_dimension_numbers<[1], [0], [0], [1], [0, 0, 1, 1], [], []>} : vector<8x8xf32>, vector<8x1xf32>, vector<8x1xf32> -> vector<8x1xf32>
    %cst_107 = arith.constant dense<0.000000e+00> : vector<1x8xf32>
    %256 = tpu.matmul %248, %46, %cst_107 {dimension_numbers = #tpu.dot_dimension_numbers<[1], [0], [0], [1], [0, 0, 1, 1], [], []>} : vector<1x8xf32>, vector<8x8xf32>, vector<1x8xf32> -> vector<1x8xf32>
    %cst_108 = arith.constant dense<0.000000e+00> : vector<1x8xf32>
    %257 = tpu.matmul %248, %49, %cst_108 {dimension_numbers = #tpu.dot_dimension_numbers<[1], [0], [0], [1], [0, 0, 1, 1], [], []>} : vector<1x8xf32>, vector<8x8xf32>, vector<1x8xf32> -> vector<1x8xf32>
    %258 = vector.broadcast %255 : vector<8x1xf32> to vector<8x8xf32>
    %259 = vector.broadcast %254 : vector<1x8xf32> to vector<8x8xf32>
    %260 = arith.subf %258, %259 : vector<8x8xf32>
    %261 = vector.broadcast %0 : f32 to vector<8x8xf32>
    %262 = arith.addf %260, %261 : vector<8x8xf32>
    %cst_109 = arith.constant 0.000000e+00 : f32
    %263 = vector.broadcast %cst_109 : f32 to vector<8x8xf32>
    %264 = arith.maximumf %262, %263 : vector<8x8xf32>
    %cst_110 = arith.constant dense<0.000000e+00> : vector<1x8xf32>
    %265 = tpu.matmul %256, %264, %cst_110 {dimension_numbers = #tpu.dot_dimension_numbers<[1], [0], [0], [1], [0, 0, 1, 1], [], []>} : vector<1x8xf32>, vector<8x8xf32>, vector<1x8xf32> -> vector<1x8xf32>
    %cst_111 = arith.constant dense<0.000000e+00> : vector<1x1xf32>
    %266 = tpu.matmul %265, %257, %cst_111 {dimension_numbers = #tpu.dot_dimension_numbers<[1], [1], [0], [0], [0, 0, 1, 0], [], []>} : vector<1x8xf32>, vector<1x8xf32>, vector<1x1xf32> -> vector<1x1xf32>
    %267 = vector.shape_cast %266 : vector<1x1xf32> to vector<1x1x1xf32>
    %cst_112 = arith.constant dense<0.000000e+00> : vector<1xf32>
    %268 = vector.multi_reduction <add>, %267, %cst_112 [1, 2] : vector<1x1x1xf32> to vector<1xf32>
    %269 = vector.shape_cast %268 : vector<1xf32> to vector<1x1x1xf32>
    %270 = vector.extract %269[0, 0, 0] : f32 from vector<1x1x1xf32>
    %271 = arith.addf %243, %270 : f32
    %c7_i32 = arith.constant 7 : i32
    %272 = vector.broadcast %c7_i32 : i32 to vector<1x8xi32>
    %273 = arith.cmpi eq, %74, %272 : vector<1x8xi32>
    %cst_113 = arith.constant 1.000000e+00 : f32
    %cst_114 = arith.constant 0.000000e+00 : f32
    %274 = vector.broadcast %cst_113 : f32 to vector<1x8xf32>
    %275 = vector.broadcast %cst_114 : f32 to vector<1x8xf32>
    %276 = arith.select %273, %274, %275 : vector<1x8xi1>, vector<1x8xf32>
    %277 = vector.broadcast %c7_i32 : i32 to vector<8x1xi32>
    %278 = arith.cmpi eq, %75, %277 : vector<8x1xi32>
    %cst_115 = arith.constant 1.000000e+00 : f32
    %cst_116 = arith.constant 0.000000e+00 : f32
    %279 = vector.broadcast %cst_115 : f32 to vector<8x1xf32>
    %280 = vector.broadcast %cst_116 : f32 to vector<8x1xf32>
    %281 = arith.select %278, %279, %280 : vector<8x1xi1>, vector<8x1xf32>
    %cst_117 = arith.constant dense<0.000000e+00> : vector<1x8xf32>
    %282 = tpu.matmul %276, %28, %cst_117 {dimension_numbers = #tpu.dot_dimension_numbers<[1], [0], [0], [1], [0, 0, 1, 1], [], []>} : vector<1x8xf32>, vector<8x8xf32>, vector<1x8xf32> -> vector<1x8xf32>
    %cst_118 = arith.constant dense<0.000000e+00> : vector<8x1xf32>
    %283 = tpu.matmul %31, %281, %cst_118 {dimension_numbers = #tpu.dot_dimension_numbers<[1], [0], [0], [1], [0, 0, 1, 1], [], []>} : vector<8x8xf32>, vector<8x1xf32>, vector<8x1xf32> -> vector<8x1xf32>
    %cst_119 = arith.constant dense<0.000000e+00> : vector<1x8xf32>
    %284 = tpu.matmul %276, %46, %cst_119 {dimension_numbers = #tpu.dot_dimension_numbers<[1], [0], [0], [1], [0, 0, 1, 1], [], []>} : vector<1x8xf32>, vector<8x8xf32>, vector<1x8xf32> -> vector<1x8xf32>
    %cst_120 = arith.constant dense<0.000000e+00> : vector<1x8xf32>
    %285 = tpu.matmul %276, %49, %cst_120 {dimension_numbers = #tpu.dot_dimension_numbers<[1], [0], [0], [1], [0, 0, 1, 1], [], []>} : vector<1x8xf32>, vector<8x8xf32>, vector<1x8xf32> -> vector<1x8xf32>
    %286 = vector.broadcast %283 : vector<8x1xf32> to vector<8x8xf32>
    %287 = vector.broadcast %282 : vector<1x8xf32> to vector<8x8xf32>
    %288 = arith.subf %286, %287 : vector<8x8xf32>
    %289 = vector.broadcast %0 : f32 to vector<8x8xf32>
    %290 = arith.addf %288, %289 : vector<8x8xf32>
    %cst_121 = arith.constant 0.000000e+00 : f32
    %291 = vector.broadcast %cst_121 : f32 to vector<8x8xf32>
    %292 = arith.maximumf %290, %291 : vector<8x8xf32>
    %cst_122 = arith.constant dense<0.000000e+00> : vector<1x8xf32>
    %293 = tpu.matmul %284, %292, %cst_122 {dimension_numbers = #tpu.dot_dimension_numbers<[1], [0], [0], [1], [0, 0, 1, 1], [], []>} : vector<1x8xf32>, vector<8x8xf32>, vector<1x8xf32> -> vector<1x8xf32>
    %cst_123 = arith.constant dense<0.000000e+00> : vector<1x1xf32>
    %294 = tpu.matmul %293, %285, %cst_123 {dimension_numbers = #tpu.dot_dimension_numbers<[1], [1], [0], [0], [0, 0, 1, 0], [], []>} : vector<1x8xf32>, vector<1x8xf32>, vector<1x1xf32> -> vector<1x1xf32>
    %295 = vector.shape_cast %294 : vector<1x1xf32> to vector<1x1x1xf32>
    %cst_124 = arith.constant dense<0.000000e+00> : vector<1xf32>
    %296 = vector.multi_reduction <add>, %295, %cst_124 [1, 2] : vector<1x1x1xf32> to vector<1xf32>
    %297 = vector.shape_cast %296 : vector<1xf32> to vector<1x1x1xf32>
    %298 = vector.extract %297[0, 0, 0] : f32 from vector<1x1x1xf32>
    %299 = arith.addf %271, %298 : f32
    %c8_i32_125 = arith.constant 8 : i32
    %c0_126 = arith.constant 0 : index
    %300 = memref.load %arg7[%c0_126] : memref<4xf32, #tpu.memory_space<smem>>
    %301 = arith.addf %300, %299 : f32
    %c0_127 = arith.constant 0 : index
    %302 = memref.load %arg7[%c0_127] : memref<4xf32, #tpu.memory_space<smem>>
    memref.store %301, %arg7[%c0_127] : memref<4xf32, #tpu.memory_space<smem>>
    %c1_128 = arith.constant 1 : index
    %303 = memref.load %arg7[%c1_128] : memref<4xf32, #tpu.memory_space<smem>>
    %304 = arith.addf %303, %58 : f32
    %c1_129 = arith.constant 1 : index
    %305 = memref.load %arg7[%c1_129] : memref<4xf32, #tpu.memory_space<smem>>
    memref.store %304, %arg7[%c1_129] : memref<4xf32, #tpu.memory_space<smem>>
    %c2_130 = arith.constant 2 : index
    %306 = memref.load %arg7[%c2_130] : memref<4xf32, #tpu.memory_space<smem>>
    %307 = arith.addf %306, %69 : f32
    %c2_131 = arith.constant 2 : index
    %308 = memref.load %arg7[%c2_131] : memref<4xf32, #tpu.memory_space<smem>>
    memref.store %307, %arg7[%c2_131] : memref<4xf32, #tpu.memory_space<smem>>
    %c3 = arith.constant 3 : index
    %309 = memref.load %arg7[%c3] : memref<4xf32, #tpu.memory_space<smem>>
    %310 = arith.addf %309, %73 : f32
    %c3_132 = arith.constant 3 : index
    %311 = memref.load %arg7[%c3_132] : memref<4xf32, #tpu.memory_space<smem>>
    memref.store %310, %arg7[%c3_132] : memref<4xf32, #tpu.memory_space<smem>>
    %c0_i32_133 = arith.constant 0 : i32
    %312 = arith.cmpi eq, %arg0, %c0_i32_133 : i32
    %313 = arith.extui %312 : i1 to i32
    %c0_i32_134 = arith.constant 0 : i32
    %314 = arith.cmpi ne, %313, %c0_i32_134 : i32
    scf.if %314 {
      %c0_135 = arith.constant 0 : index
      %315 = memref.load %arg7[%c0_135] : memref<4xf32, #tpu.memory_space<smem>>
      %c1_136 = arith.constant 1 : index
      %316 = memref.load %arg7[%c1_136] : memref<4xf32, #tpu.memory_space<smem>>
      %c2_137 = arith.constant 2 : index
      %317 = memref.load %arg7[%c2_137] : memref<4xf32, #tpu.memory_space<smem>>
      %c3_138 = arith.constant 3 : index
      %318 = memref.load %arg7[%c3_138] : memref<4xf32, #tpu.memory_space<smem>>
      %cst_139 = arith.constant 0.000000e+00 : f32
      %319 = arith.cmpf ogt, %316, %cst_139 : f32
      %cst_140 = arith.constant 1.000000e+00 : f32
      %320 = arith.maximumf %316, %cst_140 : f32
      %321 = arith.divf %315, %320 : f32
      %cst_141 = arith.constant 0.000000e+00 : f32
      %322 = arith.select %319, %321, %cst_141 : f32
      %cst_142 = arith.constant 0.000000e+00 : f32
      %323 = arith.cmpf ogt, %318, %cst_142 : f32
      %cst_143 = arith.constant 1.000000e+00 : f32
      %324 = arith.maximumf %318, %cst_143 : f32
      %325 = arith.divf %317, %324 : f32
      %cst_144 = arith.constant 0.000000e+00 : f32
      %326 = arith.select %323, %325, %cst_144 : f32
      %327 = arith.mulf %2, %326 : f32
      %328 = arith.addf %322, %327 : f32
      %c0_145 = arith.constant 0 : index
      %c0_146 = arith.constant 0 : index
      %329 = memref.load %arg6[%c0_145, %c0_146] : memref<1x1xf32, #tpu.memory_space<smem>>
      memref.store %328, %arg6[%c0_145, %c0_146] : memref<1x1xf32, #tpu.memory_space<smem>>
    } else {
    }
    return
  }
  func.func @transform_0(%arg0: i32) -> (i32, i32) {
    %c0_i32 = arith.constant 0 : i32
    %c0_i32_0 = arith.constant 0 : i32
    return %arg0, %c0_i32 : i32, i32
  }
  func.func @transform_1(%arg0: i32) -> (i32, i32) {
    %c0_i32 = arith.constant 0 : i32
    %c0_i32_0 = arith.constant 0 : i32
    %c0_i32_1 = arith.constant 0 : i32
    return %c0_i32, %c0_i32_0 : i32, i32
  }
  func.func @transform_2(%arg0: i32) -> (i32, i32) {
    %c0_i32 = arith.constant 0 : i32
    %c0_i32_0 = arith.constant 0 : i32
    return %arg0, %c0_i32 : i32, i32
  }
  func.func @transform_3(%arg0: i32) -> (i32, i32) {
    %c0_i32 = arith.constant 0 : i32
    %c0_i32_0 = arith.constant 0 : i32
    %c0_i32_1 = arith.constant 0 : i32
    return %c0_i32, %c0_i32_0 : i32, i32
  }
  func.func @transform_4(%arg0: i32) -> i32 {
    %c0_i32 = arith.constant 0 : i32
    %c0_i32_0 = arith.constant 0 : i32
    return %c0_i32 : i32
  }
  func.func @transform_5(%arg0: i32) -> (i32, i32) {
    %c0_i32 = arith.constant 0 : i32
    %c0_i32_0 = arith.constant 0 : i32
    %c0_i32_1 = arith.constant 0 : i32
    return %c0_i32, %c0_i32_0 : i32, i32
  }
}

</mosaic_0001>

<llo_original>
// kernel: tpu_custom_call.1
$region0: #{tpu_custom_call.1}
  #allocation0 [shape = 'u32[]', space=smem, size = 0x4, offset = 0x4, fixed_abs, tag = 'smem constant byte address 0x4 - core index']
  #allocation1 [shape = 'u32[144,128]{1,0:T(1,128)}', space=vmem, size = 0x12000, scoped, tag = 'internal scratch']
  #allocation2 [shape = 'f32[4]{0:T(128)}', space=smem, size = 0x200, scoped, tag = 'scratch operand']
  %s0 = inlined_call_operand.vmem [shape: f32[8,32], index: 0, kind: input, shape index: {}]
  %s1 = inlined_call_operand.hbm [shape: f32[8,32], index: 1, kind: input, shape index: {}]
  %s2 = inlined_call_operand.vmem [shape: s32[8,1], index: 2, kind: input, shape index: {}]
  %s3 = inlined_call_operand.vmem [shape: s32[1,8], index: 3, kind: input, shape index: {}]
  %s4 = inlined_call_operand.vmem [shape: f32[3], index: 4, kind: input, shape index: {}]
  %s5 = inlined_call_operand.hbm [shape: f32[1,1], index: 5, kind: output, shape index: {}]
  %s6 = sld [smem:[#allocation0]]
  $region46: #{tpu_custom_call.1} parent=0
    _
  %s8 = ssub.s32 1, %s6
  %s9 = scalar_select 0, %s8, %s6
  $region1: #{tpu_custom_call.1} parent=0
    #allocation3 [shape = 'u8[4096]{0}', space=vmem, size = 0x1000, scoped, tag = 'input window, operand 1, single buffered']
    #allocation4 [shape = 's32[1]{0}', space=sflag, size = 0x4, scoped, tag = 'scoped memory for tpu_custom_call.1']
    #allocation5 [shape = 's32[1]{0}', space=sflag, size = 0x4, scoped, tag = 'scoped memory for tpu_custom_call.1']
    #allocation6 [shape = 's32[1]{0}', space=sflag, size = 0x4, scoped, tag = 'scoped memory for tpu_custom_call.1']
    #allocation7 [shape = 'u8[512]{0}', space=smem, size = 0x200, scoped, tag = 'input window, operand 4, single buffered']
    #allocation8 [shape = 'u8[512]{0}', space=smem, size = 0x200, scoped, tag = 'output window, operand 0, single buffered']
    %10 = vsyncpa [#allocation4], 0
    %11 = vsyncpa [#allocation6], 0
    %12 = vsyncpa [#allocation5], 0
    // Predicated region
    $region2: #{tpu_custom_call.1} parent=1 // pred_check
      _
    $region3: #{tpu_custom_call.1} parent=1 // pred_check_branch
      %14 = sbr.rel (0) target = $region5
    $region4: #{tpu_custom_call.1} parent=1 // pred_region
      _
    $region5: #{tpu_custom_call.1} parent=1 // pred_fallthru
      _
    // Predicated region
    $region6: #{tpu_custom_call.1} parent=1 // pred_check
      _
    $region7: #{tpu_custom_call.1} parent=1 // pred_check_branch
      %16 = sbr.rel (0) target = $region9
    $region8: #{tpu_custom_call.1} parent=1 // pred_region
      %s18 = ssub.s32 128, 128
      %19 = vsyncadd [#allocation4], %s18
      %s21 = sshll.u32 [#allocation3], 4
      %s22 = int_to_ptr.vmem [resolvable:$true] %s21
      %24 = dma.hbm_to_vmem [thread:$0]  %s1, 128, %s22, [#allocation4]
    $region9: #{tpu_custom_call.1} parent=1 // pred_fallthru
      _
    // Predicated region
    $region10: #{tpu_custom_call.1} parent=1 // pred_check
      _
    $region11: #{tpu_custom_call.1} parent=1 // pred_check_branch
      %26 = sbr.rel (0) target = $region13
    $region12: #{tpu_custom_call.1} parent=1 // pred_region
      _
    $region13: #{tpu_custom_call.1} parent=1 // pred_fallthru
      _
    // Predicated region
    $region14: #{tpu_custom_call.1} parent=1 // pred_check
      _
    $region15: #{tpu_custom_call.1} parent=1 // pred_check_branch
      %28 = sbr.rel (0) target = $region17
    $region16: #{tpu_custom_call.1} parent=1 // pred_region
      _
    $region17: #{tpu_custom_call.1} parent=1 // pred_fallthru
      _
    // Predicated region
    $region18: #{tpu_custom_call.1} parent=1 // pred_check
      _
    $region19: #{tpu_custom_call.1} parent=1 // pred_check_branch
      %30 = sbr.rel (0) target = $region21
    $region20: #{tpu_custom_call.1} parent=1 // pred_region
      %s32 = ssub.s32 16, 16
      %33 = vsyncadd [#allocation6], %s32
      %s35 = sshll.u32 %s4, 4
      %s36 = int_to_ptr.vmem [resolvable:$true] %s35
      %38 = dma.vmem_to_smem %s36, 16, [#allocation7], [#allocation6]
    $region21: #{tpu_custom_call.1} parent=1 // pred_fallthru
      _
    // Predicated region
    $region22: #{tpu_custom_call.1} parent=1 // pred_check
      _
    $region23: #{tpu_custom_call.1} parent=1 // pred_check_branch
      %40 = sbr.rel (0) target = $region25
    $region24: #{tpu_custom_call.1} parent=1 // pred_region
      %41 = dma.done [#allocation4], 128
    $region25: #{tpu_custom_call.1} parent=1 // pred_fallthru
      _
    // Predicated region
    $region26: #{tpu_custom_call.1} parent=1 // pred_check
      _
    $region27: #{tpu_custom_call.1} parent=1 // pred_check_branch
      %43 = sbr.rel (0) target = $region29
    $region28: #{tpu_custom_call.1} parent=1 // pred_region
      %44 = dma.done [#allocation6], 16
    $region29: #{tpu_custom_call.1} parent=1 // pred_fallthru
      _
    %45 = sfence
    %s47 = sld [smem:[#allocation7]]
    %s48 = sld [smem:[#allocation7 + $0x1]]
    %s49 = sld [smem:[#allocation7 + $0x2]]
    %p50 = scmp.eq.s32.totalorder 0, 0
    // Predicated region
    $region30: #{tpu_custom_call.1} parent=1 // pred_check
      %p51 = pneg %p50
    $region31: #{tpu_custom_call.1} parent=1 // pred_check_branch
      %53 = sbr.rel (%p51) target = $region33
    $region32: #{tpu_custom_call.1} parent=1 // pred_region
      %s54 = scalar_lea.smem [#allocation2], 0
      %55 = sst [smem:[%s54]] 0.0
      %s56 = scalar_lea.smem [#allocation2], 1
      %57 = sst [smem:[%s56]] 0.0
      %s58 = scalar_lea.smem [#allocation2], 2
      %59 = sst [smem:[%s58]] 0.0
      %s60 = scalar_lea.smem [#allocation2], 3
      %61 = sst [smem:[%s60]] 0.0
    $region33: #{tpu_custom_call.1} parent=1 // pred_fallthru
      _
    %v62 = vld [vmem:[%s0] sm:$0xff]
    %v63 = vmul.f32 %v62, %v62
    %vm64 = vcmask 261120
    %v65 = vsel %vm64, %v63, 0.0
    %66 = vadd.xlane.f32.xlu0 %v65
    %v67 = vpop.xlane.xlu0 %66
    %v68 = vmax.f32 %v67, 1e-24
    %v69 = vrsqrt.pop %v68
    %v70 = vmul.f32 %v62, %v69
    %v71 = vld [vmem:[#allocation3] sm:$0xff]
    %v72 = vmul.f32 %v71, %v71
    %v73 = vsel %vm64, %v72, 0.0
    %74 = vadd.xlane.f32.xlu0 %v73
    %v75 = vpop.xlane.xlu0 %74
    %v76 = vmax.f32 %v75, 1e-24
    %v77 = vrsqrt.pop %v76
    %v78 = vmul.f32 %v71, %v77
    %v79 = vpack.c.bf16 %v70, %v70
    %v80 = vpack.c.bf16 %v78, %v78
    %v82 = vsel %vm64, %v79, 0
    %v85 = vsel %vm64, %v80, 0
    %87 = vmatprep.subr.bf16.mxu0 0
    %88 = vmatpush1.bf16.xpose.msra.mxu0 %v85
    %89 = vmatprep.subr.bf16.mxu0 0
    %90 = vmatpush1.bf16.xpose.msra.mxu0 0
    %91 = vmatprep.subr.bf16.mxu0 0
    %92 = vmatpush1.bf16.xpose.msra.mxu0 0
    %93 = vmatprep.subr.bf16.mxu0 0
    %94 = vmatpush1.bf16.xpose.msra.mxu0 0
    %95 = vmatprep.subr.bf16.mxu0 0
    %96 = vmatpush1.bf16.xpose.msra.mxu0 0
    %97 = vmatprep.subr.bf16.mxu0 0
    %98 = vmatpush1.bf16.xpose.msra.mxu0 0
    %99 = vmatprep.subr.bf16.mxu0 0
    %100 = vmatpush1.bf16.xpose.msra.mxu0 0
    %101 = vmatprep.subr.bf16.mxu0 0
    %102 = vmatpush1.bf16.xpose.msra.mxu0 0
    %103 = vmatprep.subr.bf16.mxu0 0
    %104 = vmatpush1.bf16.xpose.msra.mxu0 0
    %105 = vmatprep.subr.bf16.mxu0 0
    %106 = vmatpush1.bf16.xpose.msra.mxu0 0
    %107 = vmatprep.subr.bf16.mxu0 0
    %108 = vmatpush1.bf16.xpose.msra.mxu0 0
    %109 = vmatprep.subr.bf16.mxu0 0
    %110 = vmatpush1.bf16.xpose.msra.mxu0 0
    %111 = vmatprep.subr.bf16.mxu0 0
    %112 = vmatpush1.bf16.xpose.msra.mxu0 0
    %113 = vmatprep.subr.bf16.mxu0 0
    %114 = vmatpush1.bf16.xpose.msra.mxu0 0
    %115 = vmatprep.subr.bf16.mxu0 0
    %116 = vmatpush1.bf16.xpose.msra.mxu0 0
    %117 = vmatprep.subr.bf16.mxu0 0
    %118 = vmatpush1.bf16.xpose.msra.mxu0 0
    %119 = vmatprep.mubr.bf16.mxu0 0
    %120 = vmatmul.mubr.bf16.gmra.mrb[0].mxu0 %v82
    %v121 = vpop.f32.mrb[0].mxu0
    %v122 = vadd.f32 0.0, %v121
    %v123 = vpop.f32.mrb[0].mxu0
    %v124 = vpop.f32.mrb[0].mxu0
    %v125 = vpop.f32.mrb[0].mxu0
    %126 = vdwg.mxu0
    %v127 = vsub.f32 0.0, %v122
    %128 = vmatprep.subr.bf16.mxu0 0
    %129 = vmatpush1.bf16.xpose.msra.mxu0 %v82
    %130 = vmatprep.subr.bf16.mxu0 0
    %131 = vmatpush1.bf16.xpose.msra.mxu0 0
    %132 = vmatprep.subr.bf16.mxu0 0
    %133 = vmatpush1.bf16.xpose.msra.mxu0 0
    %134 = vmatprep.subr.bf16.mxu0 0
    %135 = vmatpush1.bf16.xpose.msra.mxu0 0
    %136 = vmatprep.subr.bf16.mxu0 0
    %137 = vmatpush1.bf16.xpose.msra.mxu0 0
    %138 = vmatprep.subr.bf16.mxu0 0
    %139 = vmatpush1.bf16.xpose.msra.mxu0 0
    %140 = vmatprep.subr.bf16.mxu0 0
    %141 = vmatpush1.bf16.xpose.msra.mxu0 0
    %142 = vmatprep.subr.bf16.mxu0 0
    %143 = vmatpush1.bf16.xpose.msra.mxu0 0
    %144 = vmatprep.subr.bf16.mxu0 0
    %145 = vmatpush1.bf16.xpose.msra.mxu0 0
    %146 = vmatprep.subr.bf16.mxu0 0
    %147 = vmatpush1.bf16.xpose.msra.mxu0 0
    %148 = vmatprep.subr.bf16.mxu0 0
    %149 = vmatpush1.bf16.xpose.msra.mxu0 0
    %150 = vmatprep.subr.bf16.mxu0 0
    %151 = vmatpush1.bf16.xpose.msra.mxu0 0
    %152 = vmatprep.subr.bf16.mxu0 0
    %153 = vmatpush1.bf16.xpose.msra.mxu0 0
    %154 = vmatprep.subr.bf16.mxu0 0
    %155 = vmatpush1.bf16.xpose.msra.mxu0 0
    %156 = vmatprep.subr.bf16.mxu0 0
    %157 = vmatpush1.bf16.xpose.msra.mxu0 0
    %158 = vmatprep.subr.bf16.mxu0 0
    %159 = vmatpush1.bf16.xpose.msra.mxu0 0
    %160 = vmatprep.mubr.bf16.mxu0 0
    %161 = vmatmul.mubr.bf16.gmra.mrb[0].mxu0 %v85
    %v162 = vpop.f32.mrb[0].mxu0
    %v163 = vadd.f32 0.0, %v162
    %v164 = vpop.f32.mrb[0].mxu0
    %v165 = vpop.f32.mrb[0].mxu0
    %v166 = vpop.f32.mrb[0].mxu0
    %167 = vdwg.mxu0
    %v168 = vsub.f32 0.0, %v163
    %v169 = vld [vmem:[%s2] sm:$0xff]
    %v170 = vld [vmem:[%s3] sm:$0x1]
    %171 = vset.pattern.permute.xlu0 0
    %172 = vperm.xlu0 %171, %v169
    %v173 = vpop.permute.xlu0 %172
    %v174 = vlaneseq
    %v175 = vshrl.u32 %v174, 7
    %v176 = vsub.s32 0, %v175
    %v177 = vrot.slane %v170, %v176
    %vm178 = vcmp.eq.s32.totalorder %v173, %v177
    %s179 = smul.u32 0, 8
    %v180 = vlaneseq
    %v181 = vshrl.u32 %v180, 7
    %v182 = vstv %s179
    %v183 = vadd.s32 %v182, %v181
    %v184 = vlaneseq
    %v185 = vand.u32 %v184, 127
    %vm186 = vcmp.ne.s32.totalorder %v183, %v185
    %vm187 = vmand %vm178, %vm186
    %v188 = vsel %vm187, 1.0, 0.0
    %v189 = vsel %vm178, 0.0, 1.0
    %vm190 = vcmask 64512
    %v191 = vsel %vm190, %v188, 0.0
    %192 = vadd.xlane.f32.xlu0 %v191
    %v193 = vpop.xlane.xlu0 %192
    %v194 = vsel %vm190, %v189, 0.0
    %195 = vadd.xlane.f32.xlu0 %v194
    %v196 = vpop.xlane.xlu0 %195
    %v197 = vmul.f32 %v193, %v196
    %vm198 = vcmask 7168
    %v199 = vsel %vm198, %v197, 0.0
    %200 = vadd.xlane.f32.xlu0 %v199
    %v201 = vpop.xlane.xlu0 %200
    %v202 = vrot.slane %v201, 4
    %v203 = vadd.f32 %v201, %v202
    %v204 = vrot.slane %v203, 2
    %v205 = vadd.f32 %v203, %v204
    %v206 = vrot.slane %v205, 1
    %v207 = vadd.f32 %v205, %v206
    %s208 = vtos %v207
    %v209 = vsub.f32 0.0, %v127
    %v210 = vstv %s48
    %v211 = vsub.f32 %v209, %v210
    %v212 = vmax.f32 %v211, 0.0
    %v213 = vmul.f32 %v212, %v189
    %v214 = vsel %vm190, %v213, 0.0
    %215 = vadd.xlane.f32.xlu0 %v214
    %v216 = vpop.xlane.xlu0 %215
    %v217 = vrot.slane %v216, 4
    %v218 = vadd.f32 %v216, %v217
    %v219 = vrot.slane %v218, 2
    %v220 = vadd.f32 %v218, %v219
    %v221 = vrot.slane %v220, 1
    %v222 = vadd.f32 %v220, %v221
    %s223 = vtos %v222
    %v224 = vrot.slane %v196, 4
    %v225 = vadd.f32 %v196, %v224
    %v226 = vrot.slane %v225, 2
    %v227 = vadd.f32 %v225, %v226
    %v228 = vrot.slane %v227, 1
    %v229 = vadd.f32 %v227, %v228
    %s230 = vtos %v229
    %vm231 = vcmp.eq.s32.totalorder %v185, 0
    %v232 = vsel %vm231, 1.0, 0.0
    %vm233 = vcmp.eq.s32.totalorder %v181, 0
    %v234 = vsel %vm233, 1.0, 0.0
    %v236 = vsel %vm190, %v232, 0
    %238 = vmatprep.subr.mxu0 0.0
    %239 = vmatpush1.msra.mxu0 %v127
    %240 = vmatprep.subr.mxu0 0.0
    %241 = vmatpush1.msra.mxu0 0.0
    %242 = vmatprep.subr.mxu0 0.0
    %243 = vmatpush1.msra.mxu0 0.0
    %244 = vmatprep.subr.mxu0 0.0
    %245 = vmatpush1.msra.mxu0 0.0
    %246 = vmatprep.subr.mxu0 0.0
    %247 = vmatpush1.msra.mxu0 0.0
    %248 = vmatprep.subr.mxu0 0.0
    %249 = vmatpush1.msra.mxu0 0.0
    %250 = vmatprep.subr.mxu0 0.0
    %251 = vmatpush1.msra.mxu0 0.0
    %252 = vmatprep.subr.mxu0 0.0
    %253 = vmatpush1.msra.mxu0 0.0
    %254 = vmatprep.subr.mxu0 0.0
    %255 = vmatpush1.msra.mxu0 0.0
    %256 = vmatprep.subr.mxu0 0.0
    %257 = vmatpush1.msra.mxu0 0.0
    %258 = vmatprep.subr.mxu0 0.0
    %259 = vmatpush1.msra.mxu0 0.0
    %260 = vmatprep.subr.mxu0 0.0
    %261 = vmatpush1.msra.mxu0 0.0
    %262 = vmatprep.subr.mxu0 0.0
    %263 = vmatpush1.msra.mxu0 0.0
    %264 = vmatprep.subr.mxu0 0.0
    %265 = vmatpush1.msra.mxu0 0.0
    %266 = vmatprep.subr.mxu0 0.0
    %267 = vmatpush1.msra.mxu0 0.0
    %268 = vmatprep.subr.mxu0 0.0
    %269 = vmatpush1.msra.mxu0 0.0
    %270 = vmatprep.subr.mxu0 0.0
    %271 = vmatpush1.msra.mxu0 0.0
    %272 = vmatprep.subr.mxu0 0.0
    %273 = vmatpush1.msra.mxu0 0.0
    %274 = vmatprep.subr.mxu0 0.0
    %275 = vmatpush1.msra.mxu0 0.0
    %276 = vmatprep.subr.mxu0 0.0
    %277 = vmatpush1.msra.mxu0 0.0
    %278 = vmatprep.subr.mxu0 0.0
    %279 = vmatpush1.msra.mxu0 0.0
    %280 = vmatprep.subr.mxu0 0.0
    %281 = vmatpush1.msra.mxu0 0.0
    %282 = vmatprep.subr.mxu0 0.0
    %283 = vmatpush1.msra.mxu0 0.0
    %284 = vmatprep.subr.mxu0 0.0
    %285 = vmatpush1.msra.mxu0 0.0
    %286 = vmatprep.subr.mxu0 0.0
    %287 = vmatpush1.msra.mxu0 0.0
    %288 = vmatprep.subr.mxu0 0.0
    %289 = vmatpush1.msra.mxu0 0.0
    %290 = vmatprep.subr.mxu0 0.0
    %291 = vmatpush1.msra.mxu0 0.0
    %292 = vmatprep.subr.mxu0 0.0
    %293 = vmatpush1.msra.mxu0 0.0
    %294 = vmatprep.subr.mxu0 0.0
    %295 = vmatpush1.msra.mxu0 0.0
    %296 = vmatprep.subr.mxu0 0.0
    %297 = vmatpush1.msra.mxu0 0.0
    %298 = vmatprep.subr.mxu0 0.0
    %299 = vmatpush1.msra.mxu0 0.0
    %300 = vmatprep.subr.mxu0 0.0
    %301 = vmatpush1.msra.mxu0 0.0
    %302 = vmatprep.mubr.f32.mxu0 0.0
    %303 = vmatmul.mubr.f32.gmra.mrb[0].mxu0 %v236
    %v304 = vpop.f32.mrb[0].mxu0
    %v305 = vadd.f32 0.0, %v304
    %v306 = vpop.f32.mrb[0].mxu0
    %307 = vdwg.mxu0
    %v309 = vsel %vm190, %v168, 0
    %311 = vmatprep.subr.mxu0 0.0
    %312 = vmatpush1.msra.mxu0 %v234
    %313 = vmatprep.subr.mxu0 0.0
    %314 = vmatpush1.msra.mxu0 0.0
    %315 = vmatprep.subr.mxu0 0.0
    %316 = vmatpush1.msra.mxu0 0.0
    %317 = vmatprep.subr.mxu0 0.0
    %318 = vmatpush1.msra.mxu0 0.0
    %319 = vmatprep.subr.mxu0 0.0
    %320 = vmatpush1.msra.mxu0 0.0
    %321 = vmatprep.subr.mxu0 0.0
    %322 = vmatpush1.msra.mxu0 0.0
    %323 = vmatprep.subr.mxu0 0.0
    %324 = vmatpush1.msra.mxu0 0.0
    %325 = vmatprep.subr.mxu0 0.0
    %326 = vmatpush1.msra.mxu0 0.0
    %327 = vmatprep.subr.mxu0 0.0
    %328 = vmatpush1.msra.mxu0 0.0
    %329 = vmatprep.subr.mxu0 0.0
    %330 = vmatpush1.msra.mxu0 0.0
    %331 = vmatprep.subr.mxu0 0.0
    %332 = vmatpush1.msra.mxu0 0.0
    %333 = vmatprep.subr.mxu0 0.0
    %334 = vmatpush1.msra.mxu0 0.0
    %335 = vmatprep.subr.mxu0 0.0
    %336 = vmatpush1.msra.mxu0 0.0
    %337 = vmatprep.subr.mxu0 0.0
    %338 = vmatpush1.msra.mxu0 0.0
    %339 = vmatprep.subr.mxu0 0.0
    %340 = vmatpush1.msra.mxu0 0.0
    %341 = vmatprep.subr.mxu0 0.0
    %342 = vmatpush1.msra.mxu0 0.0
    %343 = vmatprep.subr.mxu0 0.0
    %344 = vmatpush1.msra.mxu0 0.0
    %345 = vmatprep.subr.mxu0 0.0
    %346 = vmatpush1.msra.mxu0 0.0
    %347 = vmatprep.subr.mxu0 0.0
    %348 = vmatpush1.msra.mxu0 0.0
    %349 = vmatprep.subr.mxu0 0.0
    %350 = vmatpush1.msra.mxu0 0.0
    %351 = vmatprep.subr.mxu0 0.0
    %352 = vmatpush1.msra.mxu0 0.0
    %353 = vmatprep.subr.mxu0 0.0
    %354 = vmatpush1.msra.mxu0 0.0
    %355 = vmatprep.subr.mxu0 0.0
    %356 = vmatpush1.msra.mxu0 0.0
    %357 = vmatprep.subr.mxu0 0.0
    %358 = vmatpush1.msra.mxu0 0.0
    %359 = vmatprep.subr.mxu0 0.0
    %360 = vmatpush1.msra.mxu0 0.0
    %361 = vmatprep.subr.mxu0 0.0
    %362 = vmatpush1.msra.mxu0 0.0
    %363 = vmatprep.subr.mxu0 0.0
    %364 = vmatpush1.msra.mxu0 0.0
    %365 = vmatprep.subr.mxu0 0.0
    %366 = vmatpush1.msra.mxu0 0.0
    %367 = vmatprep.subr.mxu0 0.0
    %368 = vmatpush1.msra.mxu0 0.0
    %369 = vmatprep.subr.mxu0 0.0
    %370 = vmatpush1.msra.mxu0 0.0
    %371 = vmatprep.subr.mxu0 0.0
    %372 = vmatpush1.msra.mxu0 0.0
    %373 = vmatprep.subr.mxu0 0.0
    %374 = vmatpush1.msra.mxu0 0.0
    %375 = vmatprep.mubr.f32.mxu0 0.0
    %376 = vmatmul.mubr.f32.gmra.mrb[0].mxu0 %v309
    %v377 = vpop.f32.mrb[0].mxu0
    %v378 = vadd.f32 0.0, %v377
    %v379 = vpop.f32.mrb[0].mxu0
    %380 = vdwg.mxu0
    %381 = vmatprep.subr.mxu0 0.0
    %382 = vmatpush1.msra.mxu0 %v188
    %383 = vmatprep.subr.mxu0 0.0
    %384 = vmatpush1.msra.mxu0 0.0
    %385 = vmatprep.subr.mxu0 0.0
    %386 = vmatpush1.msra.mxu0 0.0
    %387 = vmatprep.subr.mxu0 0.0
    %388 = vmatpush1.msra.mxu0 0.0
    %389 = vmatprep.subr.mxu0 0.0
    %390 = vmatpush1.msra.mxu0 0.0
    %391 = vmatprep.subr.mxu0 0.0
    %392 = vmatpush1.msra.mxu0 0.0
    %393 = vmatprep.subr.mxu0 0.0
    %394 = vmatpush1.msra.mxu0 0.0
    %395 = vmatprep.subr.mxu0 0.0
    %396 = vmatpush1.msra.mxu0 0.0
    %397 = vmatprep.subr.mxu0 0.0
    %398 = vmatpush1.msra.mxu0 0.0
    %399 = vmatprep.subr.mxu0 0.0
    %400 = vmatpush1.msra.mxu0 0.0
    %401 = vmatprep.subr.mxu0 0.0
    %402 = vmatpush1.msra.mxu0 0.0
    %403 = vmatprep.subr.mxu0 0.0
    %404 = vmatpush1.msra.mxu0 0.0
    %405 = vmatprep.subr.mxu0 0.0
    %406 = vmatpush1.msra.mxu0 0.0
    %407 = vmatprep.subr.mxu0 0.0
    %408 = vmatpush1.msra.mxu0 0.0
    %409 = vmatprep.subr.mxu0 0.0
    %410 = vmatpush1.msra.mxu0 0.0
    %411 = vmatprep.subr.mxu0 0.0
    %412 = vmatpush1.msra.mxu0 0.0
    %413 = vmatprep.subr.mxu0 0.0
    %414 = vmatpush1.msra.mxu0 0.0
    %415 = vmatprep.subr.mxu0 0.0
    %416 = vmatpush1.msra.mxu0 0.0
    %417 = vmatprep.subr.mxu0 0.0
    %418 = vmatpush1.msra.mxu0 0.0
    %419 = vmatprep.subr.mxu0 0.0
    %420 = vmatpush1.msra.mxu0 0.0
    %421 = vmatprep.subr.mxu0 0.0
    %422 = vmatpush1.msra.mxu0 0.0
    %423 = vmatprep.subr.mxu0 0.0
    %424 = vmatpush1.msra.mxu0 0.0
    %425 = vmatprep.subr.mxu0 0.0
    %426 = vmatpush1.msra.mxu0 0.0
    %427 = vmatprep.subr.mxu0 0.0
    %428 = vmatpush1.msra.mxu0 0.0
    %429 = vmatprep.subr.mxu0 0.0
    %430 = vmatpush1.msra.mxu0 0.0
    %431 = vmatprep.subr.mxu0 0.0
    %432 = vmatpush1.msra.mxu0 0.0
    %433 = vmatprep.subr.mxu0 0.0
    %434 = vmatpush1.msra.mxu0 0.0
    %435 = vmatprep.subr.mxu0 0.0
    %436 = vmatpush1.msra.mxu0 0.0
    %437 = vmatprep.subr.mxu0 0.0
    %438 = vmatpush1.msra.mxu0 0.0
    %439 = vmatprep.subr.mxu0 0.0
    %440 = vmatpush1.msra.mxu0 0.0
    %441 = vmatprep.subr.mxu0 0.0
    %442 = vmatpush1.msra.mxu0 0.0
    %443 = vmatprep.subr.mxu0 0.0
    %444 = vmatpush1.msra.mxu0 0.0
    %445 = vmatprep.mubr.f32.mxu0 0.0
    %446 = vmatmul.mubr.f32.gmra.mrb[0].mxu0 %v236
    %v447 = vpop.f32.mrb[0].mxu0
    %v448 = vadd.f32 0.0, %v447
    %v449 = vpop.f32.mrb[0].mxu0
    %450 = vdwg.mxu0
    %451 = vmatprep.subr.mxu0 0.0
    %452 = vmatpush1.msra.mxu0 %v189
    %453 = vmatprep.subr.mxu0 0.0
    %454 = vmatpush1.msra.mxu0 0.0
    %455 = vmatprep.subr.mxu0 0.0
    %456 = vmatpush1.msra.mxu0 0.0
    %457 = vmatprep.subr.mxu0 0.0
    %458 = vmatpush1.msra.mxu0 0.0
    %459 = vmatprep.subr.mxu0 0.0
    %460 = vmatpush1.msra.mxu0 0.0
    %461 = vmatprep.subr.mxu0 0.0
    %462 = vmatpush1.msra.mxu0 0.0
    %463 = vmatprep.subr.mxu0 0.0
    %464 = vmatpush1.msra.mxu0 0.0
    %465 = vmatprep.subr.mxu0 0.0
    %466 = vmatpush1.msra.mxu0 0.0
    %467 = vmatprep.subr.mxu0 0.0
    %468 = vmatpush1.msra.mxu0 0.0
    %469 = vmatprep.subr.mxu0 0.0
    %470 = vmatpush1.msra.mxu0 0.0
    %471 = vmatprep.subr.mxu0 0.0
    %472 = vmatpush1.msra.mxu0 0.0
    %473 = vmatprep.subr.mxu0 0.0
    %474 = vmatpush1.msra.mxu0 0.0
    %475 = vmatprep.subr.mxu0 0.0
    %476 = vmatpush1.msra.mxu0 0.0
    %477 = vmatprep.subr.mxu0 0.0
    %478 = vmatpush1.msra.mxu0 0.0
    %479 = vmatprep.subr.mxu0 0.0
    %480 = vmatpush1.msra.mxu0 0.0
    %481 = vmatprep.subr.mxu0 0.0
    %482 = vmatpush1.msra.mxu0 0.0
    %483 = vmatprep.subr.mxu0 0.0
    %484 = vmatpush1.msra.mxu0 0.0
    %485 = vmatprep.subr.mxu0 0.0
    %486 = vmatpush1.msra.mxu0 0.0
    %487 = vmatprep.subr.mxu0 0.0
    %488 = vmatpush1.msra.mxu0 0.0
    %489 = vmatprep.subr.mxu0 0.0
    %490 = vmatpush1.msra.mxu0 0.0
    %491 = vmatprep.subr.mxu0 0.0
    %492 = vmatpush1.msra.mxu0 0.0
    %493 = vmatprep.subr.mxu0 0.0
    %494 = vmatpush1.msra.mxu0 0.0
    %495 = vmatprep.subr.mxu0 0.0
    %496 = vmatpush1.msra.mxu0 0.0
    %497 = vmatprep.subr.mxu0 0.0
    %498 = vmatpush1.msra.mxu0 0.0
    %499 = vmatprep.subr.mxu0 0.0
    %500 = vmatpush1.msra.mxu0 0.0
    %501 = vmatprep.subr.mxu0 0.0
    %502 = vmatpush1.msra.mxu0 0.0
    %503 = vmatprep.subr.mxu0 0.0
    %504 = vmatpush1.msra.mxu0 0.0
    %505 = vmatprep.subr.mxu0 0.0
    %506 = vmatpush1.msra.mxu0 0.0
    %507 = vmatprep.subr.mxu0 0.0
    %508 = vmatpush1.msra.mxu0 0.0
    %509 = vmatprep.subr.mxu0 0.0
    %510 = vmatpush1.msra.mxu0 0.0
    %511 = vmatprep.subr.mxu0 0.0
    %512 = vmatpush1.msra.mxu0 0.0
    %513 = vmatprep.subr.mxu0 0.0
    %514 = vmatpush1.msra.mxu0 0.0
    %515 = vmatprep.mubr.f32.mxu0 0.0
    %516 = vmatmul.mubr.f32.gmra.mrb[0].mxu0 %v236
    %v517 = vpop.f32.mrb[0].mxu0
    %v518 = vadd.f32 0.0, %v517
    %v519 = vpop.f32.mrb[0].mxu0
    %520 = vdwg.mxu0
    %522 = vset.pattern.permute.xlu0 0
    %523 = vperm.xlu0 %522, %v378
    %v524 = vpop.permute.xlu0 %523
    %v526 = vlaneseq
    %v527 = vshrl.u32 %v526, 7
    %v528 = vsub.s32 0, %v527
    %v529 = vrot.slane %v305, %v528
    %v530 = vsub.f32 %v524, %v529
    %v531 = vstv %s47
    %v532 = vadd.f32 %v530, %v531
    %v533 = vmax.f32 %v532, 0.0
    %v535 = vsel %vm190, %v448, 0
    %537 = vmatprep.subr.mxu0 0.0
    %538 = vmatpush1.msra.mxu0 %v533
    %539 = vmatprep.subr.mxu0 0.0
    %540 = vmatpush1.msra.mxu0 0.0
    %541 = vmatprep.subr.mxu0 0.0
    %542 = vmatpush1.msra.mxu0 0.0
    %543 = vmatprep.subr.mxu0 0.0
    %544 = vmatpush1.msra.mxu0 0.0
    %545 = vmatprep.subr.mxu0 0.0
    %546 = vmatpush1.msra.mxu0 0.0
    %547 = vmatprep.subr.mxu0 0.0
    %548 = vmatpush1.msra.mxu0 0.0
    %549 = vmatprep.subr.mxu0 0.0
    %550 = vmatpush1.msra.mxu0 0.0
    %551 = vmatprep.subr.mxu0 0.0
    %552 = vmatpush1.msra.mxu0 0.0
    %553 = vmatprep.subr.mxu0 0.0
    %554 = vmatpush1.msra.mxu0 0.0
    %555 = vmatprep.subr.mxu0 0.0
    %556 = vmatpush1.msra.mxu0 0.0
    %557 = vmatprep.subr.mxu0 0.0
    %558 = vmatpush1.msra.mxu0 0.0
    %559 = vmatprep.subr.mxu0 0.0
    %560 = vmatpush1.msra.mxu0 0.0
    %561 = vmatprep.subr.mxu0 0.0
    %562 = vmatpush1.msra.mxu0 0.0
    %563 = vmatprep.subr.mxu0 0.0
    %564 = vmatpush1.msra.mxu0 0.0
    %565 = vmatprep.subr.mxu0 0.0
    %566 = vmatpush1.msra.mxu0 0.0
    %567 = vmatprep.subr.mxu0 0.0
    %568 = vmatpush1.msra.mxu0 0.0
    %569 = vmatprep.subr.mxu0 0.0
    %570 = vmatpush1.msra.mxu0 0.0
    %571 = vmatprep.subr.mxu0 0.0
    %572 = vmatpush1.msra.mxu0 0.0
    %573 = vmatprep.subr.mxu0 0.0
    %574 = vmatpush1.msra.mxu0 0.0
    %575 = vmatprep.subr.mxu0 0.0
    %576 = vmatpush1.msra.mxu0 0.0
    %577 = vmatprep.subr.mxu0 0.0
    %578 = vmatpush1.msra.mxu0 0.0
    %579 = vmatprep.subr.mxu0 0.0
    %580 = vmatpush1.msra.mxu0 0.0
    %581 = vmatprep.subr.mxu0 0.0
    %582 = vmatpush1.msra.mxu0 0.0
    %583 = vmatprep.subr.mxu0 0.0
    %584 = vmatpush1.msra.mxu0 0.0
    %585 = vmatprep.subr.mxu0 0.0
    %586 = vmatpush1.msra.mxu0 0.0
    %587 = vmatprep.subr.mxu0 0.0
    %588 = vmatpush1.msra.mxu0 0.0
    %589 = vmatprep.subr.mxu0 0.0
    %590 = vmatpush1.msra.mxu0 0.0
    %591 = vmatprep.subr.mxu0 0.0
    %592 = vmatpush1.msra.mxu0 0.0
    %593 = vmatprep.subr.mxu0 0.0
    %594 = vmatpush1.msra.mxu0 0.0
    %595 = vmatprep.subr.mxu0 0.0
    %596 = vmatpush1.msra.mxu0 0.0
    %597 = vmatprep.subr.mxu0 0.0
    %598 = vmatpush1.msra.mxu0 0.0
    %599 = vmatprep.subr.mxu0 0.0
    %600 = vmatpush1.msra.mxu0 0.0
    %601 = vmatprep.mubr.f32.mxu0 0.0
    %602 = vmatmul.mubr.f32.gmra.mrb[0].mxu0 %v535
    %v603 = vpop.f32.mrb[0].mxu0
    %v604 = vadd.f32 0.0, %v603
    %v605 = vpop.f32.mrb[0].mxu0
    %606 = vdwg.mxu0
    %v607 = vmul.f32 %v604, %v518
    %vm608 = vcmask 57344
    %v609 = vsel %vm608, %v607, 0.0
    %610 = vadd.xlane.f32.xlu0 %v609
    %v611 = vpop.xlane.xlu0 %610
    %v612 = vadd.f32 %v611, 0.0
    %s613 = vtos %v612
    %s614 = sadd.f32 %s613, 0.0
    %vm615 = vcmp.eq.s32.totalorder %v185, 1
    %v616 = vsel %vm615, 1.0, 0.0
    %vm617 = vcmp.eq.s32.totalorder %v181, 1
    %v618 = vsel %vm617, 1.0, 0.0
    %v620 = vsel %vm190, %v616, 0
    %622 = vmatprep.subr.mxu0 0.0
    %623 = vmatpush1.msra.mxu0 %v127
    %624 = vmatprep.subr.mxu0 0.0
    %625 = vmatpush1.msra.mxu0 0.0
    %626 = vmatprep.subr.mxu0 0.0
    %627 = vmatpush1.msra.mxu0 0.0
    %628 = vmatprep.subr.mxu0 0.0
    %629 = vmatpush1.msra.mxu0 0.0
    %630 = vmatprep.subr.mxu0 0.0
    %631 = vmatpush1.msra.mxu0 0.0
    %632 = vmatprep.subr.mxu0 0.0
    %633 = vmatpush1.msra.mxu0 0.0
    %634 = vmatprep.subr.mxu0 0.0
    %635 = vmatpush1.msra.mxu0 0.0
    %636 = vmatprep.subr.mxu0 0.0
    %637 = vmatpush1.msra.mxu0 0.0
    %638 = vmatprep.subr.mxu0 0.0
    %639 = vmatpush1.msra.mxu0 0.0
    %640 = vmatprep.subr.mxu0 0.0
    %641 = vmatpush1.msra.mxu0 0.0
    %642 = vmatprep.subr.mxu0 0.0
    %643 = vmatpush1.msra.mxu0 0.0
    %644 = vmatprep.subr.mxu0 0.0
    %645 = vmatpush1.msra.mxu0 0.0
    %646 = vmatprep.subr.mxu0 0.0
    %647 = vmatpush1.msra.mxu0 0.0
    %648 = vmatprep.subr.mxu0 0.0
    %649 = vmatpush1.msra.mxu0 0.0
    %650 = vmatprep.subr.mxu0 0.0
    %651 = vmatpush1.msra.mxu0 0.0
    %652 = vmatprep.subr.mxu0 0.0
    %653 = vmatpush1.msra.mxu0 0.0
    %654 = vmatprep.subr.mxu0 0.0
    %655 = vmatpush1.msra.mxu0 0.0
    %656 = vmatprep.subr.mxu0 0.0
    %657 = vmatpush1.msra.mxu0 0.0
    %658 = vmatprep.subr.mxu0 0.0
    %659 = vmatpush1.msra.mxu0 0.0
    %660 = vmatprep.subr.mxu0 0.0
    %661 = vmatpush1.msra.mxu0 0.0
    %662 = vmatprep.subr.mxu0 0.0
    %663 = vmatpush1.msra.mxu0 0.0
    %664 = vmatprep.subr.mxu0 0.0
    %665 = vmatpush1.msra.mxu0 0.0
    %666 = vmatprep.subr.mxu0 0.0
    %667 = vmatpush1.msra.mxu0 0.0
    %668 = vmatprep.subr.mxu0 0.0
    %669 = vmatpush1.msra.mxu0 0.0
    %670 = vmatprep.subr.mxu0 0.0
    %671 = vmatpush1.msra.mxu0 0.0
    %672 = vmatprep.subr.mxu0 0.0
    %673 = vmatpush1.msra.mxu0 0.0
    %674 = vmatprep.subr.mxu0 0.0
    %675 = vmatpush1.msra.mxu0 0.0
    %676 = vmatprep.subr.mxu0 0.0
    %677 = vmatpush1.msra.mxu0 0.0
    %678 = vmatprep.subr.mxu0 0.0
    %679 = vmatpush1.msra.mxu0 0.0
    %680 = vmatprep.subr.mxu0 0.0
    %681 = vmatpush1.msra.mxu0 0.0
    %682 = vmatprep.subr.mxu0 0.0
    %683 = vmatpush1.msra.mxu0 0.0
    %684 = vmatprep.subr.mxu0 0.0
    %685 = vmatpush1.msra.mxu0 0.0
    %686 = vmatprep.mubr.f32.mxu0 0.0
    %687 = vmatmul.mubr.f32.gmra.mrb[0].mxu0 %v620
    %v688 = vpop.f32.mrb[0].mxu0
    %v689 = vadd.f32 0.0, %v688
    %v690 = vpop.f32.mrb[0].mxu0
    %691 = vdwg.mxu0
    %692 = vmatprep.subr.mxu0 0.0
    %693 = vmatpush1.msra.mxu0 %v618
    %694 = vmatprep.subr.mxu0 0.0
    %695 = vmatpush1.msra.mxu0 0.0
    %696 = vmatprep.subr.mxu0 0.0
    %697 = vmatpush1.msra.mxu0 0.0
    %698 = vmatprep.subr.mxu0 0.0
    %699 = vmatpush1.msra.mxu0 0.0
    %700 = vmatprep.subr.mxu0 0.0
    %701 = vmatpush1.msra.mxu0 0.0
    %702 = vmatprep.subr.mxu0 0.0
    %703 = vmatpush1.msra.mxu0 0.0
    %704 = vmatprep.subr.mxu0 0.0
    %705 = vmatpush1.msra.mxu0 0.0
    %706 = vmatprep.subr.mxu0 0.0
    %707 = vmatpush1.msra.mxu0 0.0
    %708 = vmatprep.subr.mxu0 0.0
    %709 = vmatpush1.msra.mxu0 0.0
    %710 = vmatprep.subr.mxu0 0.0
    %711 = vmatpush1.msra.mxu0 0.0
    %712 = vmatprep.subr.mxu0 0.0
    %713 = vmatpush1.msra.mxu0 0.0
    %714 = vmatprep.subr.mxu0 0.0
    %715 = vmatpush1.msra.mxu0 0.0
    %716 = vmatprep.subr.mxu0 0.0
    %717 = vmatpush1.msra.mxu0 0.0
    %718 = vmatprep.subr.mxu0 0.0
    %719 = vmatpush1.msra.mxu0 0.0
    %720 = vmatprep.subr.mxu0 0.0
    %721 = vmatpush1.msra.mxu0 0.0
    %722 = vmatprep.subr.mxu0 0.0
    %723 = vmatpush1.msra.mxu0 0.0
    %724 = vmatprep.subr.mxu0 0.0
    %725 = vmatpush1.msra.mxu0 0.0
    %726 = vmatprep.subr.mxu0 0.0
    %727 = vmatpush1.msra.mxu0 0.0
    %728 = vmatprep.subr.mxu0 0.0
    %729 = vmatpush1.msra.mxu0 0.0
    %730 = vmatprep.subr.mxu0 0.0
    %731 = vmatpush1.msra.mxu0 0.0
    %732 = vmatprep.subr.mxu0 0.0
    %733 = vmatpush1.msra.mxu0 0.0
    %734 = vmatprep.subr.mxu0 0.0
    %735 = vmatpush1.msra.mxu0 0.0
    %736 = vmatprep.subr.mxu0 0.0
    %737 = vmatpush1.msra.mxu0 0.0
    %738 = vmatprep.subr.mxu0 0.0
    %739 = vmatpush1.msra.mxu0 0.0
    %740 = vmatprep.subr.mxu0 0.0
    %741 = vmatpush1.msra.mxu0 0.0
    %742 = vmatprep.subr.mxu0 0.0
    %743 = vmatpush1.msra.mxu0 0.0
    %744 = vmatprep.subr.mxu0 0.0
    %745 = vmatpush1.msra.mxu0 0.0
    %746 = vmatprep.subr.mxu0 0.0
    %747 = vmatpush1.msra.mxu0 0.0
    %748 = vmatprep.subr.mxu0 0.0
    %749 = vmatpush1.msra.mxu0 0.0
    %750 = vmatprep.subr.mxu0 0.0
    %751 = vmatpush1.msra.mxu0 0.0
    %752 = vmatprep.subr.mxu0 0.0
    %753 = vmatpush1.msra.mxu0 0.0
    %754 = vmatprep.subr.mxu0 0.0
    %755 = vmatpush1.msra.mxu0 0.0
    %756 = vmatprep.mubr.f32.mxu0 0.0
    %757 = vmatmul.mubr.f32.gmra.mrb[0].mxu0 %v309
    %v758 = vpop.f32.mrb[0].mxu0
    %v759 = vadd.f32 0.0, %v758
    %v760 = vpop.f32.mrb[0].mxu0
    %761 = vdwg.mxu0
    %762 = vmatprep.subr.mxu0 0.0
    %763 = vmatpush1.msra.mxu0 %v188
    %764 = vmatprep.subr.mxu0 0.0
    %765 = vmatpush1.msra.mxu0 0.0
    %766 = vmatprep.subr.mxu0 0.0
    %767 = vmatpush1.msra.mxu0 0.0
    %768 = vmatprep.subr.mxu0 0.0
    %769 = vmatpush1.msra.mxu0 0.0
    %770 = vmatprep.subr.mxu0 0.0
    %771 = vmatpush1.msra.mxu0 0.0
    %772 = vmatprep.subr.mxu0 0.0
    %773 = vmatpush1.msra.mxu0 0.0
    %774 = vmatprep.subr.mxu0 0.0
    %775 = vmatpush1.msra.mxu0 0.0
    %776 = vmatprep.subr.mxu0 0.0
    %777 = vmatpush1.msra.mxu0 0.0
    %778 = vmatprep.subr.mxu0 0.0
    %779 = vmatpush1.msra.mxu0 0.0
    %780 = vmatprep.subr.mxu0 0.0
    %781 = vmatpush1.msra.mxu0 0.0
    %782 = vmatprep.subr.mxu0 0.0
    %783 = vmatpush1.msra.mxu0 0.0
    %784 = vmatprep.subr.mxu0 0.0
    %785 = vmatpush1.msra.mxu0 0.0
    %786 = vmatprep.subr.mxu0 0.0
    %787 = vmatpush1.msra.mxu0 0.0
    %788 = vmatprep.subr.mxu0 0.0
    %789 = vmatpush1.msra.mxu0 0.0
    %790 = vmatprep.subr.mxu0 0.0
    %791 = vmatpush1.msra.mxu0 0.0
    %792 = vmatprep.subr.mxu0 0.0
    %793 = vmatpush1.msra.mxu0 0.0
    %794 = vmatprep.subr.mxu0 0.0
    %795 = vmatpush1.msra.mxu0 0.0
    %796 = vmatprep.subr.mxu0 0.0
    %797 = vmatpush1.msra.mxu0 0.0
    %798 = vmatprep.subr.mxu0 0.0
    %799 = vmatpush1.msra.mxu0 0.0
    %800 = vmatprep.subr.mxu0 0.0
    %801 = vmatpush1.msra.mxu0 0.0
    %802 = vmatprep.subr.mxu0 0.0
    %803 = vmatpush1.msra.mxu0 0.0
    %804 = vmatprep.subr.mxu0 0.0
    %805 = vmatpush1.msra.mxu0 0.0
    %806 = vmatprep.subr.mxu0 0.0
    %807 = vmatpush1.msra.mxu0 0.0
    %808 = vmatprep.subr.mxu0 0.0
    %809 = vmatpush1.msra.mxu0 0.0
    %810 = vmatprep.subr.mxu0 0.0
    %811 = vmatpush1.msra.mxu0 0.0
    %812 = vmatprep.subr.mxu0 0.0
    %813 = vmatpush1.msra.mxu0 0.0
    %814 = vmatprep.subr.mxu0 0.0
    %815 = vmatpush1.msra.mxu0 0.0
    %816 = vmatprep.subr.mxu0 0.0
    %817 = vmatpush1.msra.mxu0 0.0
    %818 = vmatprep.subr.mxu0 0.0
    %819 = vmatpush1.msra.mxu0 0.0
    %820 = vmatprep.subr.mxu0 0.0
    %821 = vmatpush1.msra.mxu0 0.0
    %822 = vmatprep.subr.mxu0 0.0
    %823 = vmatpush1.msra.mxu0 0.0
    %824 = vmatprep.subr.mxu0 0.0
    %825 = vmatpush1.msra.mxu0 0.0
    %826 = vmatprep.mubr.f32.mxu0 0.0
    %827 = vmatmul.mubr.f32.gmra.mrb[0].mxu0 %v620
    %v828 = vpop.f32.mrb[0].mxu0
    %v829 = vadd.f32 0.0, %v828
    %v830 = vpop.f32.mrb[0].mxu0
    %831 = vdwg.mxu0
    %832 = vmatprep.subr.mxu0 0.0
    %833 = vmatpush1.msra.mxu0 %v189
    %834 = vmatprep.subr.mxu0 0.0
    %835 = vmatpush1.msra.mxu0 0.0
    %836 = vmatprep.subr.mxu0 0.0
    %837 = vmatpush1.msra.mxu0 0.0
    %838 = vmatprep.subr.mxu0 0.0
    %839 = vmatpush1.msra.mxu0 0.0
    %840 = vmatprep.subr.mxu0 0.0
    %841 = vmatpush1.msra.mxu0 0.0
    %842 = vmatprep.subr.mxu0 0.0
    %843 = vmatpush1.msra.mxu0 0.0
    %844 = vmatprep.subr.mxu0 0.0
    %845 = vmatpush1.msra.mxu0 0.0
    %846 = vmatprep.subr.mxu0 0.0
    %847 = vmatpush1.msra.mxu0 0.0
    %848 = vmatprep.subr.mxu0 0.0
    %849 = vmatpush1.msra.mxu0 0.0
    %850 = vmatprep.subr.mxu0 0.0
    %851 = vmatpush1.msra.mxu0 0.0
    %852 = vmatprep.subr.mxu0 0.0
    %853 = vmatpush1.msra.mxu0 0.0
    %854 = vmatprep.subr.mxu0 0.0
    %855 = vmatpush1.msra.mxu0 0.0
    %856 = vmatprep.subr.mxu0 0.0
    %857 = vmatpush1.msra.mxu0 0.0
    %858 = vmatprep.subr.mxu0 0.0
    %859 = vmatpush1.msra.mxu0 0.0
    %860 = vmatprep.subr.mxu0 0.0
    %861 = vmatpush1.msra.mxu0 0.0
    %862 = vmatprep.subr.mxu0 0.0
    %863 = vmatpush1.msra.mxu0 0.0
    %864 = vmatprep.subr.mxu0 0.0
    %865 = vmatpush1.msra.mxu0 0.0
    %866 = vmatprep.subr.mxu0 0.0
    %867 = vmatpush1.msra.mxu0 0.0
    %868 = vmatprep.subr.mxu0 0.0
    %869 = vmatpush1.msra.mxu0 0.0
    %870 = vmatprep.subr.mxu0 0.0
    %871 = vmatpush1.msra.mxu0 0.0
    %872 = vmatprep.subr.mxu0 0.0
    %873 = vmatpush1.msra.mxu0 0.0
    %874 = vmatprep.subr.mxu0 0.0
    %875 = vmatpush1.msra.mxu0 0.0
    %876 = vmatprep.subr.mxu0 0.0
    %877 = vmatpush1.msra.mxu0 0.0
    %878 = vmatprep.subr.mxu0 0.0
    %879 = vmatpush1.msra.mxu0 0.0
    %880 = vmatprep.subr.mxu0 0.0
    %881 = vmatpush1.msra.mxu0 0.0
    %882 = vmatprep.subr.mxu0 0.0
    %883 = vmatpush1.msra.mxu0 0.0
    %884 = vmatprep.subr.mxu0 0.0
    %885 = vmatpush1.msra.mxu0 0.0
    %886 = vmatprep.subr.mxu0 0.0
    %887 = vmatpush1.msra.mxu0 0.0
    %888 = vmatprep.subr.mxu0 0.0
    %889 = vmatpush1.msra.mxu0 0.0
    %890 = vmatprep.subr.mxu0 0.0
    %891 = vmatpush1.msra.mxu0 0.0
    %892 = vmatprep.subr.mxu0 0.0
    %893 = vmatpush1.msra.mxu0 0.0
    %894 = vmatprep.subr.mxu0 0.0
    %895 = vmatpush1.msra.mxu0 0.0
    %896 = vmatprep.mubr.f32.mxu0 0.0
    %897 = vmatmul.mubr.f32.gmra.mrb[0].mxu0 %v620
    %v898 = vpop.f32.mrb[0].mxu0
    %v899 = vadd.f32 0.0, %v898
    %v900 = vpop.f32.mrb[0].mxu0
    %901 = vdwg.mxu0
    %903 = vset.pattern.permute.xlu0 0
    %904 = vperm.xlu0 %903, %v759
    %v905 = vpop.permute.xlu0 %904
    %v907 = vlaneseq
    %v908 = vshrl.u32 %v907, 7
    %v909 = vsub.s32 0, %v908
    %v910 = vrot.slane %v689, %v909
    %v911 = vsub.f32 %v905, %v910
    %v912 = vadd.f32 %v911, %v531
    %v913 = vmax.f32 %v912, 0.0
    %v915 = vsel %vm190, %v829, 0
    %917 = vmatprep.subr.mxu0 0.0
    %918 = vmatpush1.msra.mxu0 %v913
    %919 = vmatprep.subr.mxu0 0.0
    %920 = vmatpush1.msra.mxu0 0.0
    %921 = vmatprep.subr.mxu0 0.0
    %922 = vmatpush1.msra.mxu0 0.0
    %923 = vmatprep.subr.mxu0 0.0
    %924 = vmatpush1.msra.mxu0 0.0
    %925 = vmatprep.subr.mxu0 0.0
    %926 = vmatpush1.msra.mxu0 0.0
    %927 = vmatprep.subr.mxu0 0.0
    %928 = vmatpush1.msra.mxu0 0.0
    %929 = vmatprep.subr.mxu0 0.0
    %930 = vmatpush1.msra.mxu0 0.0
    %931 = vmatprep.subr.mxu0 0.0
    %932 = vmatpush1.msra.mxu0 0.0
    %933 = vmatprep.subr.mxu0 0.0
    %934 = vmatpush1.msra.mxu0 0.0
    %935 = vmatprep.subr.mxu0 0.0
    %936 = vmatpush1.msra.mxu0 0.0
    %937 = vmatprep.subr.mxu0 0.0
    %938 = vmatpush1.msra.mxu0 0.0
    %939 = vmatprep.subr.mxu0 0.0
    %940 = vmatpush1.msra.mxu0 0.0
    %941 = vmatprep.subr.mxu0 0.0
    %942 = vmatpush1.msra.mxu0 0.0
    %943 = vmatprep.subr.mxu0 0.0
    %944 = vmatpush1.msra.mxu0 0.0
    %945 = vmatprep.subr.mxu0 0.0
    %946 = vmatpush1.msra.mxu0 0.0
    %947 = vmatprep.subr.mxu0 0.0
    %948 = vmatpush1.msra.mxu0 0.0
    %949 = vmatprep.subr.mxu0 0.0
    %950 = vmatpush1.msra.mxu0 0.0
    %951 = vmatprep.subr.mxu0 0.0
    %952 = vmatpush1.msra.mxu0 0.0
    %953 = vmatprep.subr.mxu0 0.0
    %954 = vmatpush1.msra.mxu0 0.0
    %955 = vmatprep.subr.mxu0 0.0
    %956 = vmatpush1.msra.mxu0 0.0
    %957 = vmatprep.subr.mxu0 0.0
    %958 = vmatpush1.msra.mxu0 0.0
    %959 = vmatprep.subr.mxu0 0.0
    %960 = vmatpush1.msra.mxu0 0.0
    %961 = vmatprep.subr.mxu0 0.0
    %962 = vmatpush1.msra.mxu0 0.0
    %963 = vmatprep.subr.mxu0 0.0
    %964 = vmatpush1.msra.mxu0 0.0
    %965 = vmatprep.subr.mxu0 0.0
    %966 = vmatpush1.msra.mxu0 0.0
    %967 = vmatprep.subr.mxu0 0.0
    %968 = vmatpush1.msra.mxu0 0.0
    %969 = vmatprep.subr.mxu0 0.0
    %970 = vmatpush1.msra.mxu0 0.0
    %971 = vmatprep.subr.mxu0 0.0
    %972 = vmatpush1.msra.mxu0 0.0
    %973 = vmatprep.subr.mxu0 0.0
    %974 = vmatpush1.msra.mxu0 0.0
    %975 = vmatprep.subr.mxu0 0.0
    %976 = vmatpush1.msra.mxu0 0.0
    %977 = vmatprep.subr.mxu0 0.0
    %978 = vmatpush1.msra.mxu0 0.0
    %979 = vmatprep.subr.mxu0 0.0
    %980 = vmatpush1.msra.mxu0 0.0
    %981 = vmatprep.mubr.f32.mxu0 0.0
    %982 = vmatmul.mubr.f32.gmra.mrb[0].mxu0 %v915
    %v983 = vpop.f32.mrb[0].mxu0
    %v984 = vadd.f32 0.0, %v983
    %v985 = vpop.f32.mrb[0].mxu0
    %986 = vdwg.mxu0
    %v987 = vmul.f32 %v984, %v899
    %v988 = vsel %vm608, %v987, 0.0
    %989 = vadd.xlane.f32.xlu0 %v988
    %v990 = vpop.xlane.xlu0 %989
    %v991 = vadd.f32 %v990, 0.0
    %s992 = vtos %v991
    %s993 = sadd.f32 %s614, %s992
    %vm994 = vcmp.eq.s32.totalorder %v185, 2
    %v995 = vsel %vm994, 1.0, 0.0
    %vm996 = vcmp.eq.s32.totalorder %v181, 2
    %v997 = vsel %vm996, 1.0, 0.0
    %v999 = vsel %vm190, %v995, 0
    %1001 = vmatprep.subr.mxu0 0.0
    %1002 = vmatpush1.msra.mxu0 %v127
    %1003 = vmatprep.subr.mxu0 0.0
    %1004 = vmatpush1.msra.mxu0 0.0
    %1005 = vmatprep.subr.mxu0 0.0
    %1006 = vmatpush1.msra.mxu0 0.0
    %1007 = vmatprep.subr.mxu0 0.0
    %1008 = vmatpush1.msra.mxu0 0.0
    %1009 = vmatprep.subr.mxu0 0.0
    %1010 = vmatpush1.msra.mxu0 0.0
    %1011 = vmatprep.subr.mxu0 0.0
    %1012 = vmatpush1.msra.mxu0 0.0
    %1013 = vmatprep.subr.mxu0 0.0
    %1014 = vmatpush1.msra.mxu0 0.0
    %1015 = vmatprep.subr.mxu0 0.0
    %1016 = vmatpush1.msra.mxu0 0.0
    %1017 = vmatprep.subr.mxu0 0.0
    %1018 = vmatpush1.msra.mxu0 0.0
    %1019 = vmatprep.subr.mxu0 0.0
    %1020 = vmatpush1.msra.mxu0 0.0
    %1021 = vmatprep.subr.mxu0 0.0
    %1022 = vmatpush1.msra.mxu0 0.0
    %1023 = vmatprep.subr.mxu0 0.0
    %1024 = vmatpush1.msra.mxu0 0.0
    %1025 = vmatprep.subr.mxu0 0.0
    %1026 = vmatpush1.msra.mxu0 0.0
    %1027 = vmatprep.subr.mxu0 0.0
    %1028 = vmatpush1.msra.mxu0 0.0
    %1029 = vmatprep.subr.mxu0 0.0
    %1030 = vmatpush1.msra.mxu0 0.0
    %1031 = vmatprep.subr.mxu0 0.0
    %1032 = vmatpush1.msra.mxu0 0.0
    %1033 = vmatprep.subr.mxu0 0.0
    %1034 = vmatpush1.msra.mxu0 0.0
    %1035 = vmatprep.subr.mxu0 0.0
    %1036 = vmatpush1.msra.mxu0 0.0
    %1037 = vmatprep.subr.mxu0 0.0
    %1038 = vmatpush1.msra.mxu0 0.0
    %1039 = vmatprep.subr.mxu0 0.0
    %1040 = vmatpush1.msra.mxu0 0.0
    %1041 = vmatprep.subr.mxu0 0.0
    %1042 = vmatpush1.msra.mxu0 0.0
    %1043 = vmatprep.subr.mxu0 0.0
    %1044 = vmatpush1.msra.mxu0 0.0
    %1045 = vmatprep.subr.mxu0 0.0
    %1046 = vmatpush1.msra.mxu0 0.0
    %1047 = vmatprep.subr.mxu0 0.0
    %1048 = vmatpush1.msra.mxu0 0.0
    %1049 = vmatprep.subr.mxu0 0.0
    %1050 = vmatpush1.msra.mxu0 0.0
    %1051 = vmatprep.subr.mxu0 0.0
    %1052 = vmatpush1.msra.mxu0 0.0
    %1053 = vmatprep.subr.mxu0 0.0
    %1054 = vmatpush1.msra.mxu0 0.0
    %1055 = vmatprep.subr.mxu0 0.0
    %1056 = vmatpush1.msra.mxu0 0.0
    %1057 = vmatprep.subr.mxu0 0.0
    %1058 = vmatpush1.msra.mxu0 0.0
    %1059 = vmatprep.subr.mxu0 0.0
    %1060 = vmatpush1.msra.mxu0 0.0
    %1061 = vmatprep.subr.mxu0 0.0
    %1062 = vmatpush1.msra.mxu0 0.0
    %1063 = vmatprep.subr.mxu0 0.0
    %1064 = vmatpush1.msra.mxu0 0.0
    %1065 = vmatprep.mubr.f32.mxu0 0.0
    %1066 = vmatmul.mubr.f32.gmra.mrb[0].mxu0 %v999
    %v1067 = vpop.f32.mrb[0].mxu0
    %v1068 = vadd.f32 0.0, %v1067
    %v1069 = vpop.f32.mrb[0].mxu0
    %1070 = vdwg.mxu0
    %1071 = vmatprep.subr.mxu0 0.0
    %1072 = vmatpush1.msra.mxu0 %v997
    %1073 = vmatprep.subr.mxu0 0.0
    %1074 = vmatpush1.msra.mxu0 0.0
    %1075 = vmatprep.subr.mxu0 0.0
    %1076 = vmatpush1.msra.mxu0 0.0
    %1077 = vmatprep.subr.mxu0 0.0
    %1078 = vmatpush1.msra.mxu0 0.0
    %1079 = vmatprep.subr.mxu0 0.0
    %1080 = vmatpush1.msra.mxu0 0.0
    %1081 = vmatprep.subr.mxu0 0.0
    %1082 = vmatpush1.msra.mxu0 0.0
    %1083 = vmatprep.subr.mxu0 0.0
    %1084 = vmatpush1.msra.mxu0 0.0
    %1085 = vmatprep.subr.mxu0 0.0
    %1086 = vmatpush1.msra.mxu0 0.0
    %1087 = vmatprep.subr.mxu0 0.0
    %1088 = vmatpush1.msra.mxu0 0.0
    %1089 = vmatprep.subr.mxu0 0.0
    %1090 = vmatpush1.msra.mxu0 0.0
    %1091 = vmatprep.subr.mxu0 0.0
    %1092 = vmatpush1.msra.mxu0 0.0
    %1093 = vmatprep.subr.mxu0 0.0
    %1094 = vmatpush1.msra.mxu0 0.0
    %1095 = vmatprep.subr.mxu0 0.0
    %1096 = vmatpush1.msra.mxu0 0.0
    %1097 = vmatprep.subr.mxu0 0.0
    %1098 = vmatpush1.msra.mxu0 0.0
    %1099 = vmatprep.subr.mxu0 0.0
    %1100 = vmatpush1.msra.mxu0 0.0
    %1101 = vmatprep.subr.mxu0 0.0
    %1102 = vmatpush1.msra.mxu0 0.0
    %1103 = vmatprep.subr.mxu0 0.0
    %1104 = vmatpush1.msra.mxu0 0.0
    %1105 = vmatprep.subr.mxu0 0.0
    %1106 = vmatpush1.msra.mxu0 0.0
    %1107 = vmatprep.subr.mxu0 0.0
    %1108 = vmatpush1.msra.mxu0 0.0
    %1109 = vmatprep.subr.mxu0 0.0
    %1110 = vmatpush1.msra.mxu0 0.0
    %1111 = vmatprep.subr.mxu0 0.0
    %1112 = vmatpush1.msra.mxu0 0.0
    %1113 = vmatprep.subr.mxu0 0.0
    %1114 = vmatpush1.msra.mxu0 0.0
    %1115 = vmatprep.subr.mxu0 0.0
    %1116 = vmatpush1.msra.mxu0 0.0
    %1117 = vmatprep.subr.mxu0 0.0
    %1118 = vmatpush1.msra.mxu0 0.0
    %1119 = vmatprep.subr.mxu0 0.0
    %1120 = vmatpush1.msra.mxu0 0.0
    %1121 = vmatprep.subr.mxu0 0.0
    %1122 = vmatpush1.msra.mxu0 0.0
    %1123 = vmatprep.subr.mxu0 0.0
    %1124 = vmatpush1.msra.mxu0 0.0
    %1125 = vmatprep.subr.mxu0 0.0
    %1126 = vmatpush1.msra.mxu0 0.0
    %1127 = vmatprep.subr.mxu0 0.0
    %1128 = vmatpush1.msra.mxu0 0.0
    %1129 = vmatprep.subr.mxu0 0.0
    %1130 = vmatpush1.msra.mxu0 0.0
    %1131 = vmatprep.subr.mxu0 0.0
    %1132 = vmatpush1.msra.mxu0 0.0
    %1133 = vmatprep.subr.mxu0 0.0
    %1134 = vmatpush1.msra.mxu0 0.0
    %1135 = vmatprep.mubr.f32.mxu0 0.0
    %1136 = vmatmul.mubr.f32.gmra.mrb[0].mxu0 %v309
    %v1137 = vpop.f32.mrb[0].mxu0
    %v1138 = vadd.f32 0.0, %v1137
    %v1139 = vpop.f32.mrb[0].mxu0
    %1140 = vdwg.mxu0
    %1141 = vmatprep.subr.mxu0 0.0
    %1142 = vmatpush1.msra.mxu0 %v188
    %1143 = vmatprep.subr.mxu0 0.0
    %1144 = vmatpush1.msra.mxu0 0.0
    %1145 = vmatprep.subr.mxu0 0.0
    %1146 = vmatpush1.msra.mxu0 0.0
    %1147 = vmatprep.subr.mxu0 0.0
    %1148 = vmatpush1.msra.mxu0 0.0
    %1149 = vmatprep.subr.mxu0 0.0
    %1150 = vmatpush1.msra.mxu0 0.0
    %1151 = vmatprep.subr.mxu0 0.0
    %1152 = vmatpush1.msra.mxu0 0.0
    %1153 = vmatprep.subr.mxu0 0.0
    %1154 = vmatpush1.msra.mxu0 0.0
    %1155 = vmatprep.subr.mxu0 0.0
    %1156 = vmatpush1.msra.mxu0 0.0
    %1157 = vmatprep.subr.mxu0 0.0
    %1158 = vmatpush1.msra.mxu0 0.0
    %1159 = vmatprep.subr.mxu0 0.0
    %1160 = vmatpush1.msra.mxu0 0.0
    %1161 = vmatprep.subr.mxu0 0.0
    %1162 = vmatpush1.msra.mxu0 0.0
    %1163 = vmatprep.subr.mxu0 0.0
    %1164 = vmatpush1.msra.mxu0 0.0
    %1165 = vmatprep.subr.mxu0 0.0
    %1166 = vmatpush1.msra.mxu0 0.0
    %1167 = vmatprep.subr.mxu0 0.0
    %1168 = vmatpush1.msra.mxu0 0.0
    %1169 = vmatprep.subr.mxu0 0.0
    %1170 = vmatpush1.msra.mxu0 0.0
    %1171 = vmatprep.subr.mxu0 0.0
    %1172 = vmatpush1.msra.mxu0 0.0
    %1173 = vmatprep.subr.mxu0 0.0
    %1174 = vmatpush1.msra.mxu0 0.0
    %1175 = vmatprep.subr.mxu0 0.0
    %1176 = vmatpush1.msra.mxu0 0.0
    %1177 = vmatprep.subr.mxu0 0.0
    %1178 = vmatpush1.msra.mxu0 0.0
    %1179 = vmatprep.subr.mxu0 0.0
    %1180 = vmatpush1.msra.mxu0 0.0
    %1181 = vmatprep.subr.mxu0 0.0
    %1182 = vmatpush1.msra.mxu0 0.0
    %1183 = vmatprep.subr.mxu0 0.0
    %1184 = vmatpush1.msra.mxu0 0.0
    %1185 = vmatprep.subr.mxu0 0.0
    %1186 = vmatpush1.msra.mxu0 0.0
    %1187 = vmatprep.subr.mxu0 0.0
    %1188 = vmatpush1.msra.mxu0 0.0
    %1189 = vmatprep.subr.mxu0 0.0
    %1190 = vmatpush1.msra.mxu0 0.0
    %1191 = vmatprep.subr.mxu0 0.0
    %1192 = vmatpush1.msra.mxu0 0.0
    %1193 = vmatprep.subr.mxu0 0.0
    %1194 = vmatpush1.msra.mxu0 0.0
    %1195 = vmatprep.subr.mxu0 0.0
    %1196 = vmatpush1.msra.mxu0 0.0
    %1197 = vmatprep.subr.mxu0 0.0
    %1198 = vmatpush1.msra.mxu0 0.0
    %1199 = vmatprep.subr.mxu0 0.0
    %1200 = vmatpush1.msra.mxu0 0.0
    %1201 = vmatprep.subr.mxu0 0.0
    %1202 = vmatpush1.msra.mxu0 0.0
    %1203 = vmatprep.subr.mxu0 0.0
    %1204 = vmatpush1.msra.mxu0 0.0
    %1205 = vmatprep.mubr.f32.mxu0 0.0
    %1206 = vmatmul.mubr.f32.gmra.mrb[0].mxu0 %v999
    %v1207 = vpop.f32.mrb[0].mxu0
    %v1208 = vadd.f32 0.0, %v1207
    %v1209 = vpop.f32.mrb[0].mxu0
    %1210 = vdwg.mxu0
    %1211 = vmatprep.subr.mxu0 0.0
    %1212 = vmatpush1.msra.mxu0 %v189
    %1213 = vmatprep.subr.mxu0 0.0
    %1214 = vmatpush1.msra.mxu0 0.0
    %1215 = vmatprep.subr.mxu0 0.0
    %1216 = vmatpush1.msra.mxu0 0.0
    %1217 = vmatprep.subr.mxu0 0.0
    %1218 = vmatpush1.msra.mxu0 0.0
    %1219 = vmatprep.subr.mxu0 0.0
    %1220 = vmatpush1.msra.mxu0 0.0
    %1221 = vmatprep.subr.mxu0 0.0
    %1222 = vmatpush1.msra.mxu0 0.0
    %1223 = vmatprep.subr.mxu0 0.0
    %1224 = vmatpush1.msra.mxu0 0.0
    %1225 = vmatprep.subr.mxu0 0.0
    %1226 = vmatpush1.msra.mxu0 0.0
    %1227 = vmatprep.subr.mxu0 0.0
    %1228 = vmatpush1.msra.mxu0 0.0
    %1229 = vmatprep.subr.mxu0 0.0
    %1230 = vmatpush1.msra.mxu0 0.0
    %1231 = vmatprep.subr.mxu0 0.0
    %1232 = vmatpush1.msra.mxu0 0.0
    %1233 = vmatprep.subr.mxu0 0.0
    %1234 = vmatpush1.msra.mxu0 0.0
    %1235 = vmatprep.subr.mxu0 0.0
    %1236 = vmatpush1.msra.mxu0 0.0
    %1237 = vmatprep.subr.mxu0 0.0
    %1238 = vmatpush1.msra.mxu0 0.0
    %1239 = vmatprep.subr.mxu0 0.0
    %1240 = vmatpush1.msra.mxu0 0.0
    %1241 = vmatprep.subr.mxu0 0.0
    %1242 = vmatpush1.msra.mxu0 0.0
    %1243 = vmatprep.subr.mxu0 0.0
    %1244 = vmatpush1.msra.mxu0 0.0
    %1245 = vmatprep.subr.mxu0 0.0
    %1246 = vmatpush1.msra.mxu0 0.0
    %1247 = vmatprep.subr.mxu0 0.0
    %1248 = vmatpush1.msra.mxu0 0.0
    %1249 = vmatprep.subr.mxu0 0.0
    %1250 = vmatpush1.msra.mxu0 0.0
    %1251 = vmatprep.subr.mxu0 0.0
    %1252 = vmatpush1.msra.mxu0 0.0
    %1253 = vmatprep.subr.mxu0 0.0
    %1254 = vmatpush1.msra.mxu0 0.0
    %1255 = vmatprep.subr.mxu0 0.0
    %1256 = vmatpush1.msra.mxu0 0.0
    %1257 = vmatprep.subr.mxu0 0.0
    %1258 = vmatpush1.msra.mxu0 0.0
    %1259 = vmatprep.subr.mxu0 0.0
    %1260 = vmatpush1.msra.mxu0 0.0
    %1261 = vmatprep.subr.mxu0 0.0
    %1262 = vmatpush1.msra.mxu0 0.0
    %1263 = vmatprep.subr.mxu0 0.0
    %1264 = vmatpush1.msra.mxu0 0.0
    %1265 = vmatprep.subr.mxu0 0.0
    %1266 = vmatpush1.msra.mxu0 0.0
    %1267 = vmatprep.subr.mxu0 0.0
    %1268 = vmatpush1.msra.mxu0 0.0
    %1269 = vmatprep.subr.mxu0 0.0
    %1270 = vmatpush1.msra.mxu0 0.0
    %1271 = vmatprep.subr.mxu0 0.0
    %1272 = vmatpush1.msra.mxu0 0.0
    %1273 = vmatprep.subr.mxu0 0.0
    %1274 = vmatpush1.msra.mxu0 0.0
    %1275 = vmatprep.mubr.f32.mxu0 0.0
    %1276 = vmatmul.mubr.f32.gmra.mrb[0].mxu0 %v999
    %v1277 = vpop.f32.mrb[0].mxu0
    %v1278 = vadd.f32 0.0, %v1277
    %v1279 = vpop.f32.mrb[0].mxu0
    %1280 = vdwg.mxu0
    %1282 = vset.pattern.permute.xlu0 0
    %1283 = vperm.xlu0 %1282, %v1138
    %v1284 = vpop.permute.xlu0 %1283
    %v1286 = vlaneseq
    %v1287 = vshrl.u32 %v1286, 7
    %v1288 = vsub.s32 0, %v1287
    %v1289 = vrot.slane %v1068, %v1288
    %v1290 = vsub.f32 %v1284, %v1289
    %v1291 = vadd.f32 %v1290, %v531
    %v1292 = vmax.f32 %v1291, 0.0
    %v1294 = vsel %vm190, %v1208, 0
    %1296 = vmatprep.subr.mxu0 0.0
    %1297 = vmatpush1.msra.mxu0 %v1292
    %1298 = vmatprep.subr.mxu0 0.0
    %1299 = vmatpush1.msra.mxu0 0.0
    %1300 = vmatprep.subr.mxu0 0.0
    %1301 = vmatpush1.msra.mxu0 0.0
    %1302 = vmatprep.subr.mxu0 0.0
    %1303 = vmatpush1.msra.mxu0 0.0
    %1304 = vmatprep.subr.mxu0 0.0
    %1305 = vmatpush1.msra.mxu0 0.0
    %1306 = vmatprep.subr.mxu0 0.0
    %1307 = vmatpush1.msra.mxu0 0.0
    %1308 = vmatprep.subr.mxu0 0.0
    %1309 = vmatpush1.msra.mxu0 0.0
    %1310 = vmatprep.subr.mxu0 0.0
    %1311 = vmatpush1.msra.mxu0 0.0
    %1312 = vmatprep.subr.mxu0 0.0
    %1313 = vmatpush1.msra.mxu0 0.0
    %1314 = vmatprep.subr.mxu0 0.0
    %1315 = vmatpush1.msra.mxu0 0.0
    %1316 = vmatprep.subr.mxu0 0.0
    %1317 = vmatpush1.msra.mxu0 0.0
    %1318 = vmatprep.subr.mxu0 0.0
    %1319 = vmatpush1.msra.mxu0 0.0
    %1320 = vmatprep.subr.mxu0 0.0
    %1321 = vmatpush1.msra.mxu0 0.0
    %1322 = vmatprep.subr.mxu0 0.0
    %1323 = vmatpush1.msra.mxu0 0.0
    %1324 = vmatprep.subr.mxu0 0.0
    %1325 = vmatpush1.msra.mxu0 0.0
    %1326 = vmatprep.subr.mxu0 0.0
    %1327 = vmatpush1.msra.mxu0 0.0
    %1328 = vmatprep.subr.mxu0 0.0
    %1329 = vmatpush1.msra.mxu0 0.0
    %1330 = vmatprep.subr.mxu0 0.0
    %1331 = vmatpush1.msra.mxu0 0.0
    %1332 = vmatprep.subr.mxu0 0.0
    %1333 = vmatpush1.msra.mxu0 0.0
    %1334 = vmatprep.subr.mxu0 0.0
    %1335 = vmatpush1.msra.mxu0 0.0
    %1336 = vmatprep.subr.mxu0 0.0
    %1337 = vmatpush1.msra.mxu0 0.0
    %1338 = vmatprep.subr.mxu0 0.0
    %1339 = vmatpush1.msra.mxu0 0.0
    %1340 = vmatprep.subr.mxu0 0.0
    %1341 = vmatpush1.msra.mxu0 0.0
    %1342 = vmatprep.subr.mxu0 0.0
    %1343 = vmatpush1.msra.mxu0 0.0
    %1344 = vmatprep.subr.mxu0 0.0
    %1345 = vmatpush1.msra.mxu0 0.0
    %1346 = vmatprep.subr.mxu0 0.0
    %1347 = vmatpush1.msra.mxu0 0.0
    %1348 = vmatprep.subr.mxu0 0.0
    %1349 = vmatpush1.msra.mxu0 0.0
    %1350 = vmatprep.subr.mxu0 0.0
    %1351 = vmatpush1.msra.mxu0 0.0
    %1352 = vmatprep.subr.mxu0 0.0
    %1353 = vmatpush1.msra.mxu0 0.0
    %1354 = vmatprep.subr.mxu0 0.0
    %1355 = vmatpush1.msra.mxu0 0.0
    %1356 = vmatprep.subr.mxu0 0.0
    %1357 = vmatpush1.msra.mxu0 0.0
    %1358 = vmatprep.subr.mxu0 0.0
    %1359 = vmatpush1.msra.mxu0 0.0
    %1360 = vmatprep.mubr.f32.mxu0 0.0
    %1361 = vmatmul.mubr.f32.gmra.mrb[0].mxu0 %v1294
    %v1362 = vpop.f32.mrb[0].mxu0
    %v1363 = vadd.f32 0.0, %v1362
    %v1364 = vpop.f32.mrb[0].mxu0
    %1365 = vdwg.mxu0
    %v1366 = vmul.f32 %v1363, %v1278
    %v1367 = vsel %vm608, %v1366, 0.0
    %1368 = vadd.xlane.f32.xlu0 %v1367
    %v1369 = vpop.xlane.xlu0 %1368
    %v1370 = vadd.f32 %v1369, 0.0
    %s1371 = vtos %v1370
    %s1372 = sadd.f32 %s993, %s1371
    %vm1373 = vcmp.eq.s32.totalorder %v185, 3
    %v1374 = vsel %vm1373, 1.0, 0.0
    %vm1375 = vcmp.eq.s32.totalorder %v181, 3
    %v1376 = vsel %vm1375, 1.0, 0.0
    %v1378 = vsel %vm190, %v1374, 0
    %1380 = vmatprep.subr.mxu0 0.0
    %1381 = vmatpush1.msra.mxu0 %v127
    %1382 = vmatprep.subr.mxu0 0.0
    %1383 = vmatpush1.msra.mxu0 0.0
    %1384 = vmatprep.subr.mxu0 0.0
    %1385 = vmatpush1.msra.mxu0 0.0
    %1386 = vmatprep.subr.mxu0 0.0
    %1387 = vmatpush1.msra.mxu0 0.0
    %1388 = vmatprep.subr.mxu0 0.0
    %1389 = vmatpush1.msra.mxu0 0.0
    %1390 = vmatprep.subr.mxu0 0.0
    %1391 = vmatpush1.msra.mxu0 0.0
    %1392 = vmatprep.subr.mxu0 0.0
    %1393 = vmatpush1.msra.mxu0 0.0
    %1394 = vmatprep.subr.mxu0 0.0
    %1395 = vmatpush1.msra.mxu0 0.0
    %1396 = vmatprep.subr.mxu0 0.0
    %1397 = vmatpush1.msra.mxu0 0.0
    %1398 = vmatprep.subr.mxu0 0.0
    %1399 = vmatpush1.msra.mxu0 0.0
    %1400 = vmatprep.subr.mxu0 0.0
    %1401 = vmatpush1.msra.mxu0 0.0
    %1402 = vmatprep.subr.mxu0 0.0
    %1403 = vmatpush1.msra.mxu0 0.0
    %1404 = vmatprep.subr.mxu0 0.0
    %1405 = vmatpush1.msra.mxu0 0.0
    %1406 = vmatprep.subr.mxu0 0.0
    %1407 = vmatpush1.msra.mxu0 0.0
    %1408 = vmatprep.subr.mxu0 0.0
    %1409 = vmatpush1.msra.mxu0 0.0
    %1410 = vmatprep.subr.mxu0 0.0
    %1411 = vmatpush1.msra.mxu0 0.0
    %1412 = vmatprep.subr.mxu0 0.0
    %1413 = vmatpush1.msra.mxu0 0.0
    %1414 = vmatprep.subr.mxu0 0.0
    %1415 = vmatpush1.msra.mxu0 0.0
    %1416 = vmatprep.subr.mxu0 0.0
    %1417 = vmatpush1.msra.mxu0 0.0
    %1418 = vmatprep.subr.mxu0 0.0
    %1419 = vmatpush1.msra.mxu0 0.0
    %1420 = vmatprep.subr.mxu0 0.0
    %1421 = vmatpush1.msra.mxu0 0.0
    %1422 = vmatprep.subr.mxu0 0.0
    %1423 = vmatpush1.msra.mxu0 0.0
    %1424 = vmatprep.subr.mxu0 0.0
    %1425 = vmatpush1.msra.mxu0 0.0
    %1426 = vmatprep.subr.mxu0 0.0
    %1427 = vmatpush1.msra.mxu0 0.0
    %1428 = vmatprep.subr.mxu0 0.0
    %1429 = vmatpush1.msra.mxu0 0.0
    %1430 = vmatprep.subr.mxu0 0.0
    %1431 = vmatpush1.msra.mxu0 0.0
    %1432 = vmatprep.subr.mxu0 0.0
    %1433 = vmatpush1.msra.mxu0 0.0
    %1434 = vmatprep.subr.mxu0 0.0
    %1435 = vmatpush1.msra.mxu0 0.0
    %1436 = vmatprep.subr.mxu0 0.0
    %1437 = vmatpush1.msra.mxu0 0.0
    %1438 = vmatprep.subr.mxu0 0.0
    %1439 = vmatpush1.msra.mxu0 0.0
    %1440 = vmatprep.subr.mxu0 0.0
    %1441 = vmatpush1.msra.mxu0 0.0
    %1442 = vmatprep.subr.mxu0 0.0
    %1443 = vmatpush1.msra.mxu0 0.0
    %1444 = vmatprep.mubr.f32.mxu0 0.0
    %1445 = vmatmul.mubr.f32.gmra.mrb[0].mxu0 %v1378
    %v1446 = vpop.f32.mrb[0].mxu0
    %v1447 = vadd.f32 0.0, %v1446
    %v1448 = vpop.f32.mrb[0].mxu0
    %1449 = vdwg.mxu0
    %1450 = vmatprep.subr.mxu0 0.0
    %1451 = vmatpush1.msra.mxu0 %v1376
    %1452 = vmatprep.subr.mxu0 0.0
    %1453 = vmatpush1.msra.mxu0 0.0
    %1454 = vmatprep.subr.mxu0 0.0
    %1455 = vmatpush1.msra.mxu0 0.0
    %1456 = vmatprep.subr.mxu0 0.0
    %1457 = vmatpush1.msra.mxu0 0.0
    %1458 = vmatprep.subr.mxu0 0.0
    %1459 = vmatpush1.msra.mxu0 0.0
    %1460 = vmatprep.subr.mxu0 0.0
    %1461 = vmatpush1.msra.mxu0 0.0
    %1462 = vmatprep.subr.mxu0 0.0
    %1463 = vmatpush1.msra.mxu0 0.0
    %1464 = vmatprep.subr.mxu0 0.0
    %1465 = vmatpush1.msra.mxu0 0.0
    %1466 = vmatprep.subr.mxu0 0.0
    %1467 = vmatpush1.msra.mxu0 0.0
    %1468 = vmatprep.subr.mxu0 0.0
    %1469 = vmatpush1.msra.mxu0 0.0
    %1470 = vmatprep.subr.mxu0 0.0
    %1471 = vmatpush1.msra.mxu0 0.0
    %1472 = vmatprep.subr.mxu0 0.0
    %1473 = vmatpush1.msra.mxu0 0.0
    %1474 = vmatprep.subr.mxu0 0.0
    %1475 = vmatpush1.msra.mxu0 0.0
    %1476 = vmatprep.subr.mxu0 0.0
    %1477 = vmatpush1.msra.mxu0 0.0
    %1478 = vmatprep.subr.mxu0 0.0
    %1479 = vmatpush1.msra.mxu0 0.0
    %1480 = vmatprep.subr.mxu0 0.0
    %1481 = vmatpush1.msra.mxu0 0.0
    %1482 = vmatprep.subr.mxu0 0.0
    %1483 = vmatpush1.msra.mxu0 0.0
    %1484 = vmatprep.subr.mxu0 0.0
    %1485 = vmatpush1.msra.mxu0 0.0
    %1486 = vmatprep.subr.mxu0 0.0
    %1487 = vmatpush1.msra.mxu0 0.0
    %1488 = vmatprep.subr.mxu0 0.0
    %1489 = vmatpush1.msra.mxu0 0.0
    %1490 = vmatprep.subr.mxu0 0.0
    %1491 = vmatpush1.msra.mxu0 0.0
    %1492 = vmatprep.subr.mxu0 0.0
    %1493 = vmatpush1.msra.mxu0 0.0
    %1494 = vmatprep.subr.mxu0 0.0
    %1495 = vmatpush1.msra.mxu0 0.0
    %1496 = vmatprep.subr.mxu0 0.0
    %1497 = vmatpush1.msra.mxu0 0.0
    %1498 = vmatprep.subr.mxu0 0.0
    %1499 = vmatpush1.msra.mxu0 0.0
    %1500 = vmatprep.subr.mxu0 0.0
    %1501 = vmatpush1.msra.mxu0 0.0
    %1502 = vmatprep.subr.mxu0 0.0
    %1503 = vmatpush1.msra.mxu0 0.0
    %1504 = vmatprep.subr.mxu0 0.0
    %1505 = vmatpush1.msra.mxu0 0.0
    %1506 = vmatprep.subr.mxu0 0.0
    %1507 = vmatpush1.msra.mxu0 0.0
    %1508 = vmatprep.subr.mxu0 0.0
    %1509 = vmatpush1.msra.mxu0 0.0
    %1510 = vmatprep.subr.mxu0 0.0
    %1511 = vmatpush1.msra.mxu0 0.0
    %1512 = vmatprep.subr.mxu0 0.0
    %1513 = vmatpush1.msra.mxu0 0.0
    %1514 = vmatprep.mubr.f32.mxu0 0.0
    %1515 = vmatmul.mubr.f32.gmra.mrb[0].mxu0 %v309
    %v1516 = vpop.f32.mrb[0].mxu0
    %v1517 = vadd.f32 0.0, %v1516
    %v1518 = vpop.f32.mrb[0].mxu0
    %1519 = vdwg.mxu0
    %1520 = vmatprep.subr.mxu0 0.0
    %1521 = vmatpush1.msra.mxu0 %v188
    %1522 = vmatprep.subr.mxu0 0.0
    %1523 = vmatpush1.msra.mxu0 0.0
    %1524 = vmatprep.subr.mxu0 0.0
    %1525 = vmatpush1.msra.mxu0 0.0
    %1526 = vmatprep.subr.mxu0 0.0
    %1527 = vmatpush1.msra.mxu0 0.0
    %1528 = vmatprep.subr.mxu0 0.0
    %1529 = vmatpush1.msra.mxu0 0.0
    %1530 = vmatprep.subr.mxu0 0.0
    %1531 = vmatpush1.msra.mxu0 0.0
    %1532 = vmatprep.subr.mxu0 0.0
    %1533 = vmatpush1.msra.mxu0 0.0
    %1534 = vmatprep.subr.mxu0 0.0
    %1535 = vmatpush1.msra.mxu0 0.0
    %1536 = vmatprep.subr.mxu0 0.0
    %1537 = vmatpush1.msra.mxu0 0.0
    %1538 = vmatprep.subr.mxu0 0.0
    %1539 = vmatpush1.msra.mxu0 0.0
    %1540 = vmatprep.subr.mxu0 0.0
    %1541 = vmatpush1.msra.mxu0 0.0
    %1542 = vmatprep.subr.mxu0 0.0
    %1543 = vmatpush1.msra.mxu0 0.0
    %1544 = vmatprep.subr.mxu0 0.0
    %1545 = vmatpush1.msra.mxu0 0.0
    %1546 = vmatprep.subr.mxu0 0.0
    %1547 = vmatpush1.msra.mxu0 0.0
    %1548 = vmatprep.subr.mxu0 0.0
    %1549 = vmatpush1.msra.mxu0 0.0
    %1550 = vmatprep.subr.mxu0 0.0
    %1551 = vmatpush1.msra.mxu0 0.0
    %1552 = vmatprep.subr.mxu0 0.0
    %1553 = vmatpush1.msra.mxu0 0.0
    %1554 = vmatprep.subr.mxu0 0.0
    %1555 = vmatpush1.msra.mxu0 0.0
    %1556 = vmatprep.subr.mxu0 0.0
    %1557 = vmatpush1.msra.mxu0 0.0
    %1558 = vmatprep.subr.mxu0 0.0
    %1559 = vmatpush1.msra.mxu0 0.0
    %1560 = vmatprep.subr.mxu0 0.0
    %1561 = vmatpush1.msra.mxu0 0.0
    %1562 = vmatprep.subr.mxu0 0.0
    %1563 = vmatpush1.msra.mxu0 0.0
    %1564 = vmatprep.subr.mxu0 0.0
    %1565 = vmatpush1.msra.mxu0 0.0
    %1566 = vmatprep.subr.mxu0 0.0
    %1567 = vmatpush1.msra.mxu0 0.0
    %1568 = vmatprep.subr.mxu0 0.0
    %1569 = vmatpush1.msra.mxu0 0.0
    %1570 = vmatprep.subr.mxu0 0.0
    %1571 = vmatpush1.msra.mxu0 0.0
    %1572 = vmatprep.subr.mxu0 0.0
    %1573 = vmatpush1.msra.mxu0 0.0
    %1574 = vmatprep.subr.mxu0 0.0
    %1575 = vmatpush1.msra.mxu0 0.0
    %1576 = vmatprep.subr.mxu0 0.0
    %1577 = vmatpush1.msra.mxu0 0.0
    %1578 = vmatprep.subr.mxu0 0.0
    %1579 = vmatpush1.msra.mxu0 0.0
    %1580 = vmatprep.subr.mxu0 0.0
    %1581 = vmatpush1.msra.mxu0 0.0
    %1582 = vmatprep.subr.mxu0 0.0
    %1583 = vmatpush1.msra.mxu0 0.0
    %1584 = vmatprep.mubr.f32.mxu0 0.0
    %1585 = vmatmul.mubr.f32.gmra.mrb[0].mxu0 %v1378
    %v1586 = vpop.f32.mrb[0].mxu0
    %v1587 = vadd.f32 0.0, %v1586
    %v1588 = vpop.f32.mrb[0].mxu0
    %1589 = vdwg.mxu0
    %1590 = vmatprep.subr.mxu0 0.0
    %1591 = vmatpush1.msra.mxu0 %v189
    %1592 = vmatprep.subr.mxu0 0.0
    %1593 = vmatpush1.msra.mxu0 0.0
    %1594 = vmatprep.subr.mxu0 0.0
    %1595 = vmatpush1.msra.mxu0 0.0
    %1596 = vmatprep.subr.mxu0 0.0
    %1597 = vmatpush1.msra.mxu0 0.0
    %1598 = vmatprep.subr.mxu0 0.0
    %1599 = vmatpush1.msra.mxu0 0.0
    %1600 = vmatprep.subr.mxu0 0.0
    %1601 = vmatpush1.msra.mxu0 0.0
    %1602 = vmatprep.subr.mxu0 0.0
    %1603 = vmatpush1.msra.mxu0 0.0
    %1604 = vmatprep.subr.mxu0 0.0
    %1605 = vmatpush1.msra.mxu0 0.0
    %1606 = vmatprep.subr.mxu0 0.0
    %1607 = vmatpush1.msra.mxu0 0.0
    %1608 = vmatprep.subr.mxu0 0.0
    %1609 = vmatpush1.msra.mxu0 0.0
    %1610 = vmatprep.subr.mxu0 0.0
    %1611 = vmatpush1.msra.mxu0 0.0
    %1612 = vmatprep.subr.mxu0 0.0
    %1613 = vmatpush1.msra.mxu0 0.0
    %1614 = vmatprep.subr.mxu0 0.0
    %1615 = vmatpush1.msra.mxu0 0.0
    %1616 = vmatprep.subr.mxu0 0.0
    %1617 = vmatpush1.msra.mxu0 0.0
    %1618 = vmatprep.subr.mxu0 0.0
    %1619 = vmatpush1.msra.mxu0 0.0
    %1620 = vmatprep.subr.mxu0 0.0
    %1621 = vmatpush1.msra.mxu0 0.0
    %1622 = vmatprep.subr.mxu0 0.0
    %1623 = vmatpush1.msra.mxu0 0.0
    %1624 = vmatprep.subr.mxu0 0.0
    %1625 = vmatpush1.msra.mxu0 0.0
    %1626 = vmatprep.subr.mxu0 0.0
    %1627 = vmatpush1.msra.mxu0 0.0
    %1628 = vmatprep.subr.mxu0 0.0
    %1629 = vmatpush1.msra.mxu0 0.0
    %1630 = vmatprep.subr.mxu0 0.0
    %1631 = vmatpush1.msra.mxu0 0.0
    %1632 = vmatprep.subr.mxu0 0.0
    %1633 = vmatpush1.msra.mxu0 0.0
    %1634 = vmatprep.subr.mxu0 0.0
    %1635 = vmatpush1.msra.mxu0 0.0
    %1636 = vmatprep.subr.mxu0 0.0
    %1637 = vmatpush1.msra.mxu0 0.0
    %1638 = vmatprep.subr.mxu0 0.0
    %1639 = vmatpush1.msra.mxu0 0.0
    %1640 = vmatprep.subr.mxu0 0.0
    %1641 = vmatpush1.msra.mxu0 0.0
    %1642 = vmatprep.subr.mxu0 0.0
    %1643 = vmatpush1.msra.mxu0 0.0
    %1644 = vmatprep.subr.mxu0 0.0
    %1645 = vmatpush1.msra.mxu0 0.0
    %1646 = vmatprep.subr.mxu0 0.0
    %1647 = vmatpush1.msra.mxu0 0.0
    %1648 = vmatprep.subr.mxu0 0.0
    %1649 = vmatpush1.msra.mxu0 0.0
    %1650 = vmatprep.subr.mxu0 0.0
    %1651 = vmatpush1.msra.mxu0 0.0
    %1652 = vmatprep.subr.mxu0 0.0
    %1653 = vmatpush1.msra.mxu0 0.0
    %1654 = vmatprep.mubr.f32.mxu0 0.0
    %1655 = vmatmul.mubr.f32.gmra.mrb[0].mxu0 %v1378
    %v1656 = vpop.f32.mrb[0].mxu0
    %v1657 = vadd.f32 0.0, %v1656
    %v1658 = vpop.f32.mrb[0].mxu0
    %1659 = vdwg.mxu0
    %1661 = vset.pattern.permute.xlu0 0
    %1662 = vperm.xlu0 %1661, %v1517
    %v1663 = vpop.permute.xlu0 %1662
    %v1665 = vlaneseq
    %v1666 = vshrl.u32 %v1665, 7
    %v1667 = vsub.s32 0, %v1666
    %v1668 = vrot.slane %v1447, %v1667
    %v1669 = vsub.f32 %v1663, %v1668
    %v1670 = vadd.f32 %v1669, %v531
    %v1671 = vmax.f32 %v1670, 0.0
    %v1673 = vsel %vm190, %v1587, 0
    %1675 = vmatprep.subr.mxu0 0.0
    %1676 = vmatpush1.msra.mxu0 %v1671
    %1677 = vmatprep.subr.mxu0 0.0
    %1678 = vmatpush1.msra.mxu0 0.0
    %1679 = vmatprep.subr.mxu0 0.0
    %1680 = vmatpush1.msra.mxu0 0.0
    %1681 = vmatprep.subr.mxu0 0.0
    %1682 = vmatpush1.msra.mxu0 0.0
    %1683 = vmatprep.subr.mxu0 0.0
    %1684 = vmatpush1.msra.mxu0 0.0
    %1685 = vmatprep.subr.mxu0 0.0
    %1686 = vmatpush1.msra.mxu0 0.0
    %1687 = vmatprep.subr.mxu0 0.0
    %1688 = vmatpush1.msra.mxu0 0.0
    %1689 = vmatprep.subr.mxu0 0.0
    %1690 = vmatpush1.msra.mxu0 0.0
    %1691 = vmatprep.subr.mxu0 0.0
    %1692 = vmatpush1.msra.mxu0 0.0
    %1693 = vmatprep.subr.mxu0 0.0
    %1694 = vmatpush1.msra.mxu0 0.0
    %1695 = vmatprep.subr.mxu0 0.0
    %1696 = vmatpush1.msra.mxu0 0.0
    %1697 = vmatprep.subr.mxu0 0.0
    %1698 = vmatpush1.msra.mxu0 0.0
    %1699 = vmatprep.subr.mxu0 0.0
    %1700 = vmatpush1.msra.mxu0 0.0
    %1701 = vmatprep.subr.mxu0 0.0
    %1702 = vmatpush1.msra.mxu0 0.0
    %1703 = vmatprep.subr.mxu0 0.0
    %1704 = vmatpush1.msra.mxu0 0.0
    %1705 = vmatprep.subr.mxu0 0.0
    %1706 = vmatpush1.msra.mxu0 0.0
    %1707 = vmatprep.subr.mxu0 0.0
    %1708 = vmatpush1.msra.mxu0 0.0
    %1709 = vmatprep.subr.mxu0 0.0
    %1710 = vmatpush1.msra.mxu0 0.0
    %1711 = vmatprep.subr.mxu0 0.0
    %1712 = vmatpush1.msra.mxu0 0.0
    %1713 = vmatprep.subr.mxu0 0.0
    %1714 = vmatpush1.msra.mxu0 0.0
    %1715 = vmatprep.subr.mxu0 0.0
    %1716 = vmatpush1.msra.mxu0 0.0
    %1717 = vmatprep.subr.mxu0 0.0
    %1718 = vmatpush1.msra.mxu0 0.0
    %1719 = vmatprep.subr.mxu0 0.0
    %1720 = vmatpush1.msra.mxu0 0.0
    %1721 = vmatprep.subr.mxu0 0.0
    %1722 = vmatpush1.msra.mxu0 0.0
    %1723 = vmatprep.subr.mxu0 0.0
    %1724 = vmatpush1.msra.mxu0 0.0
    %1725 = vmatprep.subr.mxu0 0.0
    %1726 = vmatpush1.msra.mxu0 0.0
    %1727 = vmatprep.subr.mxu0 0.0
    %1728 = vmatpush1.msra.mxu0 0.0
    %1729 = vmatprep.subr.mxu0 0.0
    %1730 = vmatpush1.msra.mxu0 0.0
    %1731 = vmatprep.subr.mxu0 0.0
    %1732 = vmatpush1.msra.mxu0 0.0
    %1733 = vmatprep.subr.mxu0 0.0
    %1734 = vmatpush1.msra.mxu0 0.0
    %1735 = vmatprep.subr.mxu0 0.0
    %1736 = vmatpush1.msra.mxu0 0.0
    %1737 = vmatprep.subr.mxu0 0.0
    %1738 = vmatpush1.msra.mxu0 0.0
    %1739 = vmatprep.mubr.f32.mxu0 0.0
    %1740 = vmatmul.mubr.f32.gmra.mrb[0].mxu0 %v1673
    %v1741 = vpop.f32.mrb[0].mxu0
    %v1742 = vadd.f32 0.0, %v1741
    %v1743 = vpop.f32.mrb[0].mxu0
    %1744 = vdwg.mxu0
    %v1745 = vmul.f32 %v1742, %v1657
    %v1746 = vsel %vm608, %v1745, 0.0
    %1747 = vadd.xlane.f32.xlu0 %v1746
    %v1748 = vpop.xlane.xlu0 %1747
    %v1749 = vadd.f32 %v1748, 0.0
    %s1750 = vtos %v1749
    %s1751 = sadd.f32 %s1372, %s1750
    %vm1752 = vcmp.eq.s32.totalorder %v185, 4
    %v1753 = vsel %vm1752, 1.0, 0.0
    %vm1754 = vcmp.eq.s32.totalorder %v181, 4
    %v1755 = vsel %vm1754, 1.0, 0.0
    %v1757 = vsel %vm190, %v1753, 0
    %1759 = vmatprep.subr.mxu0 0.0
    %1760 = vmatpush1.msra.mxu0 %v127
    %1761 = vmatprep.subr.mxu0 0.0
    %1762 = vmatpush1.msra.mxu0 0.0
    %1763 = vmatprep.subr.mxu0 0.0
    %1764 = vmatpush1.msra.mxu0 0.0
    %1765 = vmatprep.subr.mxu0 0.0
    %1766 = vmatpush1.msra.mxu0 0.0
    %1767 = vmatprep.subr.mxu0 0.0
    %1768 = vmatpush1.msra.mxu0 0.0
    %1769 = vmatprep.subr.mxu0 0.0
    %1770 = vmatpush1.msra.mxu0 0.0
    %1771 = vmatprep.subr.mxu0 0.0
    %1772 = vmatpush1.msra.mxu0 0.0
    %1773 = vmatprep.subr.mxu0 0.0
    %1774 = vmatpush1.msra.mxu0 0.0
    %1775 = vmatprep.subr.mxu0 0.0
    %1776 = vmatpush1.msra.mxu0 0.0
    %1777 = vmatprep.subr.mxu0 0.0
    %1778 = vmatpush1.msra.mxu0 0.0
    %1779 = vmatprep.subr.mxu0 0.0
    %1780 = vmatpush1.msra.mxu0 0.0
    %1781 = vmatprep.subr.mxu0 0.0
    %1782 = vmatpush1.msra.mxu0 0.0
    %1783 = vmatprep.subr.mxu0 0.0
    %1784 = vmatpush1.msra.mxu0 0.0
    %1785 = vmatprep.subr.mxu0 0.0
    %1786 = vmatpush1.msra.mxu0 0.0
    %1787 = vmatprep.subr.mxu0 0.0
    %1788 = vmatpush1.msra.mxu0 0.0
    %1789 = vmatprep.subr.mxu0 0.0
    %1790 = vmatpush1.msra.mxu0 0.0
    %1791 = vmatprep.subr.mxu0 0.0
    %1792 = vmatpush1.msra.mxu0 0.0
    %1793 = vmatprep.subr.mxu0 0.0
    %1794 = vmatpush1.msra.mxu0 0.0
    %1795 = vmatprep.subr.mxu0 0.0
    %1796 = vmatpush1.msra.mxu0 0.0
    %1797 = vmatprep.subr.mxu0 0.0
    %1798 = vmatpush1.msra.mxu0 0.0
    %1799 = vmatprep.subr.mxu0 0.0
    %1800 = vmatpush1.msra.mxu0 0.0
    %1801 = vmatprep.subr.mxu0 0.0
    %1802 = vmatpush1.msra.mxu0 0.0
    %1803 = vmatprep.subr.mxu0 0.0
    %1804 = vmatpush1.msra.mxu0 0.0
    %1805 = vmatprep.subr.mxu0 0.0
    %1806 = vmatpush1.msra.mxu0 0.0
    %1807 = vmatprep.subr.mxu0 0.0
    %1808 = vmatpush1.msra.mxu0 0.0
    %1809 = vmatprep.subr.mxu0 0.0
    %1810 = vmatpush1.msra.mxu0 0.0
    %1811 = vmatprep.subr.mxu0 0.0
    %1812 = vmatpush1.msra.mxu0 0.0
    %1813 = vmatprep.subr.mxu0 0.0
    %1814 = vmatpush1.msra.mxu0 0.0
    %1815 = vmatprep.subr.mxu0 0.0
    %1816 = vmatpush1.msra.mxu0 0.0
    %1817 = vmatprep.subr.mxu0 0.0
    %1818 = vmatpush1.msra.mxu0 0.0
    %1819 = vmatprep.subr.mxu0 0.0
    %1820 = vmatpush1.msra.mxu0 0.0
    %1821 = vmatprep.subr.mxu0 0.0
    %1822 = vmatpush1.msra.mxu0 0.0
    %1823 = vmatprep.mubr.f32.mxu0 0.0
    %1824 = vmatmul.mubr.f32.gmra.mrb[0].mxu0 %v1757
    %v1825 = vpop.f32.mrb[0].mxu0
    %v1826 = vadd.f32 0.0, %v1825
    %v1827 = vpop.f32.mrb[0].mxu0
    %1828 = vdwg.mxu0
    %1829 = vmatprep.subr.mxu0 0.0
    %1830 = vmatpush1.msra.mxu0 %v1755
    %1831 = vmatprep.subr.mxu0 0.0
    %1832 = vmatpush1.msra.mxu0 0.0
    %1833 = vmatprep.subr.mxu0 0.0
    %1834 = vmatpush1.msra.mxu0 0.0
    %1835 = vmatprep.subr.mxu0 0.0
    %1836 = vmatpush1.msra.mxu0 0.0
    %1837 = vmatprep.subr.mxu0 0.0
    %1838 = vmatpush1.msra.mxu0 0.0
    %1839 = vmatprep.subr.mxu0 0.0
    %1840 = vmatpush1.msra.mxu0 0.0
    %1841 = vmatprep.subr.mxu0 0.0
    %1842 = vmatpush1.msra.mxu0 0.0
    %1843 = vmatprep.subr.mxu0 0.0
    %1844 = vmatpush1.msra.mxu0 0.0
    %1845 = vmatprep.subr.mxu0 0.0
    %1846 = vmatpush1.msra.mxu0 0.0
    %1847 = vmatprep.subr.mxu0 0.0
    %1848 = vmatpush1.msra.mxu0 0.0
    %1849 = vmatprep.subr.mxu0 0.0
    %1850 = vmatpush1.msra.mxu0 0.0
    %1851 = vmatprep.subr.mxu0 0.0
    %1852 = vmatpush1.msra.mxu0 0.0
    %1853 = vmatprep.subr.mxu0 0.0
    %1854 = vmatpush1.msra.mxu0 0.0
    %1855 = vmatprep.subr.mxu0 0.0
    %1856 = vmatpush1.msra.mxu0 0.0
    %1857 = vmatprep.subr.mxu0 0.0
    %1858 = vmatpush1.msra.mxu0 0.0
    %1859 = vmatprep.subr.mxu0 0.0
    %1860 = vmatpush1.msra.mxu0 0.0
    %1861 = vmatprep.subr.mxu0 0.0
    %1862 = vmatpush1.msra.mxu0 0.0
    %1863 = vmatprep.subr.mxu0 0.0
    %1864 = vmatpush1.msra.mxu0 0.0
    %1865 = vmatprep.subr.mxu0 0.0
    %1866 = vmatpush1.msra.mxu0 0.0
    %1867 = vmatprep.subr.mxu0 0.0
    %1868 = vmatpush1.msra.mxu0 0.0
    %1869 = vmatprep.subr.mxu0 0.0
    %1870 = vmatpush1.msra.mxu0 0.0
    %1871 = vmatprep.subr.mxu0 0.0
    %1872 = vmatpush1.msra.mxu0 0.0
    %1873 = vmatprep.subr.mxu0 0.0
    %1874 = vmatpush1.msra.mxu0 0.0
    %1875 = vmatprep.subr.mxu0 0.0
    %1876 = vmatpush1.msra.mxu0 0.0
    %1877 = vmatprep.subr.mxu0 0.0
    %1878 = vmatpush1.msra.mxu0 0.0
    %1879 = vmatprep.subr.mxu0 0.0
    %1880 = vmatpush1.msra.mxu0 0.0
    %1881 = vmatprep.subr.mxu0 0.0
    %1882 = vmatpush1.msra.mxu0 0.0
    %1883 = vmatprep.subr.mxu0 0.0
    %1884 = vmatpush1.msra.mxu0 0.0
    %1885 = vmatprep.subr.mxu0 0.0
    %1886 = vmatpush1.msra.mxu0 0.0
    %1887 = vmatprep.subr.mxu0 0.0
    %1888 = vmatpush1.msra.mxu0 0.0
    %1889 = vmatprep.subr.mxu0 0.0
    %1890 = vmatpush1.msra.mxu0 0.0
    %1891 = vmatprep.subr.mxu0 0.0
    %1892 = vmatpush1.msra.mxu0 0.0
    %1893 = vmatprep.mubr.f32.mxu0 0.0
    %1894 = vmatmul.mubr.f32.gmra.mrb[0].mxu0 %v309
    %v1895 = vpop.f32.mrb[0].mxu0
    %v1896 = vadd.f32 0.0, %v1895
    %v1897 = vpop.f32.mrb[0].mxu0
    %1898 = vdwg.mxu0
    %1899 = vmatprep.subr.mxu0 0.0
    %1900 = vmatpush1.msra.mxu0 %v188
    %1901 = vmatprep.subr.mxu0 0.0
    %1902 = vmatpush1.msra.mxu0 0.0
    %1903 = vmatprep.subr.mxu0 0.0
    %1904 = vmatpush1.msra.mxu0 0.0
    %1905 = vmatprep.subr.mxu0 0.0
    %1906 = vmatpush1.msra.mxu0 0.0
    %1907 = vmatprep.subr.mxu0 0.0
    %1908 = vmatpush1.msra.mxu0 0.0
    %1909 = vmatprep.subr.mxu0 0.0
    %1910 = vmatpush1.msra.mxu0 0.0
    %1911 = vmatprep.subr.mxu0 0.0
    %1912 = vmatpush1.msra.mxu0 0.0
    %1913 = vmatprep.subr.mxu0 0.0
    %1914 = vmatpush1.msra.mxu0 0.0
    %1915 = vmatprep.subr.mxu0 0.0
    %1916 = vmatpush1.msra.mxu0 0.0
    %1917 = vmatprep.subr.mxu0 0.0
    %1918 = vmatpush1.msra.mxu0 0.0
    %1919 = vmatprep.subr.mxu0 0.0
    %1920 = vmatpush1.msra.mxu0 0.0
    %1921 = vmatprep.subr.mxu0 0.0
    %1922 = vmatpush1.msra.mxu0 0.0
    %1923 = vmatprep.subr.mxu0 0.0
    %1924 = vmatpush1.msra.mxu0 0.0
    %1925 = vmatprep.subr.mxu0 0.0
    %1926 = vmatpush1.msra.mxu0 0.0
    %1927 = vmatprep.subr.mxu0 0.0
    %1928 = vmatpush1.msra.mxu0 0.0
    %1929 = vmatprep.subr.mxu0 0.0
    %1930 = vmatpush1.msra.mxu0 0.0
    %1931 = vmatprep.subr.mxu0 0.0
    %1932 = vmatpush1.msra.mxu0 0.0
    %1933 = vmatprep.subr.mxu0 0.0
    %1934 = vmatpush1.msra.mxu0 0.0
    %1935 = vmatprep.subr.mxu0 0.0
    %1936 = vmatpush1.msra.mxu0 0.0
    %1937 = vmatprep.subr.mxu0 0.0
    %1938 = vmatpush1.msra.mxu0 0.0
    %1939 = vmatprep.subr.mxu0 0.0
    %1940 = vmatpush1.msra.mxu0 0.0
    %1941 = vmatprep.subr.mxu0 0.0
    %1942 = vmatpush1.msra.mxu0 0.0
    %1943 = vmatprep.subr.mxu0 0.0
    %1944 = vmatpush1.msra.mxu0 0.0
    %1945 = vmatprep.subr.mxu0 0.0
    %1946 = vmatpush1.msra.mxu0 0.0
    %1947 = vmatprep.subr.mxu0 0.0
    %1948 = vmatpush1.msra.mxu0 0.0
    %1949 = vmatprep.subr.mxu0 0.0
    %1950 = vmatpush1.msra.mxu0 0.0
    %1951 = vmatprep.subr.mxu0 0.0
    %1952 = vmatpush1.msra.mxu0 0.0
    %1953 = vmatprep.subr.mxu0 0.0
    %1954 = vmatpush1.msra.mxu0 0.0
    %1955 = vmatprep.subr.mxu0 0.0
    %1956 = vmatpush1.msra.mxu0 0.0
    %1957 = vmatprep.subr.mxu0 0.0
    %1958 = vmatpush1.msra.mxu0 0.0
    %1959 = vmatprep.subr.mxu0 0.0
    %1960 = vmatpush1.msra.mxu0 0.0
    %1961 = vmatprep.subr.mxu0 0.0
    %1962 = vmatpush1.msra.mxu0 0.0
    %1963 = vmatprep.mubr.f32.mxu0 0.0
    %1964 = vmatmul.mubr.f32.gmra.mrb[0].mxu0 %v1757
    %v1965 = vpop.f32.mrb[0].mxu0
    %v1966 = vadd.f32 0.0, %v1965
    %v1967 = vpop.f32.mrb[0].mxu0
    %1968 = vdwg.mxu0
    %1969 = vmatprep.subr.mxu0 0.0
    %1970 = vmatpush1.msra.mxu0 %v189
    %1971 = vmatprep.subr.mxu0 0.0
    %1972 = vmatpush1.msra.mxu0 0.0
    %1973 = vmatprep.subr.mxu0 0.0
    %1974 = vmatpush1.msra.mxu0 0.0
    %1975 = vmatprep.subr.mxu0 0.0
    %1976 = vmatpush1.msra.mxu0 0.0
    %1977 = vmatprep.subr.mxu0 0.0
    %1978 = vmatpush1.msra.mxu0 0.0
    %1979 = vmatprep.subr.mxu0 0.0
    %1980 = vmatpush1.msra.mxu0 0.0
    %1981 = vmatprep.subr.mxu0 0.0
    %1982 = vmatpush1.msra.mxu0 0.0
    %1983 = vmatprep.subr.mxu0 0.0
    %1984 = vmatpush1.msra.mxu0 0.0
    %1985 = vmatprep.subr.mxu0 0.0
    %1986 = vmatpush1.msra.mxu0 0.0
    %1987 = vmatprep.subr.mxu0 0.0
    %1988 = vmatpush1.msra.mxu0 0.0
    %1989 = vmatprep.subr.mxu0 0.0
    %1990 = vmatpush1.msra.mxu0 0.0
    %1991 = vmatprep.subr.mxu0 0.0
    %1992 = vmatpush1.msra.mxu0 0.0
    %1993 = vmatprep.subr.mxu0 0.0
    %1994 = vmatpush1.msra.mxu0 0.0
    %1995 = vmatprep.subr.mxu0 0.0
    %1996 = vmatpush1.msra.mxu0 0.0
    %1997 = vmatprep.subr.mxu0 0.0
    %1998 = vmatpush1.msra.mxu0 0.0
    %1999 = vmatprep.subr.mxu0 0.0
    %2000 = vmatpush1.msra.mxu0 0.0
    %2001 = vmatprep.subr.mxu0 0.0
    %2002 = vmatpush1.msra.mxu0 0.0
    %2003 = vmatprep.subr.mxu0 0.0
    %2004 = vmatpush1.msra.mxu0 0.0
    %2005 = vmatprep.subr.mxu0 0.0
    %2006 = vmatpush1.msra.mxu0 0.0
    %2007 = vmatprep.subr.mxu0 0.0
    %2008 = vmatpush1.msra.mxu0 0.0
    %2009 = vmatprep.subr.mxu0 0.0
    %2010 = vmatpush1.msra.mxu0 0.0
    %2011 = vmatprep.subr.mxu0 0.0
    %2012 = vmatpush1.msra.mxu0 0.0
    %2013 = vmatprep.subr.mxu0 0.0
    %2014 = vmatpush1.msra.mxu0 0.0
    %2015 = vmatprep.subr.mxu0 0.0
    %2016 = vmatpush1.msra.mxu0 0.0
    %2017 = vmatprep.subr.mxu0 0.0
    %2018 = vmatpush1.msra.mxu0 0.0
    %2019 = vmatprep.subr.mxu0 0.0
    %2020 = vmatpush1.msra.mxu0 0.0
    %2021 = vmatprep.subr.mxu0 0.0
    %2022 = vmatpush1.msra.mxu0 0.0
    %2023 = vmatprep.subr.mxu0 0.0
    %2024 = vmatpush1.msra.mxu0 0.0
    %2025 = vmatprep.subr.mxu0 0.0
    %2026 = vmatpush1.msra.mxu0 0.0
    %2027 = vmatprep.subr.mxu0 0.0
    %2028 = vmatpush1.msra.mxu0 0.0
    %2029 = vmatprep.subr.mxu0 0.0
    %2030 = vmatpush1.msra.mxu0 0.0
    %2031 = vmatprep.subr.mxu0 0.0
    %2032 = vmatpush1.msra.mxu0 0.0
    %2033 = vmatprep.mubr.f32.mxu0 0.0
    %2034 = vmatmul.mubr.f32.gmra.mrb[0].mxu0 %v1757
    %v2035 = vpop.f32.mrb[0].mxu0
    %v2036 = vadd.f32 0.0, %v2035
    %v2037 = vpop.f32.mrb[0].mxu0
    %2038 = vdwg.mxu0
    %2040 = vset.pattern.permute.xlu0 0
    %2041 = vperm.xlu0 %2040, %v1896
    %v2042 = vpop.permute.xlu0 %2041
    %v2044 = vlaneseq
    %v2045 = vshrl.u32 %v2044, 7
    %v2046 = vsub.s32 0, %v2045
    %v2047 = vrot.slane %v1826, %v2046
    %v2048 = vsub.f32 %v2042, %v2047
    %v2049 = vadd.f32 %v2048, %v531
    %v2050 = vmax.f32 %v2049, 0.0
    %v2052 = vsel %vm190, %v1966, 0
    %2054 = vmatprep.subr.mxu0 0.0
    %2055 = vmatpush1.msra.mxu0 %v2050
    %2056 = vmatprep.subr.mxu0 0.0
    %2057 = vmatpush1.msra.mxu0 0.0
    %2058 = vmatprep.subr.mxu0 0.0
    %2059 = vmatpush1.msra.mxu0 0.0
    %2060 = vmatprep.subr.mxu0 0.0
    %2061 = vmatpush1.msra.mxu0 0.0
    %2062 = vmatprep.subr.mxu0 0.0
    %2063 = vmatpush1.msra.mxu0 0.0
    %2064 = vmatprep.subr.mxu0 0.0
    %2065 = vmatpush1.msra.mxu0 0.0
    %2066 = vmatprep.subr.mxu0 0.0
    %2067 = vmatpush1.msra.mxu0 0.0
    %2068 = vmatprep.subr.mxu0 0.0
    %2069 = vmatpush1.msra.mxu0 0.0
    %2070 = vmatprep.subr.mxu0 0.0
    %2071 = vmatpush1.msra.mxu0 0.0
    %2072 = vmatprep.subr.mxu0 0.0
    %2073 = vmatpush1.msra.mxu0 0.0
    %2074 = vmatprep.subr.mxu0 0.0
    %2075 = vmatpush1.msra.mxu0 0.0
    %2076 = vmatprep.subr.mxu0 0.0
    %2077 = vmatpush1.msra.mxu0 0.0
    %2078 = vmatprep.subr.mxu0 0.0
    %2079 = vmatpush1.msra.mxu0 0.0
    %2080 = vmatprep.subr.mxu0 0.0
    %2081 = vmatpush1.msra.mxu0 0.0
    %2082 = vmatprep.subr.mxu0 0.0
    %2083 = vmatpush1.msra.mxu0 0.0
    %2084 = vmatprep.subr.mxu0 0.0
    %2085 = vmatpush1.msra.mxu0 0.0
    %2086 = vmatprep.subr.mxu0 0.0
    %2087 = vmatpush1.msra.mxu0 0.0
    %2088 = vmatprep.subr.mxu0 0.0
    %2089 = vmatpush1.msra.mxu0 0.0
    %2090 = vmatprep.subr.mxu0 0.0
    %2091 = vmatpush1.msra.mxu0 0.0
    %2092 = vmatprep.subr.mxu0 0.0
    %2093 = vmatpush1.msra.mxu0 0.0
    %2094 = vmatprep.subr.mxu0 0.0
    %2095 = vmatpush1.msra.mxu0 0.0
    %2096 = vmatprep.subr.mxu0 0.0
    %2097 = vmatpush1.msra.mxu0 0.0
    %2098 = vmatprep.subr.mxu0 0.0
    %2099 = vmatpush1.msra.mxu0 0.0
    %2100 = vmatprep.subr.mxu0 0.0
    %2101 = vmatpush1.msra.mxu0 0.0
    %2102 = vmatprep.subr.mxu0 0.0
    %2103 = vmatpush1.msra.mxu0 0.0
    %2104 = vmatprep.subr.mxu0 0.0
    %2105 = vmatpush1.msra.mxu0 0.0
    %2106 = vmatprep.subr.mxu0 0.0
    %2107 = vmatpush1.msra.mxu0 0.0
    %2108 = vmatprep.subr.mxu0 0.0
    %2109 = vmatpush1.msra.mxu0 0.0
    %2110 = vmatprep.subr.mxu0 0.0
    %2111 = vmatpush1.msra.mxu0 0.0
    %2112 = vmatprep.subr.mxu0 0.0
    %2113 = vmatpush1.msra.mxu0 0.0
    %2114 = vmatprep.subr.mxu0 0.0
    %2115 = vmatpush1.msra.mxu0 0.0
    %2116 = vmatprep.subr.mxu0 0.0
    %2117 = vmatpush1.msra.mxu0 0.0
    %2118 = vmatprep.mubr.f32.mxu0 0.0
    %2119 = vmatmul.mubr.f32.gmra.mrb[0].mxu0 %v2052
    %v2120 = vpop.f32.mrb[0].mxu0
    %v2121 = vadd.f32 0.0, %v2120
    %v2122 = vpop.f32.mrb[0].mxu0
    %2123 = vdwg.mxu0
    %v2124 = vmul.f32 %v2121, %v2036
    %v2125 = vsel %vm608, %v2124, 0.0
    %2126 = vadd.xlane.f32.xlu0 %v2125
    %v2127 = vpop.xlane.xlu0 %2126
    %v2128 = vadd.f32 %v2127, 0.0
    %s2129 = vtos %v2128
    %s2130 = sadd.f32 %s1751, %s2129
    %vm2131 = vcmp.eq.s32.totalorder %v185, 5
    %v2132 = vsel %vm2131, 1.0, 0.0
    %vm2133 = vcmp.eq.s32.totalorder %v181, 5
    %v2134 = vsel %vm2133, 1.0, 0.0
    %v2136 = vsel %vm190, %v2132, 0
    %2138 = vmatprep.subr.mxu0 0.0
    %2139 = vmatpush1.msra.mxu0 %v127
    %2140 = vmatprep.subr.mxu0 0.0
    %2141 = vmatpush1.msra.mxu0 0.0
    %2142 = vmatprep.subr.mxu0 0.0
    %2143 = vmatpush1.msra.mxu0 0.0
    %2144 = vmatprep.subr.mxu0 0.0
    %2145 = vmatpush1.msra.mxu0 0.0
    %2146 = vmatprep.subr.mxu0 0.0
    %2147 = vmatpush1.msra.mxu0 0.0
    %2148 = vmatprep.subr.mxu0 0.0
    %2149 = vmatpush1.msra.mxu0 0.0
    %2150 = vmatprep.subr.mxu0 0.0
    %2151 = vmatpush1.msra.mxu0 0.0
    %2152 = vmatprep.subr.mxu0 0.0
    %2153 = vmatpush1.msra.mxu0 0.0
    %2154 = vmatprep.subr.mxu0 0.0
    %2155 = vmatpush1.msra.mxu0 0.0
    %2156 = vmatprep.subr.mxu0 0.0
    %2157 = vmatpush1.msra.mxu0 0.0
    %2158 = vmatprep.subr.mxu0 0.0
    %2159 = vmatpush1.msra.mxu0 0.0
    %2160 = vmatprep.subr.mxu0 0.0
    %2161 = vmatpush1.msra.mxu0 0.0
    %2162 = vmatprep.subr.mxu0 0.0
    %2163 = vmatpush1.msra.mxu0 0.0
    %2164 = vmatprep.subr.mxu0 0.0
    %2165 = vmatpush1.msra.mxu0 0.0
    %2166 = vmatprep.subr.mxu0 0.0
    %2167 = vmatpush1.msra.mxu0 0.0
    %2168 = vmatprep.subr.mxu0 0.0
    %2169 = vmatpush1.msra.mxu0 0.0
    %2170 = vmatprep.subr.mxu0 0.0
    %2171 = vmatpush1.msra.mxu0 0.0
    %2172 = vmatprep.subr.mxu0 0.0
    %2173 = vmatpush1.msra.mxu0 0.0
    %2174 = vmatprep.subr.mxu0 0.0
    %2175 = vmatpush1.msra.mxu0 0.0
    %2176 = vmatprep.subr.mxu0 0.0
    %2177 = vmatpush1.msra.mxu0 0.0
    %2178 = vmatprep.subr.mxu0 0.0
    %2179 = vmatpush1.msra.mxu0 0.0
    %2180 = vmatprep.subr.mxu0 0.0
    %2181 = vmatpush1.msra.mxu0 0.0
    %2182 = vmatprep.subr.mxu0 0.0
    %2183 = vmatpush1.msra.mxu0 0.0
    %2184 = vmatprep.subr.mxu0 0.0
    %2185 = vmatpush1.msra.mxu0 0.0
    %2186 = vmatprep.subr.mxu0 0.0
    %2187 = vmatpush1.msra.mxu0 0.0
    %2188 = vmatprep.subr.mxu0 0.0
    %2189 = vmatpush1.msra.mxu0 0.0
    %2190 = vmatprep.subr.mxu0 0.0
    %2191 = vmatpush1.msra.mxu0 0.0
    %2192 = vmatprep.subr.mxu0 0.0
    %2193 = vmatpush1.msra.mxu0 0.0
    %2194 = vmatprep.subr.mxu0 0.0
    %2195 = vmatpush1.msra.mxu0 0.0
    %2196 = vmatprep.subr.mxu0 0.0
    %2197 = vmatpush1.msra.mxu0 0.0
    %2198 = vmatprep.subr.mxu0 0.0
    %2199 = vmatpush1.msra.mxu0 0.0
    %2200 = vmatprep.subr.mxu0 0.0
    %2201 = vmatpush1.msra.mxu0 0.0
    %2202 = vmatprep.mubr.f32.mxu0 0.0
    %2203 = vmatmul.mubr.f32.gmra.mrb[0].mxu0 %v2136
    %v2204 = vpop.f32.mrb[0].mxu0
    %v2205 = vadd.f32 0.0, %v2204
    %v2206 = vpop.f32.mrb[0].mxu0
    %2207 = vdwg.mxu0
    %2208 = vmatprep.subr.mxu0 0.0
    %2209 = vmatpush1.msra.mxu0 %v2134
    %2210 = vmatprep.subr.mxu0 0.0
    %2211 = vmatpush1.msra.mxu0 0.0
    %2212 = vmatprep.subr.mxu0 0.0
    %2213 = vmatpush1.msra.mxu0 0.0
    %2214 = vmatprep.subr.mxu0 0.0
    %2215 = vmatpush1.msra.mxu0 0.0
    %2216 = vmatprep.subr.mxu0 0.0
    %2217 = vmatpush1.msra.mxu0 0.0
    %2218 = vmatprep.subr.mxu0 0.0
    %2219 = vmatpush1.msra.mxu0 0.0
    %2220 = vmatprep.subr.mxu0 0.0
    %2221 = vmatpush1.msra.mxu0 0.0
    %2222 = vmatprep.subr.mxu0 0.0
    %2223 = vmatpush1.msra.mxu0 0.0
    %2224 = vmatprep.subr.mxu0 0.0
    %2225 = vmatpush1.msra.mxu0 0.0
    %2226 = vmatprep.subr.mxu0 0.0
    %2227 = vmatpush1.msra.mxu0 0.0
    %2228 = vmatprep.subr.mxu0 0.0
    %2229 = vmatpush1.msra.mxu0 0.0
    %2230 = vmatprep.subr.mxu0 0.0
    %2231 = vmatpush1.msra.mxu0 0.0
    %2232 = vmatprep.subr.mxu0 0.0
    %2233 = vmatpush1.msra.mxu0 0.0
    %2234 = vmatprep.subr.mxu0 0.0
    %2235 = vmatpush1.msra.mxu0 0.0
    %2236 = vmatprep.subr.mxu0 0.0
    %2237 = vmatpush1.msra.mxu0 0.0
    %2238 = vmatprep.subr.mxu0 0.0
    %2239 = vmatpush1.msra.mxu0 0.0
    %2240 = vmatprep.subr.mxu0 0.0
    %2241 = vmatpush1.msra.mxu0 0.0
    %2242 = vmatprep.subr.mxu0 0.0
    %2243 = vmatpush1.msra.mxu0 0.0
    %2244 = vmatprep.subr.mxu0 0.0
    %2245 = vmatpush1.msra.mxu0 0.0
    %2246 = vmatprep.subr.mxu0 0.0
    %2247 = vmatpush1.msra.mxu0 0.0
    %2248 = vmatprep.subr.mxu0 0.0
    %2249 = vmatpush1.msra.mxu0 0.0
    %2250 = vmatprep.subr.mxu0 0.0
    %2251 = vmatpush1.msra.mxu0 0.0
    %2252 = vmatprep.subr.mxu0 0.0
    %2253 = vmatpush1.msra.mxu0 0.0
    %2254 = vmatprep.subr.mxu0 0.0
    %2255 = vmatpush1.msra.mxu0 0.0
    %2256 = vmatprep.subr.mxu0 0.0
    %2257 = vmatpush1.msra.mxu0 0.0
    %2258 = vmatprep.subr.mxu0 0.0
    %2259 = vmatpush1.msra.mxu0 0.0
    %2260 = vmatprep.subr.mxu0 0.0
    %2261 = vmatpush1.msra.mxu0 0.0
    %2262 = vmatprep.subr.mxu0 0.0
    %2263 = vmatpush1.msra.mxu0 0.0
    %2264 = vmatprep.subr.mxu0 0.0
    %2265 = vmatpush1.msra.mxu0 0.0
    %2266 = vmatprep.subr.mxu0 0.0
    %2267 = vmatpush1.msra.mxu0 0.0
    %2268 = vmatprep.subr.mxu0 0.0
    %2269 = vmatpush1.msra.mxu0 0.0
    %2270 = vmatprep.subr.mxu0 0.0
    %2271 = vmatpush1.msra.mxu0 0.0
    %2272 = vmatprep.mubr.f32.mxu0 0.0
    %2273 = vmatmul.mubr.f32.gmra.mrb[0].mxu0 %v309
    %v2274 = vpop.f32.mrb[0].mxu0
    %v2275 = vadd.f32 0.0, %v2274
    %v2276 = vpop.f32.mrb[0].mxu0
    %2277 = vdwg.mxu0
    %2278 = vmatprep.subr.mxu0 0.0
    %2279 = vmatpush1.msra.mxu0 %v188
    %2280 = vmatprep.subr.mxu0 0.0
    %2281 = vmatpush1.msra.mxu0 0.0
    %2282 = vmatprep.subr.mxu0 0.0
    %2283 = vmatpush1.msra.mxu0 0.0
    %2284 = vmatprep.subr.mxu0 0.0
    %2285 = vmatpush1.msra.mxu0 0.0
    %2286 = vmatprep.subr.mxu0 0.0
    %2287 = vmatpush1.msra.mxu0 0.0
    %2288 = vmatprep.subr.mxu0 0.0
    %2289 = vmatpush1.msra.mxu0 0.0
    %2290 = vmatprep.subr.mxu0 0.0
    %2291 = vmatpush1.msra.mxu0 0.0
    %2292 = vmatprep.subr.mxu0 0.0
    %2293 = vmatpush1.msra.mxu0 0.0
    %2294 = vmatprep.subr.mxu0 0.0
    %2295 = vmatpush1.msra.mxu0 0.0
    %2296 = vmatprep.subr.mxu0 0.0
    %2297 = vmatpush1.msra.mxu0 0.0
    %2298 = vmatprep.subr.mxu0 0.0
    %2299 = vmatpush1.msra.mxu0 0.0
    %2300 = vmatprep.subr.mxu0 0.0
    %2301 = vmatpush1.msra.mxu0 0.0
    %2302 = vmatprep.subr.mxu0 0.0
    %2303 = vmatpush1.msra.mxu0 0.0
    %2304 = vmatprep.subr.mxu0 0.0
    %2305 = vmatpush1.msra.mxu0 0.0
    %2306 = vmatprep.subr.mxu0 0.0
    %2307 = vmatpush1.msra.mxu0 0.0
    %2308 = vmatprep.subr.mxu0 0.0
    %2309 = vmatpush1.msra.mxu0 0.0
    %2310 = vmatprep.subr.mxu0 0.0
    %2311 = vmatpush1.msra.mxu0 0.0
    %2312 = vmatprep.subr.mxu0 0.0
    %2313 = vmatpush1.msra.mxu0 0.0
    %2314 = vmatprep.subr.mxu0 0.0
    %2315 = vmatpush1.msra.mxu0 0.0
    %2316 = vmatprep.subr.mxu0 0.0
    %2317 = vmatpush1.msra.mxu0 0.0
    %2318 = vmatprep.subr.mxu0 0.0
    %2319 = vmatpush1.msra.mxu0 0.0
    %2320 = vmatprep.subr.mxu0 0.0
    %2321 = vmatpush1.msra.mxu0 0.0
    %2322 = vmatprep.subr.mxu0 0.0
    %2323 = vmatpush1.msra.mxu0 0.0
    %2324 = vmatprep.subr.mxu0 0.0
    %2325 = vmatpush1.msra.mxu0 0.0
    %2326 = vmatprep.subr.mxu0 0.0
    %2327 = vmatpush1.msra.mxu0 0.0
    %2328 = vmatprep.subr.mxu0 0.0
    %2329 = vmatpush1.msra.mxu0 0.0
    %2330 = vmatprep.subr.mxu0 0.0
    %2331 = vmatpush1.msra.mxu0 0.0
    %2332 = vmatprep.subr.mxu0 0.0
    %2333 = vmatpush1.msra.mxu0 0.0
    %2334 = vmatprep.subr.mxu0 0.0
    %2335 = vmatpush1.msra.mxu0 0.0
    %2336 = vmatprep.subr.mxu0 0.0
    %2337 = vmatpush1.msra.mxu0 0.0
    %2338 = vmatprep.subr.mxu0 0.0
    %2339 = vmatpush1.msra.mxu0 0.0
    %2340 = vmatprep.subr.mxu0 0.0
    %2341 = vmatpush1.msra.mxu0 0.0
    %2342 = vmatprep.mubr.f32.mxu0 0.0
    %2343 = vmatmul.mubr.f32.gmra.mrb[0].mxu0 %v2136
    %v2344 = vpop.f32.mrb[0].mxu0
    %v2345 = vadd.f32 0.0, %v2344
    %v2346 = vpop.f32.mrb[0].mxu0
    %2347 = vdwg.mxu0
    %2348 = vmatprep.subr.mxu0 0.0
    %2349 = vmatpush1.msra.mxu0 %v189
    %2350 = vmatprep.subr.mxu0 0.0
    %2351 = vmatpush1.msra.mxu0 0.0
    %2352 = vmatprep.subr.mxu0 0.0
    %2353 = vmatpush1.msra.mxu0 0.0
    %2354 = vmatprep.subr.mxu0 0.0
    %2355 = vmatpush1.msra.mxu0 0.0
    %2356 = vmatprep.subr.mxu0 0.0
    %2357 = vmatpush1.msra.mxu0 0.0
    %2358 = vmatprep.subr.mxu0 0.0
    %2359 = vmatpush1.msra.mxu0 0.0
    %2360 = vmatprep.subr.mxu0 0.0
    %2361 = vmatpush1.msra.mxu0 0.0
    %2362 = vmatprep.subr.mxu0 0.0
    %2363 = vmatpush1.msra.mxu0 0.0
    %2364 = vmatprep.subr.mxu0 0.0
    %2365 = vmatpush1.msra.mxu0 0.0
    %2366 = vmatprep.subr.mxu0 0.0
    %2367 = vmatpush1.msra.mxu0 0.0
    %2368 = vmatprep.subr.mxu0 0.0
    %2369 = vmatpush1.msra.mxu0 0.0
    %2370 = vmatprep.subr.mxu0 0.0
    %2371 = vmatpush1.msra.mxu0 0.0
    %2372 = vmatprep.subr.mxu0 0.0
    %2373 = vmatpush1.msra.mxu0 0.0
    %2374 = vmatprep.subr.mxu0 0.0
    %2375 = vmatpush1.msra.mxu0 0.0
    %2376 = vmatprep.subr.mxu0 0.0
    %2377 = vmatpush1.msra.mxu0 0.0
    %2378 = vmatprep.subr.mxu0 0.0
    %2379 = vmatpush1.msra.mxu0 0.0
    %2380 = vmatprep.subr.mxu0 0.0
    %2381 = vmatpush1.msra.mxu0 0.0
    %2382 = vmatprep.subr.mxu0 0.0
    %2383 = vmatpush1.msra.mxu0 0.0
    %2384 = vmatprep.subr.mxu0 0.0
    %2385 = vmatpush1.msra.mxu0 0.0
    %2386 = vmatprep.subr.mxu0 0.0
    %2387 = vmatpush1.msra.mxu0 0.0
    %2388 = vmatprep.subr.mxu0 0.0
    %2389 = vmatpush1.msra.mxu0 0.0
    %2390 = vmatprep.subr.mxu0 0.0
    %2391 = vmatpush1.msra.mxu0 0.0
    %2392 = vmatprep.subr.mxu0 0.0
    %2393 = vmatpush1.msra.mxu0 0.0
    %2394 = vmatprep.subr.mxu0 0.0
    %2395 = vmatpush1.msra.mxu0 0.0
    %2396 = vmatprep.subr.mxu0 0.0
    %2397 = vmatpush1.msra.mxu0 0.0
    %2398 = vmatprep.subr.mxu0 0.0
    %2399 = vmatpush1.msra.mxu0 0.0
    %2400 = vmatprep.subr.mxu0 0.0
    %2401 = vmatpush1.msra.mxu0 0.0
    %2402 = vmatprep.subr.mxu0 0.0
    %2403 = vmatpush1.msra.mxu0 0.0
    %2404 = vmatprep.subr.mxu0 0.0
    %2405 = vmatpush1.msra.mxu0 0.0
    %2406 = vmatprep.subr.mxu0 0.0
    %2407 = vmatpush1.msra.mxu0 0.0
    %2408 = vmatprep.subr.mxu0 0.0
    %2409 = vmatpush1.msra.mxu0 0.0
    %2410 = vmatprep.subr.mxu0 0.0
    %2411 = vmatpush1.msra.mxu0 0.0
    %2412 = vmatprep.mubr.f32.mxu0 0.0
    %2413 = vmatmul.mubr.f32.gmra.mrb[0].mxu0 %v2136
    %v2414 = vpop.f32.mrb[0].mxu0
    %v2415 = vadd.f32 0.0, %v2414
    %v2416 = vpop.f32.mrb[0].mxu0
    %2417 = vdwg.mxu0
    %2419 = vset.pattern.permute.xlu0 0
    %2420 = vperm.xlu0 %2419, %v2275
    %v2421 = vpop.permute.xlu0 %2420
    %v2423 = vlaneseq
    %v2424 = vshrl.u32 %v2423, 7
    %v2425 = vsub.s32 0, %v2424
    %v2426 = vrot.slane %v2205, %v2425
    %v2427 = vsub.f32 %v2421, %v2426
    %v2428 = vadd.f32 %v2427, %v531
    %v2429 = vmax.f32 %v2428, 0.0
    %v2431 = vsel %vm190, %v2345, 0
    %2433 = vmatprep.subr.mxu0 0.0
    %2434 = vmatpush1.msra.mxu0 %v2429
    %2435 = vmatprep.subr.mxu0 0.0
    %2436 = vmatpush1.msra.mxu0 0.0
    %2437 = vmatprep.subr.mxu0 0.0
    %2438 = vmatpush1.msra.mxu0 0.0
    %2439 = vmatprep.subr.mxu0 0.0
    %2440 = vmatpush1.msra.mxu0 0.0
    %2441 = vmatprep.subr.mxu0 0.0
    %2442 = vmatpush1.msra.mxu0 0.0
    %2443 = vmatprep.subr.mxu0 0.0
    %2444 = vmatpush1.msra.mxu0 0.0
    %2445 = vmatprep.subr.mxu0 0.0
    %2446 = vmatpush1.msra.mxu0 0.0
    %2447 = vmatprep.subr.mxu0 0.0
    %2448 = vmatpush1.msra.mxu0 0.0
    %2449 = vmatprep.subr.mxu0 0.0
    %2450 = vmatpush1.msra.mxu0 0.0
    %2451 = vmatprep.subr.mxu0 0.0
    %2452 = vmatpush1.msra.mxu0 0.0
    %2453 = vmatprep.subr.mxu0 0.0
    %2454 = vmatpush1.msra.mxu0 0.0
    %2455 = vmatprep.subr.mxu0 0.0
    %2456 = vmatpush1.msra.mxu0 0.0
    %2457 = vmatprep.subr.mxu0 0.0
    %2458 = vmatpush1.msra.mxu0 0.0
    %2459 = vmatprep.subr.mxu0 0.0
    %2460 = vmatpush1.msra.mxu0 0.0
    %2461 = vmatprep.subr.mxu0 0.0
    %2462 = vmatpush1.msra.mxu0 0.0
    %2463 = vmatprep.subr.mxu0 0.0
    %2464 = vmatpush1.msra.mxu0 0.0
    %2465 = vmatprep.subr.mxu0 0.0
    %2466 = vmatpush1.msra.mxu0 0.0
    %2467 = vmatprep.subr.mxu0 0.0
    %2468 = vmatpush1.msra.mxu0 0.0
    %2469 = vmatprep.subr.mxu0 0.0
    %2470 = vmatpush1.msra.mxu0 0.0
    %2471 = vmatprep.subr.mxu0 0.0
    %2472 = vmatpush1.msra.mxu0 0.0
    %2473 = vmatprep.subr.mxu0 0.0
    %2474 = vmatpush1.msra.mxu0 0.0
    %2475 = vmatprep.subr.mxu0 0.0
    %2476 = vmatpush1.msra.mxu0 0.0
    %2477 = vmatprep.subr.mxu0 0.0
    %2478 = vmatpush1.msra.mxu0 0.0
    %2479 = vmatprep.subr.mxu0 0.0
    %2480 = vmatpush1.msra.mxu0 0.0
    %2481 = vmatprep.subr.mxu0 0.0
    %2482 = vmatpush1.msra.mxu0 0.0
    %2483 = vmatprep.subr.mxu0 0.0
    %2484 = vmatpush1.msra.mxu0 0.0
    %2485 = vmatprep.subr.mxu0 0.0
    %2486 = vmatpush1.msra.mxu0 0.0
    %2487 = vmatprep.subr.mxu0 0.0
    %2488 = vmatpush1.msra.mxu0 0.0
    %2489 = vmatprep.subr.mxu0 0.0
    %2490 = vmatpush1.msra.mxu0 0.0
    %2491 = vmatprep.subr.mxu0 0.0
    %2492 = vmatpush1.msra.mxu0 0.0
    %2493 = vmatprep.subr.mxu0 0.0
    %2494 = vmatpush1.msra.mxu0 0.0
    %2495 = vmatprep.subr.mxu0 0.0
    %2496 = vmatpush1.msra.mxu0 0.0
    %2497 = vmatprep.mubr.f32.mxu0 0.0
    %2498 = vmatmul.mubr.f32.gmra.mrb[0].mxu0 %v2431
    %v2499 = vpop.f32.mrb[0].mxu0
    %v2500 = vadd.f32 0.0, %v2499
    %v2501 = vpop.f32.mrb[0].mxu0
    %2502 = vdwg.mxu0
    %v2503 = vmul.f32 %v2500, %v2415
    %v2504 = vsel %vm608, %v2503, 0.0
    %2505 = vadd.xlane.f32.xlu0 %v2504
    %v2506 = vpop.xlane.xlu0 %2505
    %v2507 = vadd.f32 %v2506, 0.0
    %s2508 = vtos %v2507
    %s2509 = sadd.f32 %s2130, %s2508
    %vm2510 = vcmp.eq.s32.totalorder %v185, 6
    %v2511 = vsel %vm2510, 1.0, 0.0
    %vm2512 = vcmp.eq.s32.totalorder %v181, 6
    %v2513 = vsel %vm2512, 1.0, 0.0
    %v2515 = vsel %vm190, %v2511, 0
    %2517 = vmatprep.subr.mxu0 0.0
    %2518 = vmatpush1.msra.mxu0 %v127
    %2519 = vmatprep.subr.mxu0 0.0
    %2520 = vmatpush1.msra.mxu0 0.0
    %2521 = vmatprep.subr.mxu0 0.0
    %2522 = vmatpush1.msra.mxu0 0.0
    %2523 = vmatprep.subr.mxu0 0.0
    %2524 = vmatpush1.msra.mxu0 0.0
    %2525 = vmatprep.subr.mxu0 0.0
    %2526 = vmatpush1.msra.mxu0 0.0
    %2527 = vmatprep.subr.mxu0 0.0
    %2528 = vmatpush1.msra.mxu0 0.0
    %2529 = vmatprep.subr.mxu0 0.0
    %2530 = vmatpush1.msra.mxu0 0.0
    %2531 = vmatprep.subr.mxu0 0.0
    %2532 = vmatpush1.msra.mxu0 0.0
    %2533 = vmatprep.subr.mxu0 0.0
    %2534 = vmatpush1.msra.mxu0 0.0
    %2535 = vmatprep.subr.mxu0 0.0
    %2536 = vmatpush1.msra.mxu0 0.0
    %2537 = vmatprep.subr.mxu0 0.0
    %2538 = vmatpush1.msra.mxu0 0.0
    %2539 = vmatprep.subr.mxu0 0.0
    %2540 = vmatpush1.msra.mxu0 0.0
    %2541 = vmatprep.subr.mxu0 0.0
    %2542 = vmatpush1.msra.mxu0 0.0
    %2543 = vmatprep.subr.mxu0 0.0
    %2544 = vmatpush1.msra.mxu0 0.0
    %2545 = vmatprep.subr.mxu0 0.0
    %2546 = vmatpush1.msra.mxu0 0.0
    %2547 = vmatprep.subr.mxu0 0.0
    %2548 = vmatpush1.msra.mxu0 0.0
    %2549 = vmatprep.subr.mxu0 0.0
    %2550 = vmatpush1.msra.mxu0 0.0
    %2551 = vmatprep.subr.mxu0 0.0
    %2552 = vmatpush1.msra.mxu0 0.0
    %2553 = vmatprep.subr.mxu0 0.0
    %2554 = vmatpush1.msra.mxu0 0.0
    %2555 = vmatprep.subr.mxu0 0.0
    %2556 = vmatpush1.msra.mxu0 0.0
    %2557 = vmatprep.subr.mxu0 0.0
    %2558 = vmatpush1.msra.mxu0 0.0
    %2559 = vmatprep.subr.mxu0 0.0
    %2560 = vmatpush1.msra.mxu0 0.0
    %2561 = vmatprep.subr.mxu0 0.0
    %2562 = vmatpush1.msra.mxu0 0.0
    %2563 = vmatprep.subr.mxu0 0.0
    %2564 = vmatpush1.msra.mxu0 0.0
    %2565 = vmatprep.subr.mxu0 0.0
    %2566 = vmatpush1.msra.mxu0 0.0
    %2567 = vmatprep.subr.mxu0 0.0
    %2568 = vmatpush1.msra.mxu0 0.0
    %2569 = vmatprep.subr.mxu0 0.0
    %2570 = vmatpush1.msra.mxu0 0.0
    %2571 = vmatprep.subr.mxu0 0.0
    %2572 = vmatpush1.msra.mxu0 0.0
    %2573 = vmatprep.subr.mxu0 0.0
    %2574 = vmatpush1.msra.mxu0 0.0
    %2575 = vmatprep.subr.mxu0 0.0
    %2576 = vmatpush1.msra.mxu0 0.0
    %2577 = vmatprep.subr.mxu0 0.0
    %2578 = vmatpush1.msra.mxu0 0.0
    %2579 = vmatprep.subr.mxu0 0.0
    %2580 = vmatpush1.msra.mxu0 0.0
    %2581 = vmatprep.mubr.f32.mxu0 0.0
    %2582 = vmatmul.mubr.f32.gmra.mrb[0].mxu0 %v2515
    %v2583 = vpop.f32.mrb[0].mxu0
    %v2584 = vadd.f32 0.0, %v2583
    %v2585 = vpop.f32.mrb[0].mxu0
    %2586 = vdwg.mxu0
    %2587 = vmatprep.subr.mxu0 0.0
    %2588 = vmatpush1.msra.mxu0 %v2513
    %2589 = vmatprep.subr.mxu0 0.0
    %2590 = vmatpush1.msra.mxu0 0.0
    %2591 = vmatprep.subr.mxu0 0.0
    %2592 = vmatpush1.msra.mxu0 0.0
    %2593 = vmatprep.subr.mxu0 0.0
    %2594 = vmatpush1.msra.mxu0 0.0
    %2595 = vmatprep.subr.mxu0 0.0
    %2596 = vmatpush1.msra.mxu0 0.0
    %2597 = vmatprep.subr.mxu0 0.0
    %2598 = vmatpush1.msra.mxu0 0.0
    %2599 = vmatprep.subr.mxu0 0.0
    %2600 = vmatpush1.msra.mxu0 0.0
    %2601 = vmatprep.subr.mxu0 0.0
    %2602 = vmatpush1.msra.mxu0 0.0
    %2603 = vmatprep.subr.mxu0 0.0
    %2604 = vmatpush1.msra.mxu0 0.0
    %2605 = vmatprep.subr.mxu0 0.0
    %2606 = vmatpush1.msra.mxu0 0.0
    %2607 = vmatprep.subr.mxu0 0.0
    %2608 = vmatpush1.msra.mxu0 0.0
    %2609 = vmatprep.subr.mxu0 0.0
    %2610 = vmatpush1.msra.mxu0 0.0
    %2611 = vmatprep.subr.mxu0 0.0
    %2612 = vmatpush1.msra.mxu0 0.0
    %2613 = vmatprep.subr.mxu0 0.0
    %2614 = vmatpush1.msra.mxu0 0.0
    %2615 = vmatprep.subr.mxu0 0.0
    %2616 = vmatpush1.msra.mxu0 0.0
    %2617 = vmatprep.subr.mxu0 0.0
    %2618 = vmatpush1.msra.mxu0 0.0
    %2619 = vmatprep.subr.mxu0 0.0
    %2620 = vmatpush1.msra.mxu0 0.0
    %2621 = vmatprep.subr.mxu0 0.0
    %2622 = vmatpush1.msra.mxu0 0.0
    %2623 = vmatprep.subr.mxu0 0.0
    %2624 = vmatpush1.msra.mxu0 0.0
    %2625 = vmatprep.subr.mxu0 0.0
    %2626 = vmatpush1.msra.mxu0 0.0
    %2627 = vmatprep.subr.mxu0 0.0
    %2628 = vmatpush1.msra.mxu0 0.0
    %2629 = vmatprep.subr.mxu0 0.0
    %2630 = vmatpush1.msra.mxu0 0.0
    %2631 = vmatprep.subr.mxu0 0.0
    %2632 = vmatpush1.msra.mxu0 0.0
    %2633 = vmatprep.subr.mxu0 0.0
    %2634 = vmatpush1.msra.mxu0 0.0
    %2635 = vmatprep.subr.mxu0 0.0
    %2636 = vmatpush1.msra.mxu0 0.0
    %2637 = vmatprep.subr.mxu0 0.0
    %2638 = vmatpush1.msra.mxu0 0.0
    %2639 = vmatprep.subr.mxu0 0.0
    %2640 = vmatpush1.msra.mxu0 0.0
    %2641 = vmatprep.subr.mxu0 0.0
    %2642 = vmatpush1.msra.mxu0 0.0
    %2643 = vmatprep.subr.mxu0 0.0
    %2644 = vmatpush1.msra.mxu0 0.0
    %2645 = vmatprep.subr.mxu0 0.0
    %2646 = vmatpush1.msra.mxu0 0.0
    %2647 = vmatprep.subr.mxu0 0.0
    %2648 = vmatpush1.msra.mxu0 0.0
    %2649 = vmatprep.subr.mxu0 0.0
    %2650 = vmatpush1.msra.mxu0 0.0
    %2651 = vmatprep.mubr.f32.mxu0 0.0
    %2652 = vmatmul.mubr.f32.gmra.mrb[0].mxu0 %v309
    %v2653 = vpop.f32.mrb[0].mxu0
    %v2654 = vadd.f32 0.0, %v2653
    %v2655 = vpop.f32.mrb[0].mxu0
    %2656 = vdwg.mxu0
    %2657 = vmatprep.subr.mxu0 0.0
    %2658 = vmatpush1.msra.mxu0 %v188
    %2659 = vmatprep.subr.mxu0 0.0
    %2660 = vmatpush1.msra.mxu0 0.0
    %2661 = vmatprep.subr.mxu0 0.0
    %2662 = vmatpush1.msra.mxu0 0.0
    %2663 = vmatprep.subr.mxu0 0.0
    %2664 = vmatpush1.msra.mxu0 0.0
    %2665 = vmatprep.subr.mxu0 0.0
    %2666 = vmatpush1.msra.mxu0 0.0
    %2667 = vmatprep.subr.mxu0 0.0
    %2668 = vmatpush1.msra.mxu0 0.0
    %2669 = vmatprep.subr.mxu0 0.0
    %2670 = vmatpush1.msra.mxu0 0.0
    %2671 = vmatprep.subr.mxu0 0.0
    %2672 = vmatpush1.msra.mxu0 0.0
    %2673 = vmatprep.subr.mxu0 0.0
    %2674 = vmatpush1.msra.mxu0 0.0
    %2675 = vmatprep.subr.mxu0 0.0
    %2676 = vmatpush1.msra.mxu0 0.0
    %2677 = vmatprep.subr.mxu0 0.0
    %2678 = vmatpush1.msra.mxu0 0.0
    %2679 = vmatprep.subr.mxu0 0.0
    %2680 = vmatpush1.msra.mxu0 0.0
    %2681 = vmatprep.subr.mxu0 0.0
    %2682 = vmatpush1.msra.mxu0 0.0
    %2683 = vmatprep.subr.mxu0 0.0
    %2684 = vmatpush1.msra.mxu0 0.0
    %2685 = vmatprep.subr.mxu0 0.0
    %2686 = vmatpush1.msra.mxu0 0.0
    %2687 = vmatprep.subr.mxu0 0.0
    %2688 = vmatpush1.msra.mxu0 0.0
    %2689 = vmatprep.subr.mxu0 0.0
    %2690 = vmatpush1.msra.mxu0 0.0
    %2691 = vmatprep.subr.mxu0 0.0
    %2692 = vmatpush1.msra.mxu0 0.0
    %2693 = vmatprep.subr.mxu0 0.0
    %2694 = vmatpush1.msra.mxu0 0.0
    %2695 = vmatprep.subr.mxu0 0.0
    %2696 = vmatpush1.msra.mxu0 0.0
    %2697 = vmatprep.subr.mxu0 0.0
    %2698 = vmatpush1.msra.mxu0 0.0
    %2699 = vmatprep.subr.mxu0 0.0
    %2700 = vmatpush1.msra.mxu0 0.0
    %2701 = vmatprep.subr.mxu0 0.0
    %2702 = vmatpush1.msra.mxu0 0.0
    %2703 = vmatprep.subr.mxu0 0.0
    %2704 = vmatpush1.msra.mxu0 0.0
    %2705 = vmatprep.subr.mxu0 0.0
    %2706 = vmatpush1.msra.mxu0 0.0
    %2707 = vmatprep.subr.mxu0 0.0
    %2708 = vmatpush1.msra.mxu0 0.0
    %2709 = vmatprep.subr.mxu0 0.0
    %2710 = vmatpush1.msra.mxu0 0.0
    %2711 = vmatprep.subr.mxu0 0.0
    %2712 = vmatpush1.msra.mxu0 0.0
    %2713 = vmatprep.subr.mxu0 0.0
    %2714 = vmatpush1.msra.mxu0 0.0
    %2715 = vmatprep.subr.mxu0 0.0
    %2716 = vmatpush1.msra.mxu0 0.0
    %2717 = vmatprep.subr.mxu0 0.0
    %2718 = vmatpush1.msra.mxu0 0.0
    %2719 = vmatprep.subr.mxu0 0.0
    %2720 = vmatpush1.msra.mxu0 0.0
    %2721 = vmatprep.mubr.f32.mxu0 0.0
    %2722 = vmatmul.mubr.f32.gmra.mrb[0].mxu0 %v2515
    %v2723 = vpop.f32.mrb[0].mxu0
    %v2724 = vadd.f32 0.0, %v2723
    %v2725 = vpop.f32.mrb[0].mxu0
    %2726 = vdwg.mxu0
    %2727 = vmatprep.subr.mxu0 0.0
    %2728 = vmatpush1.msra.mxu0 %v189
    %2729 = vmatprep.subr.mxu0 0.0
    %2730 = vmatpush1.msra.mxu0 0.0
    %2731 = vmatprep.subr.mxu0 0.0
    %2732 = vmatpush1.msra.mxu0 0.0
    %2733 = vmatprep.subr.mxu0 0.0
    %2734 = vmatpush1.msra.mxu0 0.0
    %2735 = vmatprep.subr.mxu0 0.0
    %2736 = vmatpush1.msra.mxu0 0.0
    %2737 = vmatprep.subr.mxu0 0.0
    %2738 = vmatpush1.msra.mxu0 0.0
    %2739 = vmatprep.subr.mxu0 0.0
    %2740 = vmatpush1.msra.mxu0 0.0
    %2741 = vmatprep.subr.mxu0 0.0
    %2742 = vmatpush1.msra.mxu0 0.0
    %2743 = vmatprep.subr.mxu0 0.0
    %2744 = vmatpush1.msra.mxu0 0.0
    %2745 = vmatprep.subr.mxu0 0.0
    %2746 = vmatpush1.msra.mxu0 0.0
    %2747 = vmatprep.subr.mxu0 0.0
    %2748 = vmatpush1.msra.mxu0 0.0
    %2749 = vmatprep.subr.mxu0 0.0
    %2750 = vmatpush1.msra.mxu0 0.0
    %2751 = vmatprep.subr.mxu0 0.0
    %2752 = vmatpush1.msra.mxu0 0.0
    %2753 = vmatprep.subr.mxu0 0.0
    %2754 = vmatpush1.msra.mxu0 0.0
    %2755 = vmatprep.subr.mxu0 0.0
    %2756 = vmatpush1.msra.mxu0 0.0
    %2757 = vmatprep.subr.mxu0 0.0
    %2758 = vmatpush1.msra.mxu0 0.0
    %2759 = vmatprep.subr.mxu0 0.0
    %2760 = vmatpush1.msra.mxu0 0.0
    %2761 = vmatprep.subr.mxu0 0.0
    %2762 = vmatpush1.msra.mxu0 0.0
    %2763 = vmatprep.subr.mxu0 0.0
    %2764 = vmatpush1.msra.mxu0 0.0
    %2765 = vmatprep.subr.mxu0 0.0
    %2766 = vmatpush1.msra.mxu0 0.0
    %2767 = vmatprep.subr.mxu0 0.0
    %2768 = vmatpush1.msra.mxu0 0.0
    %2769 = vmatprep.subr.mxu0 0.0
    %2770 = vmatpush1.msra.mxu0 0.0
    %2771 = vmatprep.subr.mxu0 0.0
    %2772 = vmatpush1.msra.mxu0 0.0
    %2773 = vmatprep.subr.mxu0 0.0
    %2774 = vmatpush1.msra.mxu0 0.0
    %2775 = vmatprep.subr.mxu0 0.0
    %2776 = vmatpush1.msra.mxu0 0.0
    %2777 = vmatprep.subr.mxu0 0.0
    %2778 = vmatpush1.msra.mxu0 0.0
    %2779 = vmatprep.subr.mxu0 0.0
    %2780 = vmatpush1.msra.mxu0 0.0
    %2781 = vmatprep.subr.mxu0 0.0
    %2782 = vmatpush1.msra.mxu0 0.0
    %2783 = vmatprep.subr.mxu0 0.0
    %2784 = vmatpush1.msra.mxu0 0.0
    %2785 = vmatprep.subr.mxu0 0.0
    %2786 = vmatpush1.msra.mxu0 0.0
    %2787 = vmatprep.subr.mxu0 0.0
    %2788 = vmatpush1.msra.mxu0 0.0
    %2789 = vmatprep.subr.mxu0 0.0
    %2790 = vmatpush1.msra.mxu0 0.0
    %2791 = vmatprep.mubr.f32.mxu0 0.0
    %2792 = vmatmul.mubr.f32.gmra.mrb[0].mxu0 %v2515
    %v2793 = vpop.f32.mrb[0].mxu0
    %v2794 = vadd.f32 0.0, %v2793
    %v2795 = vpop.f32.mrb[0].mxu0
    %2796 = vdwg.mxu0
    %2798 = vset.pattern.permute.xlu0 0
    %2799 = vperm.xlu0 %2798, %v2654
    %v2800 = vpop.permute.xlu0 %2799
    %v2802 = vlaneseq
    %v2803 = vshrl.u32 %v2802, 7
    %v2804 = vsub.s32 0, %v2803
    %v2805 = vrot.slane %v2584, %v2804
    %v2806 = vsub.f32 %v2800, %v2805
    %v2807 = vadd.f32 %v2806, %v531
    %v2808 = vmax.f32 %v2807, 0.0
    %v2810 = vsel %vm190, %v2724, 0
    %2812 = vmatprep.subr.mxu0 0.0
    %2813 = vmatpush1.msra.mxu0 %v2808
    %2814 = vmatprep.subr.mxu0 0.0
    %2815 = vmatpush1.msra.mxu0 0.0
    %2816 = vmatprep.subr.mxu0 0.0
    %2817 = vmatpush1.msra.mxu0 0.0
    %2818 = vmatprep.subr.mxu0 0.0
    %2819 = vmatpush1.msra.mxu0 0.0
    %2820 = vmatprep.subr.mxu0 0.0
    %2821 = vmatpush1.msra.mxu0 0.0
    %2822 = vmatprep.subr.mxu0 0.0
    %2823 = vmatpush1.msra.mxu0 0.0
    %2824 = vmatprep.subr.mxu0 0.0
    %2825 = vmatpush1.msra.mxu0 0.0
    %2826 = vmatprep.subr.mxu0 0.0
    %2827 = vmatpush1.msra.mxu0 0.0
    %2828 = vmatprep.subr.mxu0 0.0
    %2829 = vmatpush1.msra.mxu0 0.0
    %2830 = vmatprep.subr.mxu0 0.0
    %2831 = vmatpush1.msra.mxu0 0.0
    %2832 = vmatprep.subr.mxu0 0.0
    %2833 = vmatpush1.msra.mxu0 0.0
    %2834 = vmatprep.subr.mxu0 0.0
    %2835 = vmatpush1.msra.mxu0 0.0
    %2836 = vmatprep.subr.mxu0 0.0
    %2837 = vmatpush1.msra.mxu0 0.0
    %2838 = vmatprep.subr.mxu0 0.0
    %2839 = vmatpush1.msra.mxu0 0.0
    %2840 = vmatprep.subr.mxu0 0.0
    %2841 = vmatpush1.msra.mxu0 0.0
    %2842 = vmatprep.subr.mxu0 0.0
    %2843 = vmatpush1.msra.mxu0 0.0
    %2844 = vmatprep.subr.mxu0 0.0
    %2845 = vmatpush1.msra.mxu0 0.0
    %2846 = vmatprep.subr.mxu0 0.0
    %2847 = vmatpush1.msra.mxu0 0.0
    %2848 = vmatprep.subr.mxu0 0.0
    %2849 = vmatpush1.msra.mxu0 0.0
    %2850 = vmatprep.subr.mxu0 0.0
    %2851 = vmatpush1.msra.mxu0 0.0
    %2852 = vmatprep.subr.mxu0 0.0
    %2853 = vmatpush1.msra.mxu0 0.0
    %2854 = vmatprep.subr.mxu0 0.0
    %2855 = vmatpush1.msra.mxu0 0.0
    %2856 = vmatprep.subr.mxu0 0.0
    %2857 = vmatpush1.msra.mxu0 0.0
    %2858 = vmatprep.subr.mxu0 0.0
    %2859 = vmatpush1.msra.mxu0 0.0
    %2860 = vmatprep.subr.mxu0 0.0
    %2861 = vmatpush1.msra.mxu0 0.0
    %2862 = vmatprep.subr.mxu0 0.0
    %2863 = vmatpush1.msra.mxu0 0.0
    %2864 = vmatprep.subr.mxu0 0.0
    %2865 = vmatpush1.msra.mxu0 0.0
    %2866 = vmatprep.subr.mxu0 0.0
    %2867 = vmatpush1.msra.mxu0 0.0
    %2868 = vmatprep.subr.mxu0 0.0
    %2869 = vmatpush1.msra.mxu0 0.0
    %2870 = vmatprep.subr.mxu0 0.0
    %2871 = vmatpush1.msra.mxu0 0.0
    %2872 = vmatprep.subr.mxu0 0.0
    %2873 = vmatpush1.msra.mxu0 0.0
    %2874 = vmatprep.subr.mxu0 0.0
    %2875 = vmatpush1.msra.mxu0 0.0
    %2876 = vmatprep.mubr.f32.mxu0 0.0
    %2877 = vmatmul.mubr.f32.gmra.mrb[0].mxu0 %v2810
    %v2878 = vpop.f32.mrb[0].mxu0
    %v2879 = vadd.f32 0.0, %v2878
    %v2880 = vpop.f32.mrb[0].mxu0
    %2881 = vdwg.mxu0
    %v2882 = vmul.f32 %v2879, %v2794
    %v2883 = vsel %vm608, %v2882, 0.0
    %2884 = vadd.xlane.f32.xlu0 %v2883
    %v2885 = vpop.xlane.xlu0 %2884
    %v2886 = vadd.f32 %v2885, 0.0
    %s2887 = vtos %v2886
    %s2888 = sadd.f32 %s2509, %s2887
    %vm2889 = vcmp.eq.s32.totalorder %v185, 7
    %v2890 = vsel %vm2889, 1.0, 0.0
    %vm2891 = vcmp.eq.s32.totalorder %v181, 7
    %v2892 = vsel %vm2891, 1.0, 0.0
    %v2894 = vsel %vm190, %v2890, 0
    %2896 = vmatprep.subr.mxu0 0.0
    %2897 = vmatpush1.msra.mxu0 %v127
    %2898 = vmatprep.subr.mxu0 0.0
    %2899 = vmatpush1.msra.mxu0 0.0
    %2900 = vmatprep.subr.mxu0 0.0
    %2901 = vmatpush1.msra.mxu0 0.0
    %2902 = vmatprep.subr.mxu0 0.0
    %2903 = vmatpush1.msra.mxu0 0.0
    %2904 = vmatprep.subr.mxu0 0.0
    %2905 = vmatpush1.msra.mxu0 0.0
    %2906 = vmatprep.subr.mxu0 0.0
    %2907 = vmatpush1.msra.mxu0 0.0
    %2908 = vmatprep.subr.mxu0 0.0
    %2909 = vmatpush1.msra.mxu0 0.0
    %2910 = vmatprep.subr.mxu0 0.0
    %2911 = vmatpush1.msra.mxu0 0.0
    %2912 = vmatprep.subr.mxu0 0.0
    %2913 = vmatpush1.msra.mxu0 0.0
    %2914 = vmatprep.subr.mxu0 0.0
    %2915 = vmatpush1.msra.mxu0 0.0
    %2916 = vmatprep.subr.mxu0 0.0
    %2917 = vmatpush1.msra.mxu0 0.0
    %2918 = vmatprep.subr.mxu0 0.0
    %2919 = vmatpush1.msra.mxu0 0.0
    %2920 = vmatprep.subr.mxu0 0.0
    %2921 = vmatpush1.msra.mxu0 0.0
    %2922 = vmatprep.subr.mxu0 0.0
    %2923 = vmatpush1.msra.mxu0 0.0
    %2924 = vmatprep.subr.mxu0 0.0
    %2925 = vmatpush1.msra.mxu0 0.0
    %2926 = vmatprep.subr.mxu0 0.0
    %2927 = vmatpush1.msra.mxu0 0.0
    %2928 = vmatprep.subr.mxu0 0.0
    %2929 = vmatpush1.msra.mxu0 0.0
    %2930 = vmatprep.subr.mxu0 0.0
    %2931 = vmatpush1.msra.mxu0 0.0
    %2932 = vmatprep.subr.mxu0 0.0
    %2933 = vmatpush1.msra.mxu0 0.0
    %2934 = vmatprep.subr.mxu0 0.0
    %2935 = vmatpush1.msra.mxu0 0.0
    %2936 = vmatprep.subr.mxu0 0.0
    %2937 = vmatpush1.msra.mxu0 0.0
    %2938 = vmatprep.subr.mxu0 0.0
    %2939 = vmatpush1.msra.mxu0 0.0
    %2940 = vmatprep.subr.mxu0 0.0
    %2941 = vmatpush1.msra.mxu0 0.0
    %2942 = vmatprep.subr.mxu0 0.0
    %2943 = vmatpush1.msra.mxu0 0.0
    %2944 = vmatprep.subr.mxu0 0.0
    %2945 = vmatpush1.msra.mxu0 0.0
    %2946 = vmatprep.subr.mxu0 0.0
    %2947 = vmatpush1.msra.mxu0 0.0
    %2948 = vmatprep.subr.mxu0 0.0
    %2949 = vmatpush1.msra.mxu0 0.0
    %2950 = vmatprep.subr.mxu0 0.0
    %2951 = vmatpush1.msra.mxu0 0.0
    %2952 = vmatprep.subr.mxu0 0.0
    %2953 = vmatpush1.msra.mxu0 0.0
    %2954 = vmatprep.subr.mxu0 0.0
    %2955 = vmatpush1.msra.mxu0 0.0
    %2956 = vmatprep.subr.mxu0 0.0
    %2957 = vmatpush1.msra.mxu0 0.0
    %2958 = vmatprep.subr.mxu0 0.0
    %2959 = vmatpush1.msra.mxu0 0.0
    %2960 = vmatprep.mubr.f32.mxu0 0.0
    %2961 = vmatmul.mubr.f32.gmra.mrb[0].mxu0 %v2894
    %v2962 = vpop.f32.mrb[0].mxu0
    %v2963 = vadd.f32 0.0, %v2962
    %v2964 = vpop.f32.mrb[0].mxu0
    %2965 = vdwg.mxu0
    %2966 = vmatprep.subr.mxu0 0.0
    %2967 = vmatpush1.msra.mxu0 %v2892
    %2968 = vmatprep.subr.mxu0 0.0
    %2969 = vmatpush1.msra.mxu0 0.0
    %2970 = vmatprep.subr.mxu0 0.0
    %2971 = vmatpush1.msra.mxu0 0.0
    %2972 = vmatprep.subr.mxu0 0.0
    %2973 = vmatpush1.msra.mxu0 0.0
    %2974 = vmatprep.subr.mxu0 0.0
    %2975 = vmatpush1.msra.mxu0 0.0
    %2976 = vmatprep.subr.mxu0 0.0
    %2977 = vmatpush1.msra.mxu0 0.0
    %2978 = vmatprep.subr.mxu0 0.0
    %2979 = vmatpush1.msra.mxu0 0.0
    %2980 = vmatprep.subr.mxu0 0.0
    %2981 = vmatpush1.msra.mxu0 0.0
    %2982 = vmatprep.subr.mxu0 0.0
    %2983 = vmatpush1.msra.mxu0 0.0
    %2984 = vmatprep.subr.mxu0 0.0
    %2985 = vmatpush1.msra.mxu0 0.0
    %2986 = vmatprep.subr.mxu0 0.0
    %2987 = vmatpush1.msra.mxu0 0.0
    %2988 = vmatprep.subr.mxu0 0.0
    %2989 = vmatpush1.msra.mxu0 0.0
    %2990 = vmatprep.subr.mxu0 0.0
    %2991 = vmatpush1.msra.mxu0 0.0
    %2992 = vmatprep.subr.mxu0 0.0
    %2993 = vmatpush1.msra.mxu0 0.0
    %2994 = vmatprep.subr.mxu0 0.0
    %2995 = vmatpush1.msra.mxu0 0.0
    %2996 = vmatprep.subr.mxu0 0.0
    %2997 = vmatpush1.msra.mxu0 0.0
    %2998 = vmatprep.subr.mxu0 0.0
    %2999 = vmatpush1.msra.mxu0 0.0
    %3000 = vmatprep.subr.mxu0 0.0
    %3001 = vmatpush1.msra.mxu0 0.0
    %3002 = vmatprep.subr.mxu0 0.0
    %3003 = vmatpush1.msra.mxu0 0.0
    %3004 = vmatprep.subr.mxu0 0.0
    %3005 = vmatpush1.msra.mxu0 0.0
    %3006 = vmatprep.subr.mxu0 0.0
    %3007 = vmatpush1.msra.mxu0 0.0
    %3008 = vmatprep.subr.mxu0 0.0
    %3009 = vmatpush1.msra.mxu0 0.0
    %3010 = vmatprep.subr.mxu0 0.0
    %3011 = vmatpush1.msra.mxu0 0.0
    %3012 = vmatprep.subr.mxu0 0.0
    %3013 = vmatpush1.msra.mxu0 0.0
    %3014 = vmatprep.subr.mxu0 0.0
    %3015 = vmatpush1.msra.mxu0 0.0
    %3016 = vmatprep.subr.mxu0 0.0
    %3017 = vmatpush1.msra.mxu0 0.0
    %3018 = vmatprep.subr.mxu0 0.0
    %3019 = vmatpush1.msra.mxu0 0.0
    %3020 = vmatprep.subr.mxu0 0.0
    %3021 = vmatpush1.msra.mxu0 0.0
    %3022 = vmatprep.subr.mxu0 0.0
    %3023 = vmatpush1.msra.mxu0 0.0
    %3024 = vmatprep.subr.mxu0 0.0
    %3025 = vmatpush1.msra.mxu0 0.0
    %3026 = vmatprep.subr.mxu0 0.0
    %3027 = vmatpush1.msra.mxu0 0.0
    %3028 = vmatprep.subr.mxu0 0.0
    %3029 = vmatpush1.msra.mxu0 0.0
    %3030 = vmatprep.mubr.f32.mxu0 0.0
    %3031 = vmatmul.mubr.f32.gmra.mrb[0].mxu0 %v309
    %v3032 = vpop.f32.mrb[0].mxu0
    %v3033 = vadd.f32 0.0, %v3032
    %v3034 = vpop.f32.mrb[0].mxu0
    %3035 = vdwg.mxu0
    %3036 = vmatprep.subr.mxu0 0.0
    %3037 = vmatpush1.msra.mxu0 %v188
    %3038 = vmatprep.subr.mxu0 0.0
    %3039 = vmatpush1.msra.mxu0 0.0
    %3040 = vmatprep.subr.mxu0 0.0
    %3041 = vmatpush1.msra.mxu0 0.0
    %3042 = vmatprep.subr.mxu0 0.0
    %3043 = vmatpush1.msra.mxu0 0.0
    %3044 = vmatprep.subr.mxu0 0.0
    %3045 = vmatpush1.msra.mxu0 0.0
    %3046 = vmatprep.subr.mxu0 0.0
    %3047 = vmatpush1.msra.mxu0 0.0
    %3048 = vmatprep.subr.mxu0 0.0
    %3049 = vmatpush1.msra.mxu0 0.0
    %3050 = vmatprep.subr.mxu0 0.0
    %3051 = vmatpush1.msra.mxu0 0.0
    %3052 = vmatprep.subr.mxu0 0.0
    %3053 = vmatpush1.msra.mxu0 0.0
    %3054 = vmatprep.subr.mxu0 0.0
    %3055 = vmatpush1.msra.mxu0 0.0
    %3056 = vmatprep.subr.mxu0 0.0
    %3057 = vmatpush1.msra.mxu0 0.0
    %3058 = vmatprep.subr.mxu0 0.0
    %3059 = vmatpush1.msra.mxu0 0.0
    %3060 = vmatprep.subr.mxu0 0.0
    %3061 = vmatpush1.msra.mxu0 0.0
    %3062 = vmatprep.subr.mxu0 0.0
    %3063 = vmatpush1.msra.mxu0 0.0
    %3064 = vmatprep.subr.mxu0 0.0
    %3065 = vmatpush1.msra.mxu0 0.0
    %3066 = vmatprep.subr.mxu0 0.0
    %3067 = vmatpush1.msra.mxu0 0.0
    %3068 = vmatprep.subr.mxu0 0.0
    %3069 = vmatpush1.msra.mxu0 0.0
    %3070 = vmatprep.subr.mxu0 0.0
    %3071 = vmatpush1.msra.mxu0 0.0
    %3072 = vmatprep.subr.mxu0 0.0
    %3073 = vmatpush1.msra.mxu0 0.0
    %3074 = vmatprep.subr.mxu0 0.0
    %3075 = vmatpush1.msra.mxu0 0.0
    %3076 = vmatprep.subr.mxu0 0.0
    %3077 = vmatpush1.msra.mxu0 0.0
    %3078 = vmatprep.subr.mxu0 0.0
    %3079 = vmatpush1.msra.mxu0 0.0
    %3080 = vmatprep.subr.mxu0 0.0
    %3081 = vmatpush1.msra.mxu0 0.0
    %3082 = vmatprep.subr.mxu0 0.0
    %3083 = vmatpush1.msra.mxu0 0.0
    %3084 = vmatprep.subr.mxu0 0.0
    %3085 = vmatpush1.msra.mxu0 0.0
    %3086 = vmatprep.subr.mxu0 0.0
    %3087 = vmatpush1.msra.mxu0 0.0
    %3088 = vmatprep.subr.mxu0 0.0
    %3089 = vmatpush1.msra.mxu0 0.0
    %3090 = vmatprep.subr.mxu0 0.0
    %3091 = vmatpush1.msra.mxu0 0.0
    %3092 = vmatprep.subr.mxu0 0.0
    %3093 = vmatpush1.msra.mxu0 0.0
    %3094 = vmatprep.subr.mxu0 0.0
    %3095 = vmatpush1.msra.mxu0 0.0
    %3096 = vmatprep.subr.mxu0 0.0
    %3097 = vmatpush1.msra.mxu0 0.0
    %3098 = vmatprep.subr.mxu0 0.0
    %3099 = vmatpush1.msra.mxu0 0.0
    %3100 = vmatprep.mubr.f32.mxu0 0.0
    %3101 = vmatmul.mubr.f32.gmra.mrb[0].mxu0 %v2894
    %v3102 = vpop.f32.mrb[0].mxu0
    %v3103 = vadd.f32 0.0, %v3102
    %v3104 = vpop.f32.mrb[0].mxu0
    %3105 = vdwg.mxu0
    %3106 = vmatprep.subr.mxu0 0.0
    %3107 = vmatpush1.msra.mxu0 %v189
    %3108 = vmatprep.subr.mxu0 0.0
    %3109 = vmatpush1.msra.mxu0 0.0
    %3110 = vmatprep.subr.mxu0 0.0
    %3111 = vmatpush1.msra.mxu0 0.0
    %3112 = vmatprep.subr.mxu0 0.0
    %3113 = vmatpush1.msra.mxu0 0.0
    %3114 = vmatprep.subr.mxu0 0.0
    %3115 = vmatpush1.msra.mxu0 0.0
    %3116 = vmatprep.subr.mxu0 0.0
    %3117 = vmatpush1.msra.mxu0 0.0
    %3118 = vmatprep.subr.mxu0 0.0
    %3119 = vmatpush1.msra.mxu0 0.0
    %3120 = vmatprep.subr.mxu0 0.0
    %3121 = vmatpush1.msra.mxu0 0.0
    %3122 = vmatprep.subr.mxu0 0.0
    %3123 = vmatpush1.msra.mxu0 0.0
    %3124 = vmatprep.subr.mxu0 0.0
    %3125 = vmatpush1.msra.mxu0 0.0
    %3126 = vmatprep.subr.mxu0 0.0
    %3127 = vmatpush1.msra.mxu0 0.0
    %3128 = vmatprep.subr.mxu0 0.0
    %3129 = vmatpush1.msra.mxu0 0.0
    %3130 = vmatprep.subr.mxu0 0.0
    %3131 = vmatpush1.msra.mxu0 0.0
    %3132 = vmatprep.subr.mxu0 0.0
    %3133 = vmatpush1.msra.mxu0 0.0
    %3134 = vmatprep.subr.mxu0 0.0
    %3135 = vmatpush1.msra.mxu0 0.0
    %3136 = vmatprep.subr.mxu0 0.0
    %3137 = vmatpush1.msra.mxu0 0.0
    %3138 = vmatprep.subr.mxu0 0.0
    %3139 = vmatpush1.msra.mxu0 0.0
    %3140 = vmatprep.subr.mxu0 0.0
    %3141 = vmatpush1.msra.mxu0 0.0
    %3142 = vmatprep.subr.mxu0 0.0
    %3143 = vmatpush1.msra.mxu0 0.0
    %3144 = vmatprep.subr.mxu0 0.0
    %3145 = vmatpush1.msra.mxu0 0.0
    %3146 = vmatprep.subr.mxu0 0.0
    %3147 = vmatpush1.msra.mxu0 0.0
    %3148 = vmatprep.subr.mxu0 0.0
    %3149 = vmatpush1.msra.mxu0 0.0
    %3150 = vmatprep.subr.mxu0 0.0
    %3151 = vmatpush1.msra.mxu0 0.0
    %3152 = vmatprep.subr.mxu0 0.0
    %3153 = vmatpush1.msra.mxu0 0.0
    %3154 = vmatprep.subr.mxu0 0.0
    %3155 = vmatpush1.msra.mxu0 0.0
    %3156 = vmatprep.subr.mxu0 0.0
    %3157 = vmatpush1.msra.mxu0 0.0
    %3158 = vmatprep.subr.mxu0 0.0
    %3159 = vmatpush1.msra.mxu0 0.0
    %3160 = vmatprep.subr.mxu0 0.0
    %3161 = vmatpush1.msra.mxu0 0.0
    %3162 = vmatprep.subr.mxu0 0.0
    %3163 = vmatpush1.msra.mxu0 0.0
    %3164 = vmatprep.subr.mxu0 0.0
    %3165 = vmatpush1.msra.mxu0 0.0
    %3166 = vmatprep.subr.mxu0 0.0
    %3167 = vmatpush1.msra.mxu0 0.0
    %3168 = vmatprep.subr.mxu0 0.0
    %3169 = vmatpush1.msra.mxu0 0.0
    %3170 = vmatprep.mubr.f32.mxu0 0.0
    %3171 = vmatmul.mubr.f32.gmra.mrb[0].mxu0 %v2894
    %v3172 = vpop.f32.mrb[0].mxu0
    %v3173 = vadd.f32 0.0, %v3172
    %v3174 = vpop.f32.mrb[0].mxu0
    %3175 = vdwg.mxu0
    %3177 = vset.pattern.permute.xlu0 0
    %3178 = vperm.xlu0 %3177, %v3033
    %v3179 = vpop.permute.xlu0 %3178
    %v3181 = vlaneseq
    %v3182 = vshrl.u32 %v3181, 7
    %v3183 = vsub.s32 0, %v3182
    %v3184 = vrot.slane %v2963, %v3183
    %v3185 = vsub.f32 %v3179, %v3184
    %v3186 = vadd.f32 %v3185, %v531
    %v3187 = vmax.f32 %v3186, 0.0
    %v3189 = vsel %vm190, %v3103, 0
    %3191 = vmatprep.subr.mxu0 0.0
    %3192 = vmatpush1.msra.mxu0 %v3187
    %3193 = vmatprep.subr.mxu0 0.0
    %3194 = vmatpush1.msra.mxu0 0.0
    %3195 = vmatprep.subr.mxu0 0.0
    %3196 = vmatpush1.msra.mxu0 0.0
    %3197 = vmatprep.subr.mxu0 0.0
    %3198 = vmatpush1.msra.mxu0 0.0
    %3199 = vmatprep.subr.mxu0 0.0
    %3200 = vmatpush1.msra.mxu0 0.0
    %3201 = vmatprep.subr.mxu0 0.0
    %3202 = vmatpush1.msra.mxu0 0.0
    %3203 = vmatprep.subr.mxu0 0.0
    %3204 = vmatpush1.msra.mxu0 0.0
    %3205 = vmatprep.subr.mxu0 0.0
    %3206 = vmatpush1.msra.mxu0 0.0
    %3207 = vmatprep.subr.mxu0 0.0
    %3208 = vmatpush1.msra.mxu0 0.0
    %3209 = vmatprep.subr.mxu0 0.0
    %3210 = vmatpush1.msra.mxu0 0.0
    %3211 = vmatprep.subr.mxu0 0.0
    %3212 = vmatpush1.msra.mxu0 0.0
    %3213 = vmatprep.subr.mxu0 0.0
    %3214 = vmatpush1.msra.mxu0 0.0
    %3215 = vmatprep.subr.mxu0 0.0
    %3216 = vmatpush1.msra.mxu0 0.0
    %3217 = vmatprep.subr.mxu0 0.0
    %3218 = vmatpush1.msra.mxu0 0.0
    %3219 = vmatprep.subr.mxu0 0.0
    %3220 = vmatpush1.msra.mxu0 0.0
    %3221 = vmatprep.subr.mxu0 0.0
    %3222 = vmatpush1.msra.mxu0 0.0
    %3223 = vmatprep.subr.mxu0 0.0
    %3224 = vmatpush1.msra.mxu0 0.0
    %3225 = vmatprep.subr.mxu0 0.0
    %3226 = vmatpush1.msra.mxu0 0.0
    %3227 = vmatprep.subr.mxu0 0.0
    %3228 = vmatpush1.msra.mxu0 0.0
    %3229 = vmatprep.subr.mxu0 0.0
    %3230 = vmatpush1.msra.mxu0 0.0
    %3231 = vmatprep.subr.mxu0 0.0
    %3232 = vmatpush1.msra.mxu0 0.0
    %3233 = vmatprep.subr.mxu0 0.0
    %3234 = vmatpush1.msra.mxu0 0.0
    %3235 = vmatprep.subr.mxu0 0.0
    %3236 = vmatpush1.msra.mxu0 0.0
    %3237 = vmatprep.subr.mxu0 0.0
    %3238 = vmatpush1.msra.mxu0 0.0
    %3239 = vmatprep.subr.mxu0 0.0
    %3240 = vmatpush1.msra.mxu0 0.0
    %3241 = vmatprep.subr.mxu0 0.0
    %3242 = vmatpush1.msra.mxu0 0.0
    %3243 = vmatprep.subr.mxu0 0.0
    %3244 = vmatpush1.msra.mxu0 0.0
    %3245 = vmatprep.subr.mxu0 0.0
    %3246 = vmatpush1.msra.mxu0 0.0
    %3247 = vmatprep.subr.mxu0 0.0
    %3248 = vmatpush1.msra.mxu0 0.0
    %3249 = vmatprep.subr.mxu0 0.0
    %3250 = vmatpush1.msra.mxu0 0.0
    %3251 = vmatprep.subr.mxu0 0.0
    %3252 = vmatpush1.msra.mxu0 0.0
    %3253 = vmatprep.subr.mxu0 0.0
    %3254 = vmatpush1.msra.mxu0 0.0
    %3255 = vmatprep.mubr.f32.mxu0 0.0
    %3256 = vmatmul.mubr.f32.gmra.mrb[0].mxu0 %v3189
    %v3257 = vpop.f32.mrb[0].mxu0
    %v3258 = vadd.f32 0.0, %v3257
    %v3259 = vpop.f32.mrb[0].mxu0
    %3260 = vdwg.mxu0
    %v3261 = vmul.f32 %v3258, %v3173
    %v3262 = vsel %vm608, %v3261, 0.0
    %3263 = vadd.xlane.f32.xlu0 %v3262
    %v3264 = vpop.xlane.xlu0 %3263
    %v3265 = vadd.f32 %v3264, 0.0
    %s3266 = vtos %v3265
    %s3267 = sadd.f32 %s2888, %s3266
    %s3268 = sld [smem:[#allocation2]]
    %s3269 = sadd.f32 %s3268, %s3267
    %s3270 = scalar_lea.smem [#allocation2], 0
    %3271 = sst [smem:[%s3270]] %s3269
    %s3272 = sld [smem:[#allocation2 + $0x1]]
    %s3273 = sadd.f32 %s3272, %s208
    %s3274 = scalar_lea.smem [#allocation2], 1
    %3275 = sst [smem:[%s3274]] %s3273
    %s3276 = sld [smem:[#allocation2 + $0x2]]
    %s3277 = sadd.f32 %s3276, %s223
    %s3278 = scalar_lea.smem [#allocation2], 2
    %3279 = sst [smem:[%s3278]] %s3277
    %s3280 = sld [smem:[#allocation2 + $0x3]]
    %s3281 = sadd.f32 %s3280, %s230
    %s3282 = scalar_lea.smem [#allocation2], 3
    %3283 = sst [smem:[%s3282]] %s3281
    // Predicated region
    $region34: #{tpu_custom_call.1} parent=1 // pred_check
      %p3284 = pneg %p50
    $region35: #{tpu_custom_call.1} parent=1 // pred_check_branch
      %3286 = sbr.rel (%p3284) target = $region37
    $region36: #{tpu_custom_call.1} parent=1 // pred_region
      %s3287 = sld [smem:[#allocation2]]
      %s3288 = sld [smem:[#allocation2 + $0x1]]
      %s3289 = sld [smem:[#allocation2 + $0x2]]
      %s3290 = sld [smem:[#allocation2 + $0x3]]
      %p3291 = scmp.gt.f32.partialorder %s3288, 0.0
      %s3292 = smax.f32 %s3288, 1.0
      %v3293 = vstv %s3292
      %v3294 = vrcp.pop %v3293
      %s3295 = vtos %v3294
      %s3296 = smul.f32 %s3287, %s3295
      %s3297 = scalar_select %p3291, %s3296, 0.0
      %p3298 = scmp.gt.f32.partialorder %s3290, 0.0
      %s3299 = smax.f32 %s3290, 1.0
      %v3300 = vstv %s3299
      %v3301 = vrcp.pop %v3300
      %s3302 = vtos %v3301
      %s3303 = smul.f32 %s3289, %s3302
      %s3304 = scalar_select %p3298, %s3303, 0.0
      %s3305 = smul.f32 %s49, %s3304
      %s3306 = sadd.f32 %s3297, %s3305
      %s3307 = scalar_lea.smem [#allocation8], 0
      %3308 = sst [smem:[%s3307]] %s3306
    $region37: #{tpu_custom_call.1} parent=1 // pred_fallthru
      _
    // Predicated region
    $region38: #{tpu_custom_call.1} parent=1 // pred_check
      _
    $region39: #{tpu_custom_call.1} parent=1 // pred_check_branch
      %3310 = sbr.rel (0) target = $region41
    $region40: #{tpu_custom_call.1} parent=1 // pred_region
      %s3312 = ssub.s32 16, 16
      %3313 = vsyncadd [#allocation5], %s3312
      %3316 = dma.smem_to_hbm [#allocation8], 16, %s5, [#allocation5]
    $region41: #{tpu_custom_call.1} parent=1 // pred_fallthru
      _
    // Predicated region
    $region42: #{tpu_custom_call.1} parent=1 // pred_check
      _
    $region43: #{tpu_custom_call.1} parent=1 // pred_check_branch
      %3318 = sbr.rel (0) target = $region45
    $region44: #{tpu_custom_call.1} parent=1 // pred_region
      %3319 = dma.done [#allocation5], 16
    $region45: #{tpu_custom_call.1} parent=1 // pred_fallthru
      _
    %3320 = sfence
    %3321 = vsyncpa [#allocation4], 1
    %3322 = vsyncpa [#allocation5], 1
    %3323 = vsyncpa [#allocation6], 1

</llo_original>
